<compile_context>
chip_gen: v7x
topology: tpu7x:2x2x1
jax: 0.10.0
libtpu: 0.0.40
codegen_flags: <defaults>
</compile_context>

<pallas_src>
import functools
import math

import jax
import jax.numpy as jnp
from jax import lax
from jax.experimental import pallas as pl
from jax.experimental.pallas import tpu as pltpu


# ------------------------- hardware-aware tiling caps -------------------------

def _vmem_capacity_bytes():
    try:
        return int(pltpu.get_tpu_info().vmem_capacity_bytes)
    except Exception:
        return 64 << 20            # conservative default (v7x per-TC VMEM)


_VMEM_CAP = _vmem_capacity_bytes()
_BIG_VMEM = _VMEM_CAP >= (100 << 20)           # v5e / v6e: 128 MiB per core
_TM_MAX = 512 if _BIG_VMEM else 256            # rows per tile (sublane axis)
_TN_MAX = 1024 if _BIG_VMEM else 512           # output cols per tile (lane axis)
_TK_MAX = 1024 if _BIG_VMEM else 512           # contraction per tile (lane axis)
# Never request the full physical VMEM: leave headroom for Mosaic internals.
_VMEM_BUDGET = min((_VMEM_CAP * 3) // 4, 96 << 20)


def _pick_tile(dim, max_tile, align):
    """Largest t <= max_tile with t % align == 0 and dim % t == 0; else full dim."""
    if dim <= max_tile or dim % align != 0:
        return dim
    t = (max_tile // align) * align
    while t >= align:
        if dim % t == 0:
            return t
        t -= align
    return dim


def _clamp_vlim(need):
    return int(min(max(int(need), 24 << 20), _VMEM_BUDGET))


# ----------------------------- Pallas kernels --------------------------------

def _matmul_kernel(x_ref, w_ref, b_ref, o_ref, acc_ref, *, activation):
    """Tiled y = act(x @ w + b); K is the last (reduction) grid axis. bf16 MXU."""
    @pl.when(pl.program_id(2) == 0)
    def _():
        acc_ref[...] = jnp.zeros_like(acc_ref)

    acc_ref[...] += jnp.dot(x_ref[...].astype(jnp.bfloat16),
                            w_ref[...].astype(jnp.bfloat16),
                            preferred_element_type=jnp.float32)

    @pl.when(pl.program_id(2) == pl.num_programs(2) - 1)
    def _():
        r = acc_ref[...] + b_ref[...].astype(jnp.float32)
        if activation == "relu":
            r = jnp.maximum(r, 0.0)
        o_ref[...] = r.astype(o_ref.dtype)


def linear(x, w, b, activation=None):
    """x: (M, K), w: (K, N), b: (N,) -> act(x @ w + b), tiled + pipelined."""
    M, K = x.shape
    _, N = w.shape
    tm = _pick_tile(M, _TM_MAX, 8)
    tn = _pick_tile(N, _TN_MAX, 128)
    tk = _pick_tile(K, _TK_MAX, 128)

    def fp(tm_, tn_, tk_):
        blocks = tm_ * tk_ + tk_ * tn_ + tn_ + tm_ * tn_   # x, w, b, out (f32)
        return (2 * blocks + tm_ * tn_) * 4                 # double-buffered + acc

    while fp(tm, tn, tk) > _VMEM_BUDGET and tk % 256 == 0 and K % (tk // 2) == 0:
        tk //= 2
    while fp(tm, tn, tk) > _VMEM_BUDGET and tn % 256 == 0 and N % (tn // 2) == 0:
        tn //= 2
    while fp(tm, tn, tk) > _VMEM_BUDGET and tm % 16 == 0 and M % (tm // 2) == 0:
        tm //= 2

    vlim = _clamp_vlim(fp(tm, tn, tk) + (8 << 20))
    return pl.pallas_call(
        functools.partial(_matmul_kernel, activation=activation),
        out_shape=jax.ShapeDtypeStruct((M, N), x.dtype),
        grid=(M // tm, N // tn, K // tk),
        in_specs=[
            pl.BlockSpec((tm, tk), lambda i, j, k: (i, k)),
            pl.BlockSpec((tk, tn), lambda i, j, k: (k, j)),
            pl.BlockSpec((1, tn), lambda i, j, k: (0, j)),
        ],
        out_specs=pl.BlockSpec((tm, tn), lambda i, j, k: (i, j)),
        scratch_shapes=[pltpu.VMEM((tm, tn), jnp.float32)],
        compiler_params=pltpu.CompilerParams(
            dimension_semantics=("parallel", "parallel", "arbitrary"),
            vmem_limit_bytes=vlim),
    )(x, w, b.reshape(1, N))


def _matmul_add_ln_kernel(x_ref, w_ref, b_ref, res_ref, g_ref, beta_ref,
                          o_ref, acc_ref, *, eps):
    """Tiled y = LayerNorm(residual + x @ w + b); LN fused into the finalize step."""
    @pl.when(pl.program_id(1) == 0)
    def _():
        acc_ref[...] = jnp.zeros_like(acc_ref)

    acc_ref[...] += jnp.dot(x_ref[...].astype(jnp.bfloat16),
                            w_ref[...].astype(jnp.bfloat16),
                            preferred_element_type=jnp.float32)

    @pl.when(pl.program_id(1) == pl.num_programs(1) - 1)
    def _():
        z = (acc_ref[...] + b_ref[...].astype(jnp.float32)
             + res_ref[...].astype(jnp.float32))
        mean = jnp.mean(z, axis=-1, keepdims=True)
        var = jnp.mean((z - mean) ** 2, axis=-1, keepdims=True)
        zn = (z - mean) * lax.rsqrt(var + eps)
        o_ref[...] = (zn * g_ref[...].astype(jnp.float32)
                      + beta_ref[...].astype(jnp.float32)).astype(o_ref.dtype)


def linear_add_layernorm(x, w, b, residual, gamma, beta, eps=1e-5):
    """LayerNorm(residual + x @ w + b). N (= d_model) kept whole for the LN
    reduction; tk/tm are shrunk if the full-N footprint exceeds the VMEM budget
    (matters for large d_model on v7x's 64 MiB per-TC VMEM)."""
    M, K = x.shape
    _, N = w.shape
    tm = _pick_tile(M, _TM_MAX, 8)
    tk = _pick_tile(K, _TK_MAX, 128)

    def fp(tm_, tk_):
        blocks = tm_ * tk_ + tk_ * N + 3 * N + 2 * tm_ * N  # x, w, (b,g,beta), res, out
        return (2 * blocks + tm_ * N) * 4                    # double-buffered + acc

    while fp(tm, tk) > _VMEM_BUDGET and tk % 256 == 0 and K % (tk // 2) == 0:
        tk //= 2
    while fp(tm, tk) > _VMEM_BUDGET and tm % 16 == 0 and M % (tm // 2) == 0:
        tm //= 2

    vlim = _clamp_vlim(fp(tm, tk) + (8 << 20))
    return pl.pallas_call(
        functools.partial(_matmul_add_ln_kernel, eps=eps),
        out_shape=jax.ShapeDtypeStruct((M, N), x.dtype),
        grid=(M // tm, K // tk),
        in_specs=[
            pl.BlockSpec((tm, tk), lambda i, k: (i, k)),
            pl.BlockSpec((tk, N), lambda i, k: (k, 0)),
            pl.BlockSpec((1, N), lambda i, k: (0, 0)),
            pl.BlockSpec((tm, N), lambda i, k: (i, 0)),
            pl.BlockSpec((1, N), lambda i, k: (0, 0)),
            pl.BlockSpec((1, N), lambda i, k: (0, 0)),
        ],
        out_specs=pl.BlockSpec((tm, N), lambda i, k: (i, 0)),
        scratch_shapes=[pltpu.VMEM((tm, N), jnp.float32)],
        compiler_params=pltpu.CompilerParams(
            dimension_semantics=("parallel", "arbitrary"),
            vmem_limit_bytes=vlim),
    )(x, w, b.reshape(1, N), residual, gamma.reshape(1, N), beta.reshape(1, N))


def _attention_kernel(q_ref, k_ref, v_ref, o_ref, *, scale, causal):
    """All heads of one batch element / one query tile in a single batched
    contraction.  q_ref: (1, H, tq, dh); k_ref/v_ref: (1, H, Sk, dh)."""
    q = (q_ref[0].astype(jnp.float32) * scale).astype(jnp.bfloat16)   # scale hoisted
    k = k_ref[0].astype(jnp.bfloat16)
    v = v_ref[0].astype(jnp.bfloat16)

    # (H, tq, dh) x (H, Sk, dh) -> (H, tq, Sk): one head-batched MXU op.
    s = jnp.einsum("hqd,hkd->hqk", q, k, preferred_element_type=jnp.float32)

    if causal:
        tq, sk = s.shape[1], s.shape[2]
        row = lax.broadcasted_iota(jnp.int32, (tq, sk), 0) + pl.program_id(1) * tq
        col = lax.broadcasted_iota(jnp.int32, (tq, sk), 1)
        s = jnp.where((row >= col)[None], s, -1e30)   # mask in f32 (bf16-safe)

    m = jnp.max(s, axis=-1, keepdims=True)
    p = jnp.exp(s - m)
    l = jnp.sum(p, axis=-1, keepdims=True)
    p = p * pl.reciprocal(l, approx=True)

    o = jnp.einsum("hqk,hkd->hqd", p.astype(jnp.bfloat16), v,
                   preferred_element_type=jnp.float32)
    o_ref[0] = o.astype(o_ref.dtype)


def mha(q, k, v, *, causal):
    """Multi-head attention.  q: (B, H, Sq, dh), k/v: (B, H, Sk, dh) head-major.
    Grid = (B, query tiles), both parallel (keeps both v7x TCs busy).  K/V stay
    resident across query tiles (same block index on the qi axis)."""
    B, H, Sq, dh = q.shape
    Sk = k.shape[2]
    tq = _pick_tile(Sq, 256, 8)
    scale = 1.0 / math.sqrt(dh)
    dsz = q.dtype.itemsize

    blocks = (2 * H * tq * dh + 2 * H * Sk * dh) * dsz            # q, out, k, v blocks
    inter = 4 * H * tq * Sk * 4 + 4 * H * tq * dh * 4             # scores/p + f32 temps
    vlim = _clamp_vlim(2 * blocks + inter + (8 << 20))

    return pl.pallas_call(
        functools.partial(_attention_kernel, scale=scale, causal=causal),
        out_shape=jax.ShapeDtypeStruct((B, H, Sq, dh), q.dtype),
        grid=(B, Sq // tq),
        in_specs=[
            pl.BlockSpec((1, H, tq, dh), lambda b, qi: (b, 0, qi, 0)),
            pl.BlockSpec((1, H, Sk, dh), lambda b, qi: (b, 0, 0, 0)),
            pl.BlockSpec((1, H, Sk, dh), lambda b, qi: (b, 0, 0, 0)),
        ],
        out_specs=pl.BlockSpec((1, H, tq, dh), lambda b, qi: (b, 0, qi, 0)),
        compiler_params=pltpu.CompilerParams(
            dimension_semantics=("parallel", "parallel"),
            vmem_limit_bytes=vlim),
    )(q, k, v)


# --------------------------- head layout plumbing ------------------------------

def _split_heads_packed(packed, B, S, H, dh, parts):
    """(B*S, parts*H*dh) -> `parts` arrays of shape (B, H, S, dh) (head-major)."""
    x = packed.reshape(B, S, parts, H, dh).transpose(2, 0, 3, 1, 4)
    return tuple(x[i] for i in range(parts))


def _merge_heads(x):
    """(B, H, S, dh) -> (B*S, H*dh) lane-dense for the output projection."""
    B, H, S, dh = x.shape
    return x.transpose(0, 2, 1, 3).reshape(B * S, H * dh)


# ------------------------------ Model (glue) ---------------------------------

def decoder_layer(x, memory, p, num_heads):
    B, S, D = x.shape
    Bm, Sm, _ = memory.shape
    H = num_heads
    dh = D // H
    x2 = x.reshape(B * S, D)
    mem2 = memory.reshape(Bm * Sm, D)

    # --- masked self-attention (causal mask generated in-kernel) ---
    sa = p["self_attn"]
    qkv = linear(x2, sa["w_qkv"], sa["b_qkv"])                     # (B*S, 3D), x read once
    q, k, v = _split_heads_packed(qkv, B, S, H, dh, 3)
    a = _merge_heads(mha(q, k, v, causal=True))                    # (B*S, D)
    # out-projection fused with residual-add + LayerNorm1
    x2 = linear_add_layernorm(a, sa["wo"], sa["bo"], x2, p["ln1_g"], p["ln1_b"])

    # --- cross-attention over encoder memory (no mask) ---
    ca = p["cross_attn"]
    q = linear(x2, ca["wq"], ca["bq"]).reshape(B, S, H, dh).transpose(0, 2, 1, 3)
    kv = linear(mem2, ca["w_kv"], ca["b_kv"])                      # (Bm*Sm, 2D), mem read once
    k, v = _split_heads_packed(kv, Bm, Sm, H, dh, 2)
    c = _merge_heads(mha(q, k, v, causal=False))                   # (B*S, D)
    # out-projection fused with residual-add + LayerNorm2
    x2 = linear_add_layernorm(c, ca["wo"], ca["bo"], x2, p["ln2_g"], p["ln2_b"])

    # --- feed forward: w1 + ReLU, then w2 fused with residual-add + LayerNorm3 ---
    h = linear(x2, p["ff_w1"], p["ff_b1"], activation="relu")
    x2 = linear_add_layernorm(h, p["ff_w2"], p["ff_b2"], x2, p["ln3_g"], p["ln3_b"])

    return x2.reshape(B, S, D)


def positional_encoding(S, D):
    pos = jnp.arange(S, dtype=jnp.float32)[:, None]
    div = jnp.exp(jnp.arange(0, D, 2, dtype=jnp.float32) * (-math.log(10000.0) / D))
    pe = jnp.zeros((S, D), dtype=jnp.float32)
    pe = pe.at[:, 0::2].set(jnp.sin(pos * div))
    pe = pe.at[:, 1::2].set(jnp.cos(pos * div))
    return pe


def decoder_forward(tgt_ids, memory, params, num_heads):
    emb = params["embedding"]
    D = emb.shape[1]
    x = jnp.take(emb, tgt_ids, axis=0) * math.sqrt(D)     # embedding * sqrt(d_model)
    x = x + positional_encoding(tgt_ids.shape[1], D)[None]
    # TODO(synk): dropout layers are identity (inference / eval semantics).
    # TODO(synk): tgt_mask is the standard causal mask generated in-kernel via iota;
    #             arbitrary user-supplied padding masks are not plumbed through.
    for lp in params["layers"]:
        x = decoder_layer(x, memory, lp, num_heads)
    return x


# --------------------------- deterministic init -------------------------------

def _init_layer(key, d_model, d_ff):
    ks = jax.random.split(key, 7)

    def w(k, shape):
        return 0.02 * jax.random.normal(k, shape, jnp.float32)

    self_attn = dict(
        w_qkv=w(ks[0], (d_model, 3 * d_model)), b_qkv=jnp.zeros((3 * d_model,), jnp.float32),
        wo=w(ks[1], (d_model, d_model)), bo=jnp.zeros((d_model,), jnp.float32),
    )
    cross_attn = dict(
        wq=w(ks[2], (d_model, d_model)), bq=jnp.zeros((d_model,), jnp.float32),
        w_kv=w(ks[3], (d_model, 2 * d_model)), b_kv=jnp.zeros((2 * d_model,), jnp.float32),
        wo=w(ks[4], (d_model, d_model)), bo=jnp.zeros((d_model,), jnp.float32),
    )
    return dict(
        self_attn=self_attn,
        cross_attn=cross_attn,
        ff_w1=w(ks[5], (d_model, d_ff)), ff_b1=jnp.zeros((d_ff,), jnp.float32),
        ff_w2=w(ks[6], (d_ff, d_model)), ff_b2=jnp.zeros((d_model,), jnp.float32),
        ln1_g=jnp.ones((d_model,), jnp.float32), ln1_b=jnp.zeros((d_model,), jnp.float32),
        ln2_g=jnp.ones((d_model,), jnp.float32), ln2_b=jnp.zeros((d_model,), jnp.float32),
        ln3_g=jnp.ones((d_model,), jnp.float32), ln3_b=jnp.zeros((d_model,), jnp.float32),
    )


def init_decoder_params(key, vocab_size, d_model, num_layers, d_ff):
    keys = jax.random.split(key, num_layers + 1)
    return dict(
        embedding=jax.random.normal(keys[0], (vocab_size, d_model), jnp.float32),
        layers=[_init_layer(keys[i + 1], d_model, d_ff) for i in range(num_layers)],
    )


# ----------------------------------- main -------------------------------------

if __name__ == "__main__":
    vocab_size = 50
    d_model = 32
    num_layers = 2
    num_heads = 4
    d_ff = 64
    B, S_tgt, S_mem = 2, 8, 8

    key = jax.random.PRNGKey(0)
    k_par, k_tgt, k_mem = jax.random.split(key, 3)

    params = init_decoder_params(k_par, vocab_size, d_model, num_layers, d_ff)
    tgt_ids = jax.random.randint(k_tgt, (B, S_tgt), 0, vocab_size)
    memory = jax.random.normal(k_mem, (B, S_mem, d_model), jnp.float32)

    fwd = jax.jit(decoder_forward, static_argnums=(3,))
    out = fwd(tgt_ids, memory, params, num_heads)
    out = jax.block_until_ready(out)
    assert out.shape == (B, S_tgt, d_model)
    assert bool(jnp.all(jnp.isfinite(out)))
    print("KERNEL_OK")
</pallas_src>

<mosaic_0001>
module attributes {stable_mosaic.version = 11 : i64} {
  func.func @_matmul_kernel(%arg0: i32, %arg1: i32, %arg2: i32, %arg3: memref<16x32xf32, #tpu.memory_space<vmem>>, %arg4: memref<32x96xf32, #tpu.memory_space<vmem>>, %arg5: memref<1x96xf32, #tpu.memory_space<vmem>>, %arg6: memref<16x96xf32, #tpu.memory_space<vmem>>, %arg7: memref<16x96xf32, #tpu.memory_space<vmem>>) attributes {dimension_semantics = [#tpu.dimension_semantics<parallel>, #tpu.dimension_semantics<parallel>, #tpu.dimension_semantics<arbitrary>], iteration_bounds = array<i64: 1, 1, 1>, scalar_prefetch = 0 : i64, scratch_operands = 1 : i64, tpu.core_type = #tpu.core_type<tc>, window_params = [{transform_indices = @transform_0, window_bounds = array<i64: 16, 32>}, {transform_indices = @transform_1, window_bounds = array<i64: 32, 96>}, {transform_indices = @transform_2, window_bounds = array<i64: 1, 96>}, {transform_indices = @transform_3, window_bounds = array<i64: 16, 96>}]} {
    %c0_i32 = arith.constant 0 : i32
    %0 = arith.cmpi eq, %arg2, %c0_i32 : i32
    %1 = arith.extui %0 : i1 to i32
    %c0_i32_0 = arith.constant 0 : i32
    %2 = arith.cmpi ne, %1, %c0_i32_0 : i32
    scf.if %2 {
      %cst_10 = arith.constant 0.000000e+00 : f32
      %14 = vector.broadcast %cst_10 : f32 to vector<16x96xf32>
      %c0_11 = arith.constant 0 : index
      %c0_12 = arith.constant 0 : index
      %15 = vector.load %arg7[%c0_11, %c0_12] : memref<16x96xf32, #tpu.memory_space<vmem>>, vector<16x96xf32>
      tpu.vector_store %arg7[%c0_11, %c0_12], %14 {strides = array<i32>} : memref<16x96xf32, #tpu.memory_space<vmem>>, vector<16x96xf32>,
    } else {
    }
    %c0 = arith.constant 0 : index
    %c0_1 = arith.constant 0 : index
    %3 = vector.load %arg7[%c0, %c0_1] : memref<16x96xf32, #tpu.memory_space<vmem>>, vector<16x96xf32>
    %c0_2 = arith.constant 0 : index
    %c0_3 = arith.constant 0 : index
    %4 = vector.load %arg3[%c0_2, %c0_3] : memref<16x32xf32, #tpu.memory_space<vmem>>, vector<16x32xf32>
    %5 = arith.truncf %4 : vector<16x32xf32> to vector<16x32xbf16>
    %c0_4 = arith.constant 0 : index
    %c0_5 = arith.constant 0 : index
    %6 = vector.load %arg4[%c0_4, %c0_5] : memref<32x96xf32, #tpu.memory_space<vmem>>, vector<32x96xf32>
    %7 = arith.truncf %6 : vector<32x96xf32> to vector<32x96xbf16>
    %cst = arith.constant dense<0.000000e+00> : vector<16x96xf32>
    %8 = tpu.matmul %5, %7, %cst {dimension_numbers = #tpu.dot_dimension_numbers<[1], [0], [0], [1], [0, 0, 1, 1], [], []>} : vector<16x32xbf16>, vector<32x96xbf16>, vector<16x96xf32> -> vector<16x96xf32>
    %9 = arith.addf %3, %8 : vector<16x96xf32>
    %c0_6 = arith.constant 0 : index
    %c0_7 = arith.constant 0 : index
    %10 = vector.load %arg7[%c0_6, %c0_7] : memref<16x96xf32, #tpu.memory_space<vmem>>, vector<16x96xf32>
    tpu.vector_store %arg7[%c0_6, %c0_7], %9 {strides = array<i32>} : memref<16x96xf32, #tpu.memory_space<vmem>>, vector<16x96xf32>,
    %c0_i32_8 = arith.constant 0 : i32
    %11 = arith.cmpi eq, %arg2, %c0_i32_8 : i32
    %12 = arith.extui %11 : i1 to i32
    %c0_i32_9 = arith.constant 0 : i32
    %13 = arith.cmpi ne, %12, %c0_i32_9 : i32
    scf.if %13 {
      %c0_10 = arith.constant 0 : index
      %c0_11 = arith.constant 0 : index
      %14 = vector.load %arg7[%c0_10, %c0_11] : memref<16x96xf32, #tpu.memory_space<vmem>>, vector<16x96xf32>
      %c0_12 = arith.constant 0 : index
      %c0_13 = arith.constant 0 : index
      %15 = vector.load %arg5[%c0_12, %c0_13] : memref<1x96xf32, #tpu.memory_space<vmem>>, vector<1x96xf32>
      %16 = vector.broadcast %15 : vector<1x96xf32> to vector<16x96xf32>
      %17 = arith.addf %14, %16 : vector<16x96xf32>
      %c0_14 = arith.constant 0 : index
      %c0_15 = arith.constant 0 : index
      %18 = vector.load %arg6[%c0_14, %c0_15] : memref<16x96xf32, #tpu.memory_space<vmem>>, vector<16x96xf32>
      tpu.vector_store %arg6[%c0_14, %c0_15], %17 {strides = array<i32>} : memref<16x96xf32, #tpu.memory_space<vmem>>, vector<16x96xf32>,
    } else {
    }
    return
  }
  func.func @transform_0(%arg0: i32, %arg1: i32, %arg2: i32) -> (i32, i32) {
    %c0_i32 = arith.constant 0 : i32
    return %arg0, %arg2 : i32, i32
  }
  func.func @transform_1(%arg0: i32, %arg1: i32, %arg2: i32) -> (i32, i32) {
    %c0_i32 = arith.constant 0 : i32
    return %arg2, %arg1 : i32, i32
  }
  func.func @transform_2(%arg0: i32, %arg1: i32, %arg2: i32) -> (i32, i32) {
    %c0_i32 = arith.constant 0 : i32
    %c0_i32_0 = arith.constant 0 : i32
    return %c0_i32, %arg1 : i32, i32
  }
  func.func @transform_3(%arg0: i32, %arg1: i32, %arg2: i32) -> (i32, i32) {
    %c0_i32 = arith.constant 0 : i32
    return %arg0, %arg1 : i32, i32
  }
}

module attributes {stable_mosaic.version = 11 : i64} {
  func.func @_attention_kernel(%arg0: i32, %arg1: i32, %arg2: memref<1x4x8x8xf32, #tpu.memory_space<vmem>>, %arg3: memref<1x4x8x8xf32, #tpu.memory_space<vmem>>, %arg4: memref<1x4x8x8xf32, #tpu.memory_space<vmem>>, %arg5: memref<1x4x8x8xf32, #tpu.memory_space<vmem>>) attributes {dimension_semantics = [#tpu.dimension_semantics<parallel>, #tpu.dimension_semantics<parallel>], iteration_bounds = array<i64: 2, 1>, scalar_prefetch = 0 : i64, scratch_operands = 0 : i64, tpu.core_type = #tpu.core_type<tc>, window_params = [{transform_indices = @transform_0, window_bounds = array<i64: 1, 4, 8, 8>}, {transform_indices = @transform_1, window_bounds = array<i64: 1, 4, 8, 8>}, {transform_indices = @transform_2, window_bounds = array<i64: 1, 4, 8, 8>}, {transform_indices = @transform_3, window_bounds = array<i64: 1, 4, 8, 8>}]} {
    %c0 = arith.constant 0 : index
    %c0_0 = arith.constant 0 : index
    %c0_1 = arith.constant 0 : index
    %c0_2 = arith.constant 0 : index
    %0 = vector.load %arg2[%c0, %c0_0, %c0_1, %c0_2] : memref<1x4x8x8xf32, #tpu.memory_space<vmem>>, vector<1x4x8x8xf32>
    %1 = vector.shape_cast %0 : vector<1x4x8x8xf32> to vector<4x8x8xf32>
    %cst = arith.constant 0.353553385 : f32
    %2 = vector.broadcast %cst : f32 to vector<4x8x8xf32>
    %3 = arith.mulf %1, %2 : vector<4x8x8xf32>
    %4 = arith.truncf %3 : vector<4x8x8xf32> to vector<4x8x8xbf16>
    %c0_3 = arith.constant 0 : index
    %c0_4 = arith.constant 0 : index
    %c0_5 = arith.constant 0 : index
    %c0_6 = arith.constant 0 : index
    %5 = vector.load %arg3[%c0_3, %c0_4, %c0_5, %c0_6] : memref<1x4x8x8xf32, #tpu.memory_space<vmem>>, vector<1x4x8x8xf32>
    %6 = vector.shape_cast %5 : vector<1x4x8x8xf32> to vector<4x8x8xf32>
    %7 = arith.truncf %6 : vector<4x8x8xf32> to vector<4x8x8xbf16>
    %c0_7 = arith.constant 0 : index
    %c0_8 = arith.constant 0 : index
    %c0_9 = arith.constant 0 : index
    %c0_10 = arith.constant 0 : index
    %8 = vector.load %arg4[%c0_7, %c0_8, %c0_9, %c0_10] : memref<1x4x8x8xf32, #tpu.memory_space<vmem>>, vector<1x4x8x8xf32>
    %9 = vector.shape_cast %8 : vector<1x4x8x8xf32> to vector<4x8x8xf32>
    %10 = arith.truncf %9 : vector<4x8x8xf32> to vector<4x8x8xbf16>
    "tpu.trace_start"() <{level = 10 : i32, message = "hqd,hkd->hqk"}> : () -> ()
    %cst_11 = arith.constant dense<0.000000e+00> : vector<4x8x8xf32>
    %11 = tpu.matmul %4, %7, %cst_11 {dimension_numbers = #tpu.dot_dimension_numbers<[2], [2], [1], [1], [0, 0, 0, 1, 1, 1], [0], [0]>} : vector<4x8x8xbf16>, vector<4x8x8xbf16>, vector<4x8x8xf32> -> vector<4x8x8xf32>
    "tpu.trace_stop"() : () -> ()
    %12 = tpu.iota {dimensions = array<i32: 0>} : vector<8x8xi32>
    %c8_i32 = arith.constant 8 : i32
    %13 = arith.muli %arg1, %c8_i32 : i32
    %14 = vector.broadcast %13 : i32 to vector<8x8xi32>
    %15 = arith.addi %12, %14 : vector<8x8xi32>
    %16 = tpu.iota {dimensions = array<i32: 1>} : vector<8x8xi32>
    %17 = arith.cmpi sge, %15, %16 : vector<8x8xi32>
    %18 = vector.shape_cast %17 : vector<8x8xi1> to vector<1x8x8xi1>
    %cst_12 = arith.constant -1.000000e+30 : f32
    %19 = vector.shape_cast %18 : vector<1x8x8xi1> to vector<1x8x8xi1>
    %20 = vector.broadcast %19 : vector<1x8x8xi1> to vector<4x8x8xi1>
    %21 = vector.broadcast %cst_12 : f32 to vector<4x8x8xf32>
    %22 = arith.select %20, %11, %21 : vector<4x8x8xi1>, vector<4x8x8xf32>
    %cst_13 = arith.constant dense<0xFF800000> : vector<4x8xf32>
    %23 = vector.multi_reduction <maximumf>, %22, %cst_13 [2] : vector<4x8x8xf32> to vector<4x8xf32>
    %24 = vector.shape_cast %23 : vector<4x8xf32> to vector<4x8x1xf32>
    %25 = vector.broadcast %24 : vector<4x8x1xf32> to vector<4x8x8xf32>
    %26 = arith.subf %22, %25 : vector<4x8x8xf32>
    %27 = math.exp %26 : vector<4x8x8xf32>
    %cst_14 = arith.constant dense<0.000000e+00> : vector<4x8xf32>
    %28 = vector.multi_reduction <add>, %27, %cst_14 [2] : vector<4x8x8xf32> to vector<4x8xf32>
    %29 = vector.shape_cast %28 : vector<4x8xf32> to vector<4x8x1xf32>
    %30 = tpu.reciprocal %29 {approx = true} : vector<4x8x1xf32> -> vector<4x8x1xf32>
    %31 = vector.broadcast %30 : vector<4x8x1xf32> to vector<4x8x8xf32>
    %32 = arith.mulf %27, %31 : vector<4x8x8xf32>
    %33 = arith.truncf %32 : vector<4x8x8xf32> to vector<4x8x8xbf16>
    "tpu.trace_start"() <{level = 10 : i32, message = "hqk,hkd->hqd"}> : () -> ()
    %cst_15 = arith.constant dense<0.000000e+00> : vector<4x8x8xf32>
    %34 = tpu.matmul %33, %10, %cst_15 {dimension_numbers = #tpu.dot_dimension_numbers<[2], [1], [1], [2], [0, 0, 0, 1, 1, 2], [0], [0]>} : vector<4x8x8xbf16>, vector<4x8x8xbf16>, vector<4x8x8xf32> -> vector<4x8x8xf32>
    "tpu.trace_stop"() : () -> ()
    %c0_16 = arith.constant 0 : index
    %c0_17 = arith.constant 0 : index
    %c0_18 = arith.constant 0 : index
    %c0_19 = arith.constant 0 : index
    %35 = vector.load %arg5[%c0_16, %c0_17, %c0_18, %c0_19] : memref<1x4x8x8xf32, #tpu.memory_space<vmem>>, vector<1x4x8x8xf32>
    %36 = vector.shape_cast %35 : vector<1x4x8x8xf32> to vector<4x8x8xf32>
    %37 = vector.shape_cast %34 : vector<4x8x8xf32> to vector<1x4x8x8xf32>
    tpu.vector_store %arg5[%c0_16, %c0_17, %c0_18, %c0_19], %37 {strides = array<i32>} : memref<1x4x8x8xf32, #tpu.memory_space<vmem>>, vector<1x4x8x8xf32>,
    return
  }
  func.func @transform_0(%arg0: i32, %arg1: i32) -> (i32, i32, i32, i32) {
    %c0_i32 = arith.constant 0 : i32
    %c0_i32_0 = arith.constant 0 : i32
    %c0_i32_1 = arith.constant 0 : i32
    return %arg0, %c0_i32, %arg1, %c0_i32_0 : i32, i32, i32, i32
  }
  func.func @transform_1(%arg0: i32, %arg1: i32) -> (i32, i32, i32, i32) {
    %c0_i32 = arith.constant 0 : i32
    %c0_i32_0 = arith.constant 0 : i32
    %c0_i32_1 = arith.constant 0 : i32
    %c0_i32_2 = arith.constant 0 : i32
    return %arg0, %c0_i32, %c0_i32_0, %c0_i32_1 : i32, i32, i32, i32
  }
  func.func @transform_2(%arg0: i32, %arg1: i32) -> (i32, i32, i32, i32) {
    %c0_i32 = arith.constant 0 : i32
    %c0_i32_0 = arith.constant 0 : i32
    %c0_i32_1 = arith.constant 0 : i32
    %c0_i32_2 = arith.constant 0 : i32
    return %arg0, %c0_i32, %c0_i32_0, %c0_i32_1 : i32, i32, i32, i32
  }
  func.func @transform_3(%arg0: i32, %arg1: i32) -> (i32, i32, i32, i32) {
    %c0_i32 = arith.constant 0 : i32
    %c0_i32_0 = arith.constant 0 : i32
    %c0_i32_1 = arith.constant 0 : i32
    return %arg0, %c0_i32, %arg1, %c0_i32_0 : i32, i32, i32, i32
  }
}

module attributes {stable_mosaic.version = 11 : i64} {
  func.func @_matmul_add_ln_kernel(%arg0: i32, %arg1: i32, %arg2: memref<16x32xf32, #tpu.memory_space<vmem>>, %arg3: memref<32x32xf32, #tpu.memory_space<vmem>>, %arg4: memref<1x32xf32, #tpu.memory_space<vmem>>, %arg5: memref<16x32xf32, #tpu.memory_space<vmem>>, %arg6: memref<1x32xf32, #tpu.memory_space<vmem>>, %arg7: memref<1x32xf32, #tpu.memory_space<vmem>>, %arg8: memref<16x32xf32, #tpu.memory_space<vmem>>, %arg9: memref<16x32xf32, #tpu.memory_space<vmem>>) attributes {dimension_semantics = [#tpu.dimension_semantics<parallel>, #tpu.dimension_semantics<arbitrary>], iteration_bounds = array<i64: 1, 1>, scalar_prefetch = 0 : i64, scratch_operands = 1 : i64, tpu.core_type = #tpu.core_type<tc>, window_params = [{transform_indices = @transform_0, window_bounds = array<i64: 16, 32>}, {transform_indices = @transform_1, window_bounds = array<i64: 32, 32>}, {pipeline_mode = #tpu.pipeline_mode<synchronous>, transform_indices = @transform_2, window_bounds = array<i64: 1, 32>}, {transform_indices = @transform_3, window_bounds = array<i64: 16, 32>}, {pipeline_mode = #tpu.pipeline_mode<synchronous>, transform_indices = @transform_4, window_bounds = array<i64: 1, 32>}, {pipeline_mode = #tpu.pipeline_mode<synchronous>, transform_indices = @transform_5, window_bounds = array<i64: 1, 32>}, {transform_indices = @transform_6, window_bounds = array<i64: 16, 32>}]} {
    %c0_i32 = arith.constant 0 : i32
    %0 = arith.cmpi eq, %arg1, %c0_i32 : i32
    %1 = arith.extui %0 : i1 to i32
    %c0_i32_0 = arith.constant 0 : i32
    %2 = arith.cmpi ne, %1, %c0_i32_0 : i32
    scf.if %2 {
      %cst_10 = arith.constant 0.000000e+00 : f32
      %14 = vector.broadcast %cst_10 : f32 to vector<16x32xf32>
      %c0_11 = arith.constant 0 : index
      %c0_12 = arith.constant 0 : index
      %15 = vector.load %arg9[%c0_11, %c0_12] : memref<16x32xf32, #tpu.memory_space<vmem>>, vector<16x32xf32>
      tpu.vector_store %arg9[%c0_11, %c0_12], %14 {strides = array<i32>} : memref<16x32xf32, #tpu.memory_space<vmem>>, vector<16x32xf32>,
    } else {
    }
    %c0 = arith.constant 0 : index
    %c0_1 = arith.constant 0 : index
    %3 = vector.load %arg9[%c0, %c0_1] : memref<16x32xf32, #tpu.memory_space<vmem>>, vector<16x32xf32>
    %c0_2 = arith.constant 0 : index
    %c0_3 = arith.constant 0 : index
    %4 = vector.load %arg2[%c0_2, %c0_3] : memref<16x32xf32, #tpu.memory_space<vmem>>, vector<16x32xf32>
    %5 = arith.truncf %4 : vector<16x32xf32> to vector<16x32xbf16>
    %c0_4 = arith.constant 0 : index
    %c0_5 = arith.constant 0 : index
    %6 = vector.load %arg3[%c0_4, %c0_5] : memref<32x32xf32, #tpu.memory_space<vmem>>, vector<32x32xf32>
    %7 = arith.truncf %6 : vector<32x32xf32> to vector<32x32xbf16>
    %cst = arith.constant dense<0.000000e+00> : vector<16x32xf32>
    %8 = tpu.matmul %5, %7, %cst {dimension_numbers = #tpu.dot_dimension_numbers<[1], [0], [0], [1], [0, 0, 1, 1], [], []>} : vector<16x32xbf16>, vector<32x32xbf16>, vector<16x32xf32> -> vector<16x32xf32>
    %9 = arith.addf %3, %8 : vector<16x32xf32>
    %c0_6 = arith.constant 0 : index
    %c0_7 = arith.constant 0 : index
    %10 = vector.load %arg9[%c0_6, %c0_7] : memref<16x32xf32, #tpu.memory_space<vmem>>, vector<16x32xf32>
    tpu.vector_store %arg9[%c0_6, %c0_7], %9 {strides = array<i32>} : memref<16x32xf32, #tpu.memory_space<vmem>>, vector<16x32xf32>,
    %c0_i32_8 = arith.constant 0 : i32
    %11 = arith.cmpi eq, %arg1, %c0_i32_8 : i32
    %12 = arith.extui %11 : i1 to i32
    %c0_i32_9 = arith.constant 0 : i32
    %13 = arith.cmpi ne, %12, %c0_i32_9 : i32
    scf.if %13 {
      %c0_10 = arith.constant 0 : index
      %c0_11 = arith.constant 0 : index
      %14 = vector.load %arg9[%c0_10, %c0_11] : memref<16x32xf32, #tpu.memory_space<vmem>>, vector<16x32xf32>
      %c0_12 = arith.constant 0 : index
      %c0_13 = arith.constant 0 : index
      %15 = vector.load %arg4[%c0_12, %c0_13] : memref<1x32xf32, #tpu.memory_space<vmem>>, vector<1x32xf32>
      %16 = vector.broadcast %15 : vector<1x32xf32> to vector<16x32xf32>
      %17 = arith.addf %14, %16 : vector<16x32xf32>
      %c0_14 = arith.constant 0 : index
      %c0_15 = arith.constant 0 : index
      %18 = vector.load %arg5[%c0_14, %c0_15] : memref<16x32xf32, #tpu.memory_space<vmem>>, vector<16x32xf32>
      %19 = arith.addf %17, %18 : vector<16x32xf32>
      %cst_16 = arith.constant dense<0.000000e+00> : vector<16xf32>
      %20 = vector.multi_reduction <add>, %19, %cst_16 [1] : vector<16x32xf32> to vector<16xf32>
      %21 = vector.shape_cast %20 : vector<16xf32> to vector<16x1xf32>
      %cst_17 = arith.constant 3.200000e+01 : f32
      %22 = vector.broadcast %cst_17 : f32 to vector<16x1xf32>
      %23 = arith.divf %21, %22 : vector<16x1xf32>
      %24 = vector.broadcast %23 : vector<16x1xf32> to vector<16x32xf32>
      %25 = arith.subf %19, %24 : vector<16x32xf32>
      %26 = arith.mulf %25, %25 : vector<16x32xf32>
      %cst_18 = arith.constant dense<0.000000e+00> : vector<16xf32>
      %27 = vector.multi_reduction <add>, %26, %cst_18 [1] : vector<16x32xf32> to vector<16xf32>
      %28 = vector.shape_cast %27 : vector<16xf32> to vector<16x1xf32>
      %cst_19 = arith.constant 3.200000e+01 : f32
      %29 = vector.broadcast %cst_19 : f32 to vector<16x1xf32>
      %30 = arith.divf %28, %29 : vector<16x1xf32>
      %31 = vector.broadcast %23 : vector<16x1xf32> to vector<16x32xf32>
      %32 = arith.subf %19, %31 : vector<16x32xf32>
      %cst_20 = arith.constant 9.99999974E-6 : f32
      %33 = vector.broadcast %cst_20 : f32 to vector<16x1xf32>
      %34 = arith.addf %30, %33 : vector<16x1xf32>
      %35 = math.rsqrt %34 : vector<16x1xf32>
      %36 = vector.broadcast %35 : vector<16x1xf32> to vector<16x32xf32>
      %37 = arith.mulf %32, %36 : vector<16x32xf32>
      %c0_21 = arith.constant 0 : index
      %c0_22 = arith.constant 0 : index
      %38 = vector.load %arg6[%c0_21, %c0_22] : memref<1x32xf32, #tpu.memory_space<vmem>>, vector<1x32xf32>
      %39 = vector.broadcast %38 : vector<1x32xf32> to vector<16x32xf32>
      %40 = arith.mulf %37, %39 : vector<16x32xf32>
      %c0_23 = arith.constant 0 : index
      %c0_24 = arith.constant 0 : index
      %41 = vector.load %arg7[%c0_23, %c0_24] : memref<1x32xf32, #tpu.memory_space<vmem>>, vector<1x32xf32>
      %42 = vector.broadcast %41 : vector<1x32xf32> to vector<16x32xf32>
      %43 = arith.addf %40, %42 : vector<16x32xf32>
      %c0_25 = arith.constant 0 : index
      %c0_26 = arith.constant 0 : index
      %44 = vector.load %arg8[%c0_25, %c0_26] : memref<16x32xf32, #tpu.memory_space<vmem>>, vector<16x32xf32>
      tpu.vector_store %arg8[%c0_25, %c0_26], %43 {strides = array<i32>} : memref<16x32xf32, #tpu.memory_space<vmem>>, vector<16x32xf32>,
    } else {
    }
    return
  }
  func.func @transform_0(%arg0: i32, %arg1: i32) -> (i32, i32) {
    %c0_i32 = arith.constant 0 : i32
    return %arg0, %arg1 : i32, i32
  }
  func.func @transform_1(%arg0: i32, %arg1: i32) -> (i32, i32) {
    %c0_i32 = arith.constant 0 : i32
    %c0_i32_0 = arith.constant 0 : i32
    return %arg1, %c0_i32 : i32, i32
  }
  func.func @transform_2(%arg0: i32, %arg1: i32) -> (i32, i32) {
    %c0_i32 = arith.constant 0 : i32
    %c0_i32_0 = arith.constant 0 : i32
    %c0_i32_1 = arith.constant 0 : i32
    return %c0_i32, %c0_i32_0 : i32, i32
  }
  func.func @transform_3(%arg0: i32, %arg1: i32) -> (i32, i32) {
    %c0_i32 = arith.constant 0 : i32
    %c0_i32_0 = arith.constant 0 : i32
    return %arg0, %c0_i32 : i32, i32
  }
  func.func @transform_4(%arg0: i32, %arg1: i32) -> (i32, i32) {
    %c0_i32 = arith.constant 0 : i32
    %c0_i32_0 = arith.constant 0 : i32
    %c0_i32_1 = arith.constant 0 : i32
    return %c0_i32, %c0_i32_0 : i32, i32
  }
  func.func @transform_5(%arg0: i32, %arg1: i32) -> (i32, i32) {
    %c0_i32 = arith.constant 0 : i32
    %c0_i32_0 = arith.constant 0 : i32
    %c0_i32_1 = arith.constant 0 : i32
    return %c0_i32, %c0_i32_0 : i32, i32
  }
  func.func @transform_6(%arg0: i32, %arg1: i32) -> (i32, i32) {
    %c0_i32 = arith.constant 0 : i32
    %c0_i32_0 = arith.constant 0 : i32
    return %arg0, %c0_i32 : i32, i32
  }
}

module attributes {stable_mosaic.version = 11 : i64} {
  func.func @_matmul_kernel(%arg0: i32, %arg1: i32, %arg2: i32, %arg3: memref<16x32xf32, #tpu.memory_space<vmem>>, %arg4: memref<32x32xf32, #tpu.memory_space<vmem>>, %arg5: memref<1x32xf32, #tpu.memory_space<vmem>>, %arg6: memref<16x32xf32, #tpu.memory_space<vmem>>, %arg7: memref<16x32xf32, #tpu.memory_space<vmem>>) attributes {dimension_semantics = [#tpu.dimension_semantics<parallel>, #tpu.dimension_semantics<parallel>, #tpu.dimension_semantics<arbitrary>], iteration_bounds = array<i64: 1, 1, 1>, scalar_prefetch = 0 : i64, scratch_operands = 1 : i64, tpu.core_type = #tpu.core_type<tc>, window_params = [{transform_indices = @transform_0, window_bounds = array<i64: 16, 32>}, {transform_indices = @transform_1, window_bounds = array<i64: 32, 32>}, {transform_indices = @transform_2, window_bounds = array<i64: 1, 32>}, {transform_indices = @transform_3, window_bounds = array<i64: 16, 32>}]} {
    %c0_i32 = arith.constant 0 : i32
    %0 = arith.cmpi eq, %arg2, %c0_i32 : i32
    %1 = arith.extui %0 : i1 to i32
    %c0_i32_0 = arith.constant 0 : i32
    %2 = arith.cmpi ne, %1, %c0_i32_0 : i32
    scf.if %2 {
      %cst_10 = arith.constant 0.000000e+00 : f32
      %14 = vector.broadcast %cst_10 : f32 to vector<16x32xf32>
      %c0_11 = arith.constant 0 : index
      %c0_12 = arith.constant 0 : index
      %15 = vector.load %arg7[%c0_11, %c0_12] : memref<16x32xf32, #tpu.memory_space<vmem>>, vector<16x32xf32>
      tpu.vector_store %arg7[%c0_11, %c0_12], %14 {strides = array<i32>} : memref<16x32xf32, #tpu.memory_space<vmem>>, vector<16x32xf32>,
    } else {
    }
    %c0 = arith.constant 0 : index
    %c0_1 = arith.constant 0 : index
    %3 = vector.load %arg7[%c0, %c0_1] : memref<16x32xf32, #tpu.memory_space<vmem>>, vector<16x32xf32>
    %c0_2 = arith.constant 0 : index
    %c0_3 = arith.constant 0 : index
    %4 = vector.load %arg3[%c0_2, %c0_3] : memref<16x32xf32, #tpu.memory_space<vmem>>, vector<16x32xf32>
    %5 = arith.truncf %4 : vector<16x32xf32> to vector<16x32xbf16>
    %c0_4 = arith.constant 0 : index
    %c0_5 = arith.constant 0 : index
    %6 = vector.load %arg4[%c0_4, %c0_5] : memref<32x32xf32, #tpu.memory_space<vmem>>, vector<32x32xf32>
    %7 = arith.truncf %6 : vector<32x32xf32> to vector<32x32xbf16>
    %cst = arith.constant dense<0.000000e+00> : vector<16x32xf32>
    %8 = tpu.matmul %5, %7, %cst {dimension_numbers = #tpu.dot_dimension_numbers<[1], [0], [0], [1], [0, 0, 1, 1], [], []>} : vector<16x32xbf16>, vector<32x32xbf16>, vector<16x32xf32> -> vector<16x32xf32>
    %9 = arith.addf %3, %8 : vector<16x32xf32>
    %c0_6 = arith.constant 0 : index
    %c0_7 = arith.constant 0 : index
    %10 = vector.load %arg7[%c0_6, %c0_7] : memref<16x32xf32, #tpu.memory_space<vmem>>, vector<16x32xf32>
    tpu.vector_store %arg7[%c0_6, %c0_7], %9 {strides = array<i32>} : memref<16x32xf32, #tpu.memory_space<vmem>>, vector<16x32xf32>,
    %c0_i32_8 = arith.constant 0 : i32
    %11 = arith.cmpi eq, %arg2, %c0_i32_8 : i32
    %12 = arith.extui %11 : i1 to i32
    %c0_i32_9 = arith.constant 0 : i32
    %13 = arith.cmpi ne, %12, %c0_i32_9 : i32
    scf.if %13 {
      %c0_10 = arith.constant 0 : index
      %c0_11 = arith.constant 0 : index
      %14 = vector.load %arg7[%c0_10, %c0_11] : memref<16x32xf32, #tpu.memory_space<vmem>>, vector<16x32xf32>
      %c0_12 = arith.constant 0 : index
      %c0_13 = arith.constant 0 : index
      %15 = vector.load %arg5[%c0_12, %c0_13] : memref<1x32xf32, #tpu.memory_space<vmem>>, vector<1x32xf32>
      %16 = vector.broadcast %15 : vector<1x32xf32> to vector<16x32xf32>
      %17 = arith.addf %14, %16 : vector<16x32xf32>
      %c0_14 = arith.constant 0 : index
      %c0_15 = arith.constant 0 : index
      %18 = vector.load %arg6[%c0_14, %c0_15] : memref<16x32xf32, #tpu.memory_space<vmem>>, vector<16x32xf32>
      tpu.vector_store %arg6[%c0_14, %c0_15], %17 {strides = array<i32>} : memref<16x32xf32, #tpu.memory_space<vmem>>, vector<16x32xf32>,
    } else {
    }
    return
  }
  func.func @transform_0(%arg0: i32, %arg1: i32, %arg2: i32) -> (i32, i32) {
    %c0_i32 = arith.constant 0 : i32
    return %arg0, %arg2 : i32, i32
  }
  func.func @transform_1(%arg0: i32, %arg1: i32, %arg2: i32) -> (i32, i32) {
    %c0_i32 = arith.constant 0 : i32
    return %arg2, %arg1 : i32, i32
  }
  func.func @transform_2(%arg0: i32, %arg1: i32, %arg2: i32) -> (i32, i32) {
    %c0_i32 = arith.constant 0 : i32
    %c0_i32_0 = arith.constant 0 : i32
    return %c0_i32, %arg1 : i32, i32
  }
  func.func @transform_3(%arg0: i32, %arg1: i32, %arg2: i32) -> (i32, i32) {
    %c0_i32 = arith.constant 0 : i32
    return %arg0, %arg1 : i32, i32
  }
}

module attributes {stable_mosaic.version = 11 : i64} {
  func.func @_attention_kernel(%arg0: i32, %arg1: i32, %arg2: memref<1x4x8x8xf32, #tpu.memory_space<vmem>>, %arg3: memref<1x4x8x8xf32, #tpu.memory_space<vmem>>, %arg4: memref<1x4x8x8xf32, #tpu.memory_space<vmem>>, %arg5: memref<1x4x8x8xf32, #tpu.memory_space<vmem>>) attributes {dimension_semantics = [#tpu.dimension_semantics<parallel>, #tpu.dimension_semantics<parallel>], iteration_bounds = array<i64: 2, 1>, scalar_prefetch = 0 : i64, scratch_operands = 0 : i64, tpu.core_type = #tpu.core_type<tc>, window_params = [{transform_indices = @transform_0, window_bounds = array<i64: 1, 4, 8, 8>}, {transform_indices = @transform_1, window_bounds = array<i64: 1, 4, 8, 8>}, {transform_indices = @transform_2, window_bounds = array<i64: 1, 4, 8, 8>}, {transform_indices = @transform_3, window_bounds = array<i64: 1, 4, 8, 8>}]} {
    %c0 = arith.constant 0 : index
    %c0_0 = arith.constant 0 : index
    %c0_1 = arith.constant 0 : index
    %c0_2 = arith.constant 0 : index
    %0 = vector.load %arg2[%c0, %c0_0, %c0_1, %c0_2] : memref<1x4x8x8xf32, #tpu.memory_space<vmem>>, vector<1x4x8x8xf32>
    %1 = vector.shape_cast %0 : vector<1x4x8x8xf32> to vector<4x8x8xf32>
    %cst = arith.constant 0.353553385 : f32
    %2 = vector.broadcast %cst : f32 to vector<4x8x8xf32>
    %3 = arith.mulf %1, %2 : vector<4x8x8xf32>
    %4 = arith.truncf %3 : vector<4x8x8xf32> to vector<4x8x8xbf16>
    %c0_3 = arith.constant 0 : index
    %c0_4 = arith.constant 0 : index
    %c0_5 = arith.constant 0 : index
    %c0_6 = arith.constant 0 : index
    %5 = vector.load %arg3[%c0_3, %c0_4, %c0_5, %c0_6] : memref<1x4x8x8xf32, #tpu.memory_space<vmem>>, vector<1x4x8x8xf32>
    %6 = vector.shape_cast %5 : vector<1x4x8x8xf32> to vector<4x8x8xf32>
    %7 = arith.truncf %6 : vector<4x8x8xf32> to vector<4x8x8xbf16>
    %c0_7 = arith.constant 0 : index
    %c0_8 = arith.constant 0 : index
    %c0_9 = arith.constant 0 : index
    %c0_10 = arith.constant 0 : index
    %8 = vector.load %arg4[%c0_7, %c0_8, %c0_9, %c0_10] : memref<1x4x8x8xf32, #tpu.memory_space<vmem>>, vector<1x4x8x8xf32>
    %9 = vector.shape_cast %8 : vector<1x4x8x8xf32> to vector<4x8x8xf32>
    %10 = arith.truncf %9 : vector<4x8x8xf32> to vector<4x8x8xbf16>
    "tpu.trace_start"() <{level = 10 : i32, message = "hqd,hkd->hqk"}> : () -> ()
    %cst_11 = arith.constant dense<0.000000e+00> : vector<4x8x8xf32>
    %11 = tpu.matmul %4, %7, %cst_11 {dimension_numbers = #tpu.dot_dimension_numbers<[2], [2], [1], [1], [0, 0, 0, 1, 1, 1], [0], [0]>} : vector<4x8x8xbf16>, vector<4x8x8xbf16>, vector<4x8x8xf32> -> vector<4x8x8xf32>
    "tpu.trace_stop"() : () -> ()
    %cst_12 = arith.constant dense<0xFF800000> : vector<4x8xf32>
    %12 = vector.multi_reduction <maximumf>, %11, %cst_12 [2] : vector<4x8x8xf32> to vector<4x8xf32>
    %13 = vector.shape_cast %12 : vector<4x8xf32> to vector<4x8x1xf32>
    %14 = vector.broadcast %13 : vector<4x8x1xf32> to vector<4x8x8xf32>
    %15 = arith.subf %11, %14 : vector<4x8x8xf32>
    %16 = math.exp %15 : vector<4x8x8xf32>
    %cst_13 = arith.constant dense<0.000000e+00> : vector<4x8xf32>
    %17 = vector.multi_reduction <add>, %16, %cst_13 [2] : vector<4x8x8xf32> to vector<4x8xf32>
    %18 = vector.shape_cast %17 : vector<4x8xf32> to vector<4x8x1xf32>
    %19 = tpu.reciprocal %18 {approx = true} : vector<4x8x1xf32> -> vector<4x8x1xf32>
    %20 = vector.broadcast %19 : vector<4x8x1xf32> to vector<4x8x8xf32>
    %21 = arith.mulf %16, %20 : vector<4x8x8xf32>
    %22 = arith.truncf %21 : vector<4x8x8xf32> to vector<4x8x8xbf16>
    "tpu.trace_start"() <{level = 10 : i32, message = "hqk,hkd->hqd"}> : () -> ()
    %cst_14 = arith.constant dense<0.000000e+00> : vector<4x8x8xf32>
    %23 = tpu.matmul %22, %10, %cst_14 {dimension_numbers = #tpu.dot_dimension_numbers<[2], [1], [1], [2], [0, 0, 0, 1, 1, 2], [0], [0]>} : vector<4x8x8xbf16>, vector<4x8x8xbf16>, vector<4x8x8xf32> -> vector<4x8x8xf32>
    "tpu.trace_stop"() : () -> ()
    %c0_15 = arith.constant 0 : index
    %c0_16 = arith.constant 0 : index
    %c0_17 = arith.constant 0 : index
    %c0_18 = arith.constant 0 : index
    %24 = vector.load %arg5[%c0_15, %c0_16, %c0_17, %c0_18] : memref<1x4x8x8xf32, #tpu.memory_space<vmem>>, vector<1x4x8x8xf32>
    %25 = vector.shape_cast %24 : vector<1x4x8x8xf32> to vector<4x8x8xf32>
    %26 = vector.shape_cast %23 : vector<4x8x8xf32> to vector<1x4x8x8xf32>
    tpu.vector_store %arg5[%c0_15, %c0_16, %c0_17, %c0_18], %26 {strides = array<i32>} : memref<1x4x8x8xf32, #tpu.memory_space<vmem>>, vector<1x4x8x8xf32>,
    return
  }
  func.func @transform_0(%arg0: i32, %arg1: i32) -> (i32, i32, i32, i32) {
    %c0_i32 = arith.constant 0 : i32
    %c0_i32_0 = arith.constant 0 : i32
    %c0_i32_1 = arith.constant 0 : i32
    return %arg0, %c0_i32, %arg1, %c0_i32_0 : i32, i32, i32, i32
  }
  func.func @transform_1(%arg0: i32, %arg1: i32) -> (i32, i32, i32, i32) {
    %c0_i32 = arith.constant 0 : i32
    %c0_i32_0 = arith.constant 0 : i32
    %c0_i32_1 = arith.constant 0 : i32
    %c0_i32_2 = arith.constant 0 : i32
    return %arg0, %c0_i32, %c0_i32_0, %c0_i32_1 : i32, i32, i32, i32
  }
  func.func @transform_2(%arg0: i32, %arg1: i32) -> (i32, i32, i32, i32) {
    %c0_i32 = arith.constant 0 : i32
    %c0_i32_0 = arith.constant 0 : i32
    %c0_i32_1 = arith.constant 0 : i32
    %c0_i32_2 = arith.constant 0 : i32
    return %arg0, %c0_i32, %c0_i32_0, %c0_i32_1 : i32, i32, i32, i32
  }
  func.func @transform_3(%arg0: i32, %arg1: i32) -> (i32, i32, i32, i32) {
    %c0_i32 = arith.constant 0 : i32
    %c0_i32_0 = arith.constant 0 : i32
    %c0_i32_1 = arith.constant 0 : i32
    return %arg0, %c0_i32, %arg1, %c0_i32_0 : i32, i32, i32, i32
  }
}

module attributes {stable_mosaic.version = 11 : i64} {
  func.func @_matmul_kernel(%arg0: i32, %arg1: i32, %arg2: i32, %arg3: memref<16x32xf32, #tpu.memory_space<vmem>>, %arg4: memref<32x64xf32, #tpu.memory_space<vmem>>, %arg5: memref<1x64xf32, #tpu.memory_space<vmem>>, %arg6: memref<16x64xf32, #tpu.memory_space<vmem>>, %arg7: memref<16x64xf32, #tpu.memory_space<vmem>>) attributes {dimension_semantics = [#tpu.dimension_semantics<parallel>, #tpu.dimension_semantics<parallel>, #tpu.dimension_semantics<arbitrary>], iteration_bounds = array<i64: 1, 1, 1>, scalar_prefetch = 0 : i64, scratch_operands = 1 : i64, tpu.core_type = #tpu.core_type<tc>, window_params = [{transform_indices = @transform_0, window_bounds = array<i64: 16, 32>}, {transform_indices = @transform_1, window_bounds = array<i64: 32, 64>}, {transform_indices = @transform_2, window_bounds = array<i64: 1, 64>}, {transform_indices = @transform_3, window_bounds = array<i64: 16, 64>}]} {
    %c0_i32 = arith.constant 0 : i32
    %0 = arith.cmpi eq, %arg2, %c0_i32 : i32
    %1 = arith.extui %0 : i1 to i32
    %c0_i32_0 = arith.constant 0 : i32
    %2 = arith.cmpi ne, %1, %c0_i32_0 : i32
    scf.if %2 {
      %cst_10 = arith.constant 0.000000e+00 : f32
      %14 = vector.broadcast %cst_10 : f32 to vector<16x64xf32>
      %c0_11 = arith.constant 0 : index
      %c0_12 = arith.constant 0 : index
      %15 = vector.load %arg7[%c0_11, %c0_12] : memref<16x64xf32, #tpu.memory_space<vmem>>, vector<16x64xf32>
      tpu.vector_store %arg7[%c0_11, %c0_12], %14 {strides = array<i32>} : memref<16x64xf32, #tpu.memory_space<vmem>>, vector<16x64xf32>,
    } else {
    }
    %c0 = arith.constant 0 : index
    %c0_1 = arith.constant 0 : index
    %3 = vector.load %arg7[%c0, %c0_1] : memref<16x64xf32, #tpu.memory_space<vmem>>, vector<16x64xf32>
    %c0_2 = arith.constant 0 : index
    %c0_3 = arith.constant 0 : index
    %4 = vector.load %arg3[%c0_2, %c0_3] : memref<16x32xf32, #tpu.memory_space<vmem>>, vector<16x32xf32>
    %5 = arith.truncf %4 : vector<16x32xf32> to vector<16x32xbf16>
    %c0_4 = arith.constant 0 : index
    %c0_5 = arith.constant 0 : index
    %6 = vector.load %arg4[%c0_4, %c0_5] : memref<32x64xf32, #tpu.memory_space<vmem>>, vector<32x64xf32>
    %7 = arith.truncf %6 : vector<32x64xf32> to vector<32x64xbf16>
    %cst = arith.constant dense<0.000000e+00> : vector<16x64xf32>
    %8 = tpu.matmul %5, %7, %cst {dimension_numbers = #tpu.dot_dimension_numbers<[1], [0], [0], [1], [0, 0, 1, 1], [], []>} : vector<16x32xbf16>, vector<32x64xbf16>, vector<16x64xf32> -> vector<16x64xf32>
    %9 = arith.addf %3, %8 : vector<16x64xf32>
    %c0_6 = arith.constant 0 : index
    %c0_7 = arith.constant 0 : index
    %10 = vector.load %arg7[%c0_6, %c0_7] : memref<16x64xf32, #tpu.memory_space<vmem>>, vector<16x64xf32>
    tpu.vector_store %arg7[%c0_6, %c0_7], %9 {strides = array<i32>} : memref<16x64xf32, #tpu.memory_space<vmem>>, vector<16x64xf32>,
    %c0_i32_8 = arith.constant 0 : i32
    %11 = arith.cmpi eq, %arg2, %c0_i32_8 : i32
    %12 = arith.extui %11 : i1 to i32
    %c0_i32_9 = arith.constant 0 : i32
    %13 = arith.cmpi ne, %12, %c0_i32_9 : i32
    scf.if %13 {
      %c0_10 = arith.constant 0 : index
      %c0_11 = arith.constant 0 : index
      %14 = vector.load %arg7[%c0_10, %c0_11] : memref<16x64xf32, #tpu.memory_space<vmem>>, vector<16x64xf32>
      %c0_12 = arith.constant 0 : index
      %c0_13 = arith.constant 0 : index
      %15 = vector.load %arg5[%c0_12, %c0_13] : memref<1x64xf32, #tpu.memory_space<vmem>>, vector<1x64xf32>
      %16 = vector.broadcast %15 : vector<1x64xf32> to vector<16x64xf32>
      %17 = arith.addf %14, %16 : vector<16x64xf32>
      %cst_14 = arith.constant 0.000000e+00 : f32
      %18 = vector.broadcast %cst_14 : f32 to vector<16x64xf32>
      %19 = arith.maximumf %17, %18 : vector<16x64xf32>
      %c0_15 = arith.constant 0 : index
      %c0_16 = arith.constant 0 : index
      %20 = vector.load %arg6[%c0_15, %c0_16] : memref<16x64xf32, #tpu.memory_space<vmem>>, vector<16x64xf32>
      tpu.vector_store %arg6[%c0_15, %c0_16], %19 {strides = array<i32>} : memref<16x64xf32, #tpu.memory_space<vmem>>, vector<16x64xf32>,
    } else {
    }
    return
  }
  func.func @transform_0(%arg0: i32, %arg1: i32, %arg2: i32) -> (i32, i32) {
    %c0_i32 = arith.constant 0 : i32
    return %arg0, %arg2 : i32, i32
  }
  func.func @transform_1(%arg0: i32, %arg1: i32, %arg2: i32) -> (i32, i32) {
    %c0_i32 = arith.constant 0 : i32
    return %arg2, %arg1 : i32, i32
  }
  func.func @transform_2(%arg0: i32, %arg1: i32, %arg2: i32) -> (i32, i32) {
    %c0_i32 = arith.constant 0 : i32
    %c0_i32_0 = arith.constant 0 : i32
    return %c0_i32, %arg1 : i32, i32
  }
  func.func @transform_3(%arg0: i32, %arg1: i32, %arg2: i32) -> (i32, i32) {
    %c0_i32 = arith.constant 0 : i32
    return %arg0, %arg1 : i32, i32
  }
}

module attributes {stable_mosaic.version = 11 : i64} {
  func.func @_matmul_add_ln_kernel(%arg0: i32, %arg1: i32, %arg2: memref<16x64xf32, #tpu.memory_space<vmem>>, %arg3: memref<64x32xf32, #tpu.memory_space<vmem>>, %arg4: memref<1x32xf32, #tpu.memory_space<vmem>>, %arg5: memref<16x32xf32, #tpu.memory_space<vmem>>, %arg6: memref<1x32xf32, #tpu.memory_space<vmem>>, %arg7: memref<1x32xf32, #tpu.memory_space<vmem>>, %arg8: memref<16x32xf32, #tpu.memory_space<vmem>>, %arg9: memref<16x32xf32, #tpu.memory_space<vmem>>) attributes {dimension_semantics = [#tpu.dimension_semantics<parallel>, #tpu.dimension_semantics<arbitrary>], iteration_bounds = array<i64: 1, 1>, scalar_prefetch = 0 : i64, scratch_operands = 1 : i64, tpu.core_type = #tpu.core_type<tc>, window_params = [{transform_indices = @transform_0, window_bounds = array<i64: 16, 64>}, {transform_indices = @transform_1, window_bounds = array<i64: 64, 32>}, {pipeline_mode = #tpu.pipeline_mode<synchronous>, transform_indices = @transform_2, window_bounds = array<i64: 1, 32>}, {transform_indices = @transform_3, window_bounds = array<i64: 16, 32>}, {pipeline_mode = #tpu.pipeline_mode<synchronous>, transform_indices = @transform_4, window_bounds = array<i64: 1, 32>}, {pipeline_mode = #tpu.pipeline_mode<synchronous>, transform_indices = @transform_5, window_bounds = array<i64: 1, 32>}, {transform_indices = @transform_6, window_bounds = array<i64: 16, 32>}]} {
    %c0_i32 = arith.constant 0 : i32
    %0 = arith.cmpi eq, %arg1, %c0_i32 : i32
    %1 = arith.extui %0 : i1 to i32
    %c0_i32_0 = arith.constant 0 : i32
    %2 = arith.cmpi ne, %1, %c0_i32_0 : i32
    scf.if %2 {
      %cst_10 = arith.constant 0.000000e+00 : f32
      %14 = vector.broadcast %cst_10 : f32 to vector<16x32xf32>
      %c0_11 = arith.constant 0 : index
      %c0_12 = arith.constant 0 : index
      %15 = vector.load %arg9[%c0_11, %c0_12] : memref<16x32xf32, #tpu.memory_space<vmem>>, vector<16x32xf32>
      tpu.vector_store %arg9[%c0_11, %c0_12], %14 {strides = array<i32>} : memref<16x32xf32, #tpu.memory_space<vmem>>, vector<16x32xf32>,
    } else {
    }
    %c0 = arith.constant 0 : index
    %c0_1 = arith.constant 0 : index
    %3 = vector.load %arg9[%c0, %c0_1] : memref<16x32xf32, #tpu.memory_space<vmem>>, vector<16x32xf32>
    %c0_2 = arith.constant 0 : index
    %c0_3 = arith.constant 0 : index
    %4 = vector.load %arg2[%c0_2, %c0_3] : memref<16x64xf32, #tpu.memory_space<vmem>>, vector<16x64xf32>
    %5 = arith.truncf %4 : vector<16x64xf32> to vector<16x64xbf16>
    %c0_4 = arith.constant 0 : index
    %c0_5 = arith.constant 0 : index
    %6 = vector.load %arg3[%c0_4, %c0_5] : memref<64x32xf32, #tpu.memory_space<vmem>>, vector<64x32xf32>
    %7 = arith.truncf %6 : vector<64x32xf32> to vector<64x32xbf16>
    %cst = arith.constant dense<0.000000e+00> : vector<16x32xf32>
    %8 = tpu.matmul %5, %7, %cst {dimension_numbers = #tpu.dot_dimension_numbers<[1], [0], [0], [1], [0, 0, 1, 1], [], []>} : vector<16x64xbf16>, vector<64x32xbf16>, vector<16x32xf32> -> vector<16x32xf32>
    %9 = arith.addf %3, %8 : vector<16x32xf32>
    %c0_6 = arith.constant 0 : index
    %c0_7 = arith.constant 0 : index
    %10 = vector.load %arg9[%c0_6, %c0_7] : memref<16x32xf32, #tpu.memory_space<vmem>>, vector<16x32xf32>
    tpu.vector_store %arg9[%c0_6, %c0_7], %9 {strides = array<i32>} : memref<16x32xf32, #tpu.memory_space<vmem>>, vector<16x32xf32>,
    %c0_i32_8 = arith.constant 0 : i32
    %11 = arith.cmpi eq, %arg1, %c0_i32_8 : i32
    %12 = arith.extui %11 : i1 to i32
    %c0_i32_9 = arith.constant 0 : i32
    %13 = arith.cmpi ne, %12, %c0_i32_9 : i32
    scf.if %13 {
      %c0_10 = arith.constant 0 : index
      %c0_11 = arith.constant 0 : index
      %14 = vector.load %arg9[%c0_10, %c0_11] : memref<16x32xf32, #tpu.memory_space<vmem>>, vector<16x32xf32>
      %c0_12 = arith.constant 0 : index
      %c0_13 = arith.constant 0 : index
      %15 = vector.load %arg4[%c0_12, %c0_13] : memref<1x32xf32, #tpu.memory_space<vmem>>, vector<1x32xf32>
      %16 = vector.broadcast %15 : vector<1x32xf32> to vector<16x32xf32>
      %17 = arith.addf %14, %16 : vector<16x32xf32>
      %c0_14 = arith.constant 0 : index
      %c0_15 = arith.constant 0 : index
      %18 = vector.load %arg5[%c0_14, %c0_15] : memref<16x32xf32, #tpu.memory_space<vmem>>, vector<16x32xf32>
      %19 = arith.addf %17, %18 : vector<16x32xf32>
      %cst_16 = arith.constant dense<0.000000e+00> : vector<16xf32>
      %20 = vector.multi_reduction <add>, %19, %cst_16 [1] : vector<16x32xf32> to vector<16xf32>
      %21 = vector.shape_cast %20 : vector<16xf32> to vector<16x1xf32>
      %cst_17 = arith.constant 3.200000e+01 : f32
      %22 = vector.broadcast %cst_17 : f32 to vector<16x1xf32>
      %23 = arith.divf %21, %22 : vector<16x1xf32>
      %24 = vector.broadcast %23 : vector<16x1xf32> to vector<16x32xf32>
      %25 = arith.subf %19, %24 : vector<16x32xf32>
      %26 = arith.mulf %25, %25 : vector<16x32xf32>
      %cst_18 = arith.constant dense<0.000000e+00> : vector<16xf32>
      %27 = vector.multi_reduction <add>, %26, %cst_18 [1] : vector<16x32xf32> to vector<16xf32>
      %28 = vector.shape_cast %27 : vector<16xf32> to vector<16x1xf32>
      %cst_19 = arith.constant 3.200000e+01 : f32
      %29 = vector.broadcast %cst_19 : f32 to vector<16x1xf32>
      %30 = arith.divf %28, %29 : vector<16x1xf32>
      %31 = vector.broadcast %23 : vector<16x1xf32> to vector<16x32xf32>
      %32 = arith.subf %19, %31 : vector<16x32xf32>
      %cst_20 = arith.constant 9.99999974E-6 : f32
      %33 = vector.broadcast %cst_20 : f32 to vector<16x1xf32>
      %34 = arith.addf %30, %33 : vector<16x1xf32>
      %35 = math.rsqrt %34 : vector<16x1xf32>
      %36 = vector.broadcast %35 : vector<16x1xf32> to vector<16x32xf32>
      %37 = arith.mulf %32, %36 : vector<16x32xf32>
      %c0_21 = arith.constant 0 : index
      %c0_22 = arith.constant 0 : index
      %38 = vector.load %arg6[%c0_21, %c0_22] : memref<1x32xf32, #tpu.memory_space<vmem>>, vector<1x32xf32>
      %39 = vector.broadcast %38 : vector<1x32xf32> to vector<16x32xf32>
      %40 = arith.mulf %37, %39 : vector<16x32xf32>
      %c0_23 = arith.constant 0 : index
      %c0_24 = arith.constant 0 : index
      %41 = vector.load %arg7[%c0_23, %c0_24] : memref<1x32xf32, #tpu.memory_space<vmem>>, vector<1x32xf32>
      %42 = vector.broadcast %41 : vector<1x32xf32> to vector<16x32xf32>
      %43 = arith.addf %40, %42 : vector<16x32xf32>
      %c0_25 = arith.constant 0 : index
      %c0_26 = arith.constant 0 : index
      %44 = vector.load %arg8[%c0_25, %c0_26] : memref<16x32xf32, #tpu.memory_space<vmem>>, vector<16x32xf32>
      tpu.vector_store %arg8[%c0_25, %c0_26], %43 {strides = array<i32>} : memref<16x32xf32, #tpu.memory_space<vmem>>, vector<16x32xf32>,
    } else {
    }
    return
  }
  func.func @transform_0(%arg0: i32, %arg1: i32) -> (i32, i32) {
    %c0_i32 = arith.constant 0 : i32
    return %arg0, %arg1 : i32, i32
  }
  func.func @transform_1(%arg0: i32, %arg1: i32) -> (i32, i32) {
    %c0_i32 = arith.constant 0 : i32
    %c0_i32_0 = arith.constant 0 : i32
    return %arg1, %c0_i32 : i32, i32
  }
  func.func @transform_2(%arg0: i32, %arg1: i32) -> (i32, i32) {
    %c0_i32 = arith.constant 0 : i32
    %c0_i32_0 = arith.constant 0 : i32
    %c0_i32_1 = arith.constant 0 : i32
    return %c0_i32, %c0_i32_0 : i32, i32
  }
  func.func @transform_3(%arg0: i32, %arg1: i32) -> (i32, i32) {
    %c0_i32 = arith.constant 0 : i32
    %c0_i32_0 = arith.constant 0 : i32
    return %arg0, %c0_i32 : i32, i32
  }
  func.func @transform_4(%arg0: i32, %arg1: i32) -> (i32, i32) {
    %c0_i32 = arith.constant 0 : i32
    %c0_i32_0 = arith.constant 0 : i32
    %c0_i32_1 = arith.constant 0 : i32
    return %c0_i32, %c0_i32_0 : i32, i32
  }
  func.func @transform_5(%arg0: i32, %arg1: i32) -> (i32, i32) {
    %c0_i32 = arith.constant 0 : i32
    %c0_i32_0 = arith.constant 0 : i32
    %c0_i32_1 = arith.constant 0 : i32
    return %c0_i32, %c0_i32_0 : i32, i32
  }
  func.func @transform_6(%arg0: i32, %arg1: i32) -> (i32, i32) {
    %c0_i32 = arith.constant 0 : i32
    %c0_i32_0 = arith.constant 0 : i32
    return %arg0, %c0_i32 : i32, i32
  }
}

module attributes {stable_mosaic.version = 11 : i64} {
  func.func @_matmul_kernel(%arg0: i32, %arg1: i32, %arg2: i32, %arg3: memref<16x32xf32, #tpu.memory_space<vmem>>, %arg4: memref<32x64xf32, #tpu.memory_space<vmem>>, %arg5: memref<1x64xf32, #tpu.memory_space<vmem>>, %arg6: memref<16x64xf32, #tpu.memory_space<vmem>>, %arg7: memref<16x64xf32, #tpu.memory_space<vmem>>) attributes {dimension_semantics = [#tpu.dimension_semantics<parallel>, #tpu.dimension_semantics<parallel>, #tpu.dimension_semantics<arbitrary>], iteration_bounds = array<i64: 1, 1, 1>, scalar_prefetch = 0 : i64, scratch_operands = 1 : i64, tpu.core_type = #tpu.core_type<tc>, window_params = [{transform_indices = @transform_0, window_bounds = array<i64: 16, 32>}, {transform_indices = @transform_1, window_bounds = array<i64: 32, 64>}, {transform_indices = @transform_2, window_bounds = array<i64: 1, 64>}, {transform_indices = @transform_3, window_bounds = array<i64: 16, 64>}]} {
    %c0_i32 = arith.constant 0 : i32
    %0 = arith.cmpi eq, %arg2, %c0_i32 : i32
    %1 = arith.extui %0 : i1 to i32
    %c0_i32_0 = arith.constant 0 : i32
    %2 = arith.cmpi ne, %1, %c0_i32_0 : i32
    scf.if %2 {
      %cst_10 = arith.constant 0.000000e+00 : f32
      %14 = vector.broadcast %cst_10 : f32 to vector<16x64xf32>
      %c0_11 = arith.constant 0 : index
      %c0_12 = arith.constant 0 : index
      %15 = vector.load %arg7[%c0_11, %c0_12] : memref<16x64xf32, #tpu.memory_space<vmem>>, vector<16x64xf32>
      tpu.vector_store %arg7[%c0_11, %c0_12], %14 {strides = array<i32>} : memref<16x64xf32, #tpu.memory_space<vmem>>, vector<16x64xf32>,
    } else {
    }
    %c0 = arith.constant 0 : index
    %c0_1 = arith.constant 0 : index
    %3 = vector.load %arg7[%c0, %c0_1] : memref<16x64xf32, #tpu.memory_space<vmem>>, vector<16x64xf32>
    %c0_2 = arith.constant 0 : index
    %c0_3 = arith.constant 0 : index
    %4 = vector.load %arg3[%c0_2, %c0_3] : memref<16x32xf32, #tpu.memory_space<vmem>>, vector<16x32xf32>
    %5 = arith.truncf %4 : vector<16x32xf32> to vector<16x32xbf16>
    %c0_4 = arith.constant 0 : index
    %c0_5 = arith.constant 0 : index
    %6 = vector.load %arg4[%c0_4, %c0_5] : memref<32x64xf32, #tpu.memory_space<vmem>>, vector<32x64xf32>
    %7 = arith.truncf %6 : vector<32x64xf32> to vector<32x64xbf16>
    %cst = arith.constant dense<0.000000e+00> : vector<16x64xf32>
    %8 = tpu.matmul %5, %7, %cst {dimension_numbers = #tpu.dot_dimension_numbers<[1], [0], [0], [1], [0, 0, 1, 1], [], []>} : vector<16x32xbf16>, vector<32x64xbf16>, vector<16x64xf32> -> vector<16x64xf32>
    %9 = arith.addf %3, %8 : vector<16x64xf32>
    %c0_6 = arith.constant 0 : index
    %c0_7 = arith.constant 0 : index
    %10 = vector.load %arg7[%c0_6, %c0_7] : memref<16x64xf32, #tpu.memory_space<vmem>>, vector<16x64xf32>
    tpu.vector_store %arg7[%c0_6, %c0_7], %9 {strides = array<i32>} : memref<16x64xf32, #tpu.memory_space<vmem>>, vector<16x64xf32>,
    %c0_i32_8 = arith.constant 0 : i32
    %11 = arith.cmpi eq, %arg2, %c0_i32_8 : i32
    %12 = arith.extui %11 : i1 to i32
    %c0_i32_9 = arith.constant 0 : i32
    %13 = arith.cmpi ne, %12, %c0_i32_9 : i32
    scf.if %13 {
      %c0_10 = arith.constant 0 : index
      %c0_11 = arith.constant 0 : index
      %14 = vector.load %arg7[%c0_10, %c0_11] : memref<16x64xf32, #tpu.memory_space<vmem>>, vector<16x64xf32>
      %c0_12 = arith.constant 0 : index
      %c0_13 = arith.constant 0 : index
      %15 = vector.load %arg5[%c0_12, %c0_13] : memref<1x64xf32, #tpu.memory_space<vmem>>, vector<1x64xf32>
      %16 = vector.broadcast %15 : vector<1x64xf32> to vector<16x64xf32>
      %17 = arith.addf %14, %16 : vector<16x64xf32>
      %c0_14 = arith.constant 0 : index
      %c0_15 = arith.constant 0 : index
      %18 = vector.load %arg6[%c0_14, %c0_15] : memref<16x64xf32, #tpu.memory_space<vmem>>, vector<16x64xf32>
      tpu.vector_store %arg6[%c0_14, %c0_15], %17 {strides = array<i32>} : memref<16x64xf32, #tpu.memory_space<vmem>>, vector<16x64xf32>,
    } else {
    }
    return
  }
  func.func @transform_0(%arg0: i32, %arg1: i32, %arg2: i32) -> (i32, i32) {
    %c0_i32 = arith.constant 0 : i32
    return %arg0, %arg2 : i32, i32
  }
  func.func @transform_1(%arg0: i32, %arg1: i32, %arg2: i32) -> (i32, i32) {
    %c0_i32 = arith.constant 0 : i32
    return %arg2, %arg1 : i32, i32
  }
  func.func @transform_2(%arg0: i32, %arg1: i32, %arg2: i32) -> (i32, i32) {
    %c0_i32 = arith.constant 0 : i32
    %c0_i32_0 = arith.constant 0 : i32
    return %c0_i32, %arg1 : i32, i32
  }
  func.func @transform_3(%arg0: i32, %arg1: i32, %arg2: i32) -> (i32, i32) {
    %c0_i32 = arith.constant 0 : i32
    return %arg0, %arg1 : i32, i32
  }
}

module attributes {stable_mosaic.version = 11 : i64} {
  func.func @_matmul_add_ln_kernel(%arg0: i32, %arg1: i32, %arg2: memref<16x64xf32, #tpu.memory_space<vmem>>, %arg3: memref<64x32xf32, #tpu.memory_space<vmem>>, %arg4: memref<1x32xf32, #tpu.memory_space<vmem>>, %arg5: memref<16x32xf32, #tpu.memory_space<vmem>>, %arg6: memref<1x32xf32, #tpu.memory_space<vmem>>, %arg7: memref<1x32xf32, #tpu.memory_space<vmem>>, %arg8: memref<16x32xf32, #tpu.memory_space<vmem>>, %arg9: memref<16x32xf32, #tpu.memory_space<vmem>>) attributes {dimension_semantics = [#tpu.dimension_semantics<parallel>, #tpu.dimension_semantics<arbitrary>], iteration_bounds = array<i64: 1, 1>, scalar_prefetch = 0 : i64, scratch_operands = 1 : i64, tpu.core_type = #tpu.core_type<tc>, window_params = [{transform_indices = @transform_0, window_bounds = array<i64: 16, 64>}, {transform_indices = @transform_1, window_bounds = array<i64: 64, 32>}, {pipeline_mode = #tpu.pipeline_mode<synchronous>, transform_indices = @transform_2, window_bounds = array<i64: 1, 32>}, {transform_indices = @transform_3, window_bounds = array<i64: 16, 32>}, {pipeline_mode = #tpu.pipeline_mode<synchronous>, transform_indices = @transform_4, window_bounds = array<i64: 1, 32>}, {pipeline_mode = #tpu.pipeline_mode<synchronous>, transform_indices = @transform_5, window_bounds = array<i64: 1, 32>}, {transform_indices = @transform_6, window_bounds = array<i64: 16, 32>}]} {
    %c0_i32 = arith.constant 0 : i32
    %0 = arith.cmpi eq, %arg1, %c0_i32 : i32
    %1 = arith.extui %0 : i1 to i32
    %c0_i32_0 = arith.constant 0 : i32
    %2 = arith.cmpi ne, %1, %c0_i32_0 : i32
    scf.if %2 {
      %cst_10 = arith.constant 0.000000e+00 : f32
      %14 = vector.broadcast %cst_10 : f32 to vector<16x32xf32>
      %c0_11 = arith.constant 0 : index
      %c0_12 = arith.constant 0 : index
      %15 = vector.load %arg9[%c0_11, %c0_12] : memref<16x32xf32, #tpu.memory_space<vmem>>, vector<16x32xf32>
      tpu.vector_store %arg9[%c0_11, %c0_12], %14 {strides = array<i32>} : memref<16x32xf32, #tpu.memory_space<vmem>>, vector<16x32xf32>,
    } else {
    }
    %c0 = arith.constant 0 : index
    %c0_1 = arith.constant 0 : index
    %3 = vector.load %arg9[%c0, %c0_1] : memref<16x32xf32, #tpu.memory_space<vmem>>, vector<16x32xf32>
    %c0_2 = arith.constant 0 : index
    %c0_3 = arith.constant 0 : index
    %4 = vector.load %arg2[%c0_2, %c0_3] : memref<16x64xf32, #tpu.memory_space<vmem>>, vector<16x64xf32>
    %5 = arith.truncf %4 : vector<16x64xf32> to vector<16x64xbf16>
    %c0_4 = arith.constant 0 : index
    %c0_5 = arith.constant 0 : index
    %6 = vector.load %arg3[%c0_4, %c0_5] : memref<64x32xf32, #tpu.memory_space<vmem>>, vector<64x32xf32>
    %7 = arith.truncf %6 : vector<64x32xf32> to vector<64x32xbf16>
    %cst = arith.constant dense<0.000000e+00> : vector<16x32xf32>
    %8 = tpu.matmul %5, %7, %cst {dimension_numbers = #tpu.dot_dimension_numbers<[1], [0], [0], [1], [0, 0, 1, 1], [], []>} : vector<16x64xbf16>, vector<64x32xbf16>, vector<16x32xf32> -> vector<16x32xf32>
    %9 = arith.addf %3, %8 : vector<16x32xf32>
    %c0_6 = arith.constant 0 : index
    %c0_7 = arith.constant 0 : index
    %10 = vector.load %arg9[%c0_6, %c0_7] : memref<16x32xf32, #tpu.memory_space<vmem>>, vector<16x32xf32>
    tpu.vector_store %arg9[%c0_6, %c0_7], %9 {strides = array<i32>} : memref<16x32xf32, #tpu.memory_space<vmem>>, vector<16x32xf32>,
    %c0_i32_8 = arith.constant 0 : i32
    %11 = arith.cmpi eq, %arg1, %c0_i32_8 : i32
    %12 = arith.extui %11 : i1 to i32
    %c0_i32_9 = arith.constant 0 : i32
    %13 = arith.cmpi ne, %12, %c0_i32_9 : i32
    scf.if %13 {
      %c0_10 = arith.constant 0 : index
      %c0_11 = arith.constant 0 : index
      %14 = vector.load %arg9[%c0_10, %c0_11] : memref<16x32xf32, #tpu.memory_space<vmem>>, vector<16x32xf32>
      %c0_12 = arith.constant 0 : index
      %c0_13 = arith.constant 0 : index
      %15 = vector.load %arg4[%c0_12, %c0_13] : memref<1x32xf32, #tpu.memory_space<vmem>>, vector<1x32xf32>
      %16 = vector.broadcast %15 : vector<1x32xf32> to vector<16x32xf32>
      %17 = arith.addf %14, %16 : vector<16x32xf32>
      %c0_14 = arith.constant 0 : index
      %c0_15 = arith.constant 0 : index
      %18 = vector.load %arg5[%c0_14, %c0_15] : memref<16x32xf32, #tpu.memory_space<vmem>>, vector<16x32xf32>
      %19 = arith.addf %17, %18 : vector<16x32xf32>
      %cst_16 = arith.constant dense<0.000000e+00> : vector<16xf32>
      %20 = vector.multi_reduction <add>, %19, %cst_16 [1] : vector<16x32xf32> to vector<16xf32>
      %21 = vector.shape_cast %20 : vector<16xf32> to vector<16x1xf32>
      %cst_17 = arith.constant 3.200000e+01 : f32
      %22 = vector.broadcast %cst_17 : f32 to vector<16x1xf32>
      %23 = arith.divf %21, %22 : vector<16x1xf32>
      %24 = vector.broadcast %23 : vector<16x1xf32> to vector<16x32xf32>
      %25 = arith.subf %19, %24 : vector<16x32xf32>
      %26 = arith.mulf %25, %25 : vector<16x32xf32>
      %cst_18 = arith.constant dense<0.000000e+00> : vector<16xf32>
      %27 = vector.multi_reduction <add>, %26, %cst_18 [1] : vector<16x32xf32> to vector<16xf32>
      %28 = vector.shape_cast %27 : vector<16xf32> to vector<16x1xf32>
      %cst_19 = arith.constant 3.200000e+01 : f32
      %29 = vector.broadcast %cst_19 : f32 to vector<16x1xf32>
      %30 = arith.divf %28, %29 : vector<16x1xf32>
      %31 = vector.broadcast %23 : vector<16x1xf32> to vector<16x32xf32>
      %32 = arith.subf %19, %31 : vector<16x32xf32>
      %cst_20 = arith.constant 9.99999974E-6 : f32
      %33 = vector.broadcast %cst_20 : f32 to vector<16x1xf32>
      %34 = arith.addf %30, %33 : vector<16x1xf32>
      %35 = math.rsqrt %34 : vector<16x1xf32>
      %36 = vector.broadcast %35 : vector<16x1xf32> to vector<16x32xf32>
      %37 = arith.mulf %32, %36 : vector<16x32xf32>
      %c0_21 = arith.constant 0 : index
      %c0_22 = arith.constant 0 : index
      %38 = vector.load %arg6[%c0_21, %c0_22] : memref<1x32xf32, #tpu.memory_space<vmem>>, vector<1x32xf32>
      %39 = vector.broadcast %38 : vector<1x32xf32> to vector<16x32xf32>
      %40 = arith.mulf %37, %39 : vector<16x32xf32>
      %c0_23 = arith.constant 0 : index
      %c0_24 = arith.constant 0 : index
      %41 = vector.load %arg7[%c0_23, %c0_24] : memref<1x32xf32, #tpu.memory_space<vmem>>, vector<1x32xf32>
      %42 = vector.broadcast %41 : vector<1x32xf32> to vector<16x32xf32>
      %43 = arith.addf %40, %42 : vector<16x32xf32>
      %c0_25 = arith.constant 0 : index
      %c0_26 = arith.constant 0 : index
      %44 = vector.load %arg8[%c0_25, %c0_26] : memref<16x32xf32, #tpu.memory_space<vmem>>, vector<16x32xf32>
      tpu.vector_store %arg8[%c0_25, %c0_26], %43 {strides = array<i32>} : memref<16x32xf32, #tpu.memory_space<vmem>>, vector<16x32xf32>,
    } else {
    }
    return
  }
  func.func @transform_0(%arg0: i32, %arg1: i32) -> (i32, i32) {
    %c0_i32 = arith.constant 0 : i32
    return %arg0, %arg1 : i32, i32
  }
  func.func @transform_1(%arg0: i32, %arg1: i32) -> (i32, i32) {
    %c0_i32 = arith.constant 0 : i32
    %c0_i32_0 = arith.constant 0 : i32
    return %arg1, %c0_i32 : i32, i32
  }
  func.func @transform_2(%arg0: i32, %arg1: i32) -> (i32, i32) {
    %c0_i32 = arith.constant 0 : i32
    %c0_i32_0 = arith.constant 0 : i32
    %c0_i32_1 = arith.constant 0 : i32
    return %c0_i32, %c0_i32_0 : i32, i32
  }
  func.func @transform_3(%arg0: i32, %arg1: i32) -> (i32, i32) {
    %c0_i32 = arith.constant 0 : i32
    %c0_i32_0 = arith.constant 0 : i32
    return %arg0, %c0_i32 : i32, i32
  }
  func.func @transform_4(%arg0: i32, %arg1: i32) -> (i32, i32) {
    %c0_i32 = arith.constant 0 : i32
    %c0_i32_0 = arith.constant 0 : i32
    %c0_i32_1 = arith.constant 0 : i32
    return %c0_i32, %c0_i32_0 : i32, i32
  }
  func.func @transform_5(%arg0: i32, %arg1: i32) -> (i32, i32) {
    %c0_i32 = arith.constant 0 : i32
    %c0_i32_0 = arith.constant 0 : i32
    %c0_i32_1 = arith.constant 0 : i32
    return %c0_i32, %c0_i32_0 : i32, i32
  }
  func.func @transform_6(%arg0: i32, %arg1: i32) -> (i32, i32) {
    %c0_i32 = arith.constant 0 : i32
    %c0_i32_0 = arith.constant 0 : i32
    return %arg0, %c0_i32 : i32, i32
  }
}

</mosaic_0001>

<llo_original>
// kernel: decoder_forward.18
$region0: #{decoder_forward.18}
  #allocation0 [shape = 'u32[]', space=smem, size = 0x4, offset = 0x4, fixed_abs, tag = 'smem constant byte address 0x4 - core index']
  #allocation1 [shape = 'u32[144,128]{1,0:T(1,128)}', space=vmem, size = 0x12000, scoped, tag = 'internal scratch']
  #allocation2 [shape = 'f32[16,96]{1,0:T(8,128)}', space=vmem, size = 0x2000, scoped, tag = 'scratch operand']
  %s0 = inlined_call_operand.vmem [shape: f32[16,32], index: 0, kind: input, shape index: {}]
  %s1 = inlined_call_operand.vmem [shape: f32[32,96], index: 1, kind: input, shape index: {}]
  %s2 = inlined_call_operand.vmem [shape: f32[1,96], index: 2, kind: input, shape index: {}]
  %s3 = inlined_call_operand.vmem [shape: f32[16,96], index: 3, kind: output, shape index: {}]
  %s4 = sld [smem:[#allocation0]]
  $region30: #{decoder_forward.18} parent=0
    _
  %s6 = ssub.s32 1, %s4
  %s7 = scalar_select 0, %s6, %s4
  // Predicated region
  $region2: #{decoder_forward.18} parent=0 // pred_check
    _
  $region3: #{decoder_forward.18} parent=0 // pred_check_branch
    %9 = sbr.rel (0) target = $region5
  $region4: #{decoder_forward.18} parent=0 // pred_region
    _
  $region5: #{decoder_forward.18} parent=0 // pred_fallthru
    _
  // Predicated region
  $region6: #{decoder_forward.18} parent=0 // pred_check
    _
  $region7: #{decoder_forward.18} parent=0 // pred_check_branch
    %11 = sbr.rel (0) target = $region9
  $region8: #{decoder_forward.18} parent=0 // pred_region
    _
  $region9: #{decoder_forward.18} parent=0 // pred_fallthru
    _
  // Predicated region
  $region10: #{decoder_forward.18} parent=0 // pred_check
    _
  $region11: #{decoder_forward.18} parent=0 // pred_check_branch
    %13 = sbr.rel (0) target = $region13
  $region12: #{decoder_forward.18} parent=0 // pred_region
    _
  $region13: #{decoder_forward.18} parent=0 // pred_fallthru
    _
  %p15 = scmp.eq.s32.totalorder 0, 0
  // Predicated region
  $region14: #{decoder_forward.18} parent=0 // pred_check
    %p16 = pneg %p15
  $region15: #{decoder_forward.18} parent=0 // pred_check_branch
    %18 = sbr.rel (%p16) target = $region17
  $region16: #{decoder_forward.18} parent=0 // pred_region
    %vm19 = vcmask 785408
    %20 = vst.msk [vmem:[#allocation2] sm:$0xff] %vm19, 0.0
    %21 = vst.msk [vmem:[#allocation2 + $0x8] sm:$0xff] %vm19, 0.0
  $region17: #{decoder_forward.18} parent=0 // pred_fallthru
    _
  %v22 = vld [vmem:[#allocation2] sm:$0xff]
  %v23 = vld [vmem:[#allocation2 + $0x8] sm:$0xff]
  %v24 = vld [vmem:[%s0] sm:$0xff]
  %v25 = vld [vmem:[%s0 + $0x8] sm:$0xff]
  %v26 = vpack.c.bf16 %v25, %v24
  %v27 = vld [vmem:[%s1] sm:$0xff]
  %v28 = vld [vmem:[%s1 + $0x8] sm:$0xff]
  %v29 = vld [vmem:[%s1 + $0x10] sm:$0xff]
  %v30 = vld [vmem:[%s1 + $0x18] sm:$0xff]
  %v31 = vpack.c.bf16 %v28, %v27
  %v32 = vpack.c.bf16 %v30, %v29
  %vm33 = vcmask 261120
  %v35 = vsel %vm33, %v26, 0
  %37 = vmatprep.subr.bf16.mxu0 0
  %38 = vmatpush1.bf16.msra.mxu0 %v31
  %39 = vmatprep.subr.bf16.mxu0 0
  %40 = vmatpush1.bf16.msra.mxu0 %v32
  %41 = vmatprep.subr.bf16.mxu0 0
  %42 = vmatpush1.bf16.msra.mxu0 0
  %43 = vmatprep.subr.bf16.mxu0 0
  %44 = vmatpush1.bf16.msra.mxu0 0
  %45 = vmatprep.subr.bf16.mxu0 0
  %46 = vmatpush1.bf16.msra.mxu0 0
  %47 = vmatprep.subr.bf16.mxu0 0
  %48 = vmatpush1.bf16.msra.mxu0 0
  %49 = vmatprep.subr.bf16.mxu0 0
  %50 = vmatpush1.bf16.msra.mxu0 0
  %51 = vmatprep.subr.bf16.mxu0 0
  %52 = vmatpush1.bf16.msra.mxu0 0
  %53 = vmatprep.subr.bf16.mxu0 0
  %54 = vmatpush1.bf16.msra.mxu0 0
  %55 = vmatprep.subr.bf16.mxu0 0
  %56 = vmatpush1.bf16.msra.mxu0 0
  %57 = vmatprep.subr.bf16.mxu0 0
  %58 = vmatpush1.bf16.msra.mxu0 0
  %59 = vmatprep.subr.bf16.mxu0 0
  %60 = vmatpush1.bf16.msra.mxu0 0
  %61 = vmatprep.subr.bf16.mxu0 0
  %62 = vmatpush1.bf16.msra.mxu0 0
  %63 = vmatprep.subr.bf16.mxu0 0
  %64 = vmatpush1.bf16.msra.mxu0 0
  %65 = vmatprep.subr.bf16.mxu0 0
  %66 = vmatpush1.bf16.msra.mxu0 0
  %67 = vmatprep.subr.bf16.mxu0 0
  %68 = vmatpush1.bf16.msra.mxu0 0
  %69 = vmatprep.mubr.bf16.mxu0 0
  %70 = vmatmul.mubr.bf16.gmra.mrb[0].mxu0 %v35
  %v71 = vpop.f32.mrb[0].mxu0
  %v72 = vadd.f32 0.0, %v71
  %v73 = vpop.f32.mrb[0].mxu0
  %v74 = vpop.f32.mrb[0].mxu0
  %v75 = vadd.f32 0.0, %v74
  %v76 = vpop.f32.mrb[0].mxu0
  %77 = vdwg.mxu0
  %v78 = vadd.f32 %v22, %v72
  %v79 = vadd.f32 %v23, %v75
  %vm80 = vcmask 785408
  %81 = vst.msk [vmem:[#allocation2] sm:$0xff] %vm80, %v78
  %82 = vst.msk [vmem:[#allocation2 + $0x8] sm:$0xff] %vm80, %v79
  // Predicated region
  $region18: #{decoder_forward.18} parent=0 // pred_check
    %p83 = pneg %p15
  $region19: #{decoder_forward.18} parent=0 // pred_check_branch
    %85 = sbr.rel (%p83) target = $region21
  $region20: #{decoder_forward.18} parent=0 // pred_region
    %v86 = vld [vmem:[#allocation2] sm:$0xff]
    %v87 = vld [vmem:[#allocation2 + $0x8] sm:$0xff]
    %v88 = vld [vmem:[%s2] sm:$0x1]
    %v90 = vlaneseq
    %v91 = vshrl.u32 %v90, 7
    %v92 = vsub.s32 0, %v91
    %v93 = vrot.slane %v88, %v92
    %v95 = vadd.f32 %v86, %v93
    %v96 = vadd.f32 %v87, %v93
    %97 = vst.msk [vmem:[%s3] sm:$0xff] %vm80, %v95
    %98 = vst.msk [vmem:[%s3 + $0x8] sm:$0xff] %vm80, %v96
  $region21: #{decoder_forward.18} parent=0 // pred_fallthru
    _
  // Predicated region
  $region22: #{decoder_forward.18} parent=0 // pred_check
    _
  $region23: #{decoder_forward.18} parent=0 // pred_check_branch
    %100 = sbr.rel (0) target = $region25
  $region24: #{decoder_forward.18} parent=0 // pred_region
    _
  $region25: #{decoder_forward.18} parent=0 // pred_fallthru
    _
  // Predicated region
  $region26: #{decoder_forward.18} parent=0 // pred_check
    _
  $region27: #{decoder_forward.18} parent=0 // pred_check_branch
    %102 = sbr.rel (0) target = $region29
  $region28: #{decoder_forward.18} parent=0 // pred_region
    _
  $region29: #{decoder_forward.18} parent=0 // pred_fallthru
    _

// kernel: decoder_forward.21
$region0: #{decoder_forward.21}
  #allocation0 [shape = 'u32[]', space=smem, size = 0x4, offset = 0x4, fixed_abs, tag = 'smem constant byte address 0x4 - core index']
  #allocation1 [shape = 'u32[144,128]{1,0:T(1,128)}', space=vmem, size = 0x12000, scoped, tag = 'internal scratch']
  #allocation2 [shape = 'f32[16,32]{1,0:T(8,128)}', space=vmem, size = 0x2000, scoped, tag = 'scratch operand']
  %s0 = inlined_call_operand.vmem [shape: f32[16,32], index: 0, kind: input, shape index: {}]
  %s1 = inlined_call_operand.vmem [shape: f32[32,32], index: 1, kind: input, shape index: {}]
  %s2 = inlined_call_operand.vmem [shape: f32[1,32], index: 2, kind: input, shape index: {}]
  %s3 = inlined_call_operand.vmem [shape: f32[16,32], index: 3, kind: output, shape index: {}]
  %s4 = sld [smem:[#allocation0]]
  $region30: #{decoder_forward.21} parent=0
    _
  %s6 = ssub.s32 1, %s4
  %s7 = scalar_select 0, %s6, %s4
  // Predicated region
  $region2: #{decoder_forward.21} parent=0 // pred_check
    _
  $region3: #{decoder_forward.21} parent=0 // pred_check_branch
    %9 = sbr.rel (0) target = $region5
  $region4: #{decoder_forward.21} parent=0 // pred_region
    _
  $region5: #{decoder_forward.21} parent=0 // pred_fallthru
    _
  // Predicated region
  $region6: #{decoder_forward.21} parent=0 // pred_check
    _
  $region7: #{decoder_forward.21} parent=0 // pred_check_branch
    %11 = sbr.rel (0) target = $region9
  $region8: #{decoder_forward.21} parent=0 // pred_region
    _
  $region9: #{decoder_forward.21} parent=0 // pred_fallthru
    _
  // Predicated region
  $region10: #{decoder_forward.21} parent=0 // pred_check
    _
  $region11: #{decoder_forward.21} parent=0 // pred_check_branch
    %13 = sbr.rel (0) target = $region13
  $region12: #{decoder_forward.21} parent=0 // pred_region
    _
  $region13: #{decoder_forward.21} parent=0 // pred_fallthru
    _
  %p15 = scmp.eq.s32.totalorder 0, 0
  // Predicated region
  $region14: #{decoder_forward.21} parent=0 // pred_check
    %p16 = pneg %p15
  $region15: #{decoder_forward.21} parent=0 // pred_check_branch
    %18 = sbr.rel (%p16) target = $region17
  $region16: #{decoder_forward.21} parent=0 // pred_region
    %vm19 = vcmask 261120
    %20 = vst.msk [vmem:[#allocation2] sm:$0xff] %vm19, 0.0
    %21 = vst.msk [vmem:[#allocation2 + $0x8] sm:$0xff] %vm19, 0.0
  $region17: #{decoder_forward.21} parent=0 // pred_fallthru
    _
  %v22 = vld [vmem:[#allocation2] sm:$0xff]
  %v23 = vld [vmem:[#allocation2 + $0x8] sm:$0xff]
  %v24 = vld [vmem:[%s0] sm:$0xff]
  %v25 = vld [vmem:[%s0 + $0x8] sm:$0xff]
  %v26 = vpack.c.bf16 %v25, %v24
  %v27 = vld [vmem:[%s1] sm:$0xff]
  %v28 = vld [vmem:[%s1 + $0x8] sm:$0xff]
  %v29 = vld [vmem:[%s1 + $0x10] sm:$0xff]
  %v30 = vld [vmem:[%s1 + $0x18] sm:$0xff]
  %v31 = vpack.c.bf16 %v28, %v27
  %v32 = vpack.c.bf16 %v30, %v29
  %vm33 = vcmask 261120
  %v35 = vsel %vm33, %v26, 0
  %37 = vmatprep.subr.bf16.mxu0 0
  %38 = vmatpush1.bf16.msra.mxu0 %v31
  %39 = vmatprep.subr.bf16.mxu0 0
  %40 = vmatpush1.bf16.msra.mxu0 %v32
  %41 = vmatprep.subr.bf16.mxu0 0
  %42 = vmatpush1.bf16.msra.mxu0 0
  %43 = vmatprep.subr.bf16.mxu0 0
  %44 = vmatpush1.bf16.msra.mxu0 0
  %45 = vmatprep.subr.bf16.mxu0 0
  %46 = vmatpush1.bf16.msra.mxu0 0
  %47 = vmatprep.subr.bf16.mxu0 0
  %48 = vmatpush1.bf16.msra.mxu0 0
  %49 = vmatprep.subr.bf16.mxu0 0
  %50 = vmatpush1.bf16.msra.mxu0 0
  %51 = vmatprep.subr.bf16.mxu0 0
  %52 = vmatpush1.bf16.msra.mxu0 0
  %53 = vmatprep.subr.bf16.mxu0 0
  %54 = vmatpush1.bf16.msra.mxu0 0
  %55 = vmatprep.subr.bf16.mxu0 0
  %56 = vmatpush1.bf16.msra.mxu0 0
  %57 = vmatprep.subr.bf16.mxu0 0
  %58 = vmatpush1.bf16.msra.mxu0 0
  %59 = vmatprep.subr.bf16.mxu0 0
  %60 = vmatpush1.bf16.msra.mxu0 0
  %61 = vmatprep.subr.bf16.mxu0 0
  %62 = vmatpush1.bf16.msra.mxu0 0
  %63 = vmatprep.subr.bf16.mxu0 0
  %64 = vmatpush1.bf16.msra.mxu0 0
  %65 = vmatprep.subr.bf16.mxu0 0
  %66 = vmatpush1.bf16.msra.mxu0 0
  %67 = vmatprep.subr.bf16.mxu0 0
  %68 = vmatpush1.bf16.msra.mxu0 0
  %69 = vmatprep.mubr.bf16.mxu0 0
  %70 = vmatmul.mubr.bf16.gmra.mrb[0].mxu0 %v35
  %v71 = vpop.f32.mrb[0].mxu0
  %v72 = vadd.f32 0.0, %v71
  %v73 = vpop.f32.mrb[0].mxu0
  %v74 = vpop.f32.mrb[0].mxu0
  %v75 = vadd.f32 0.0, %v74
  %v76 = vpop.f32.mrb[0].mxu0
  %77 = vdwg.mxu0
  %v78 = vadd.f32 %v22, %v72
  %v79 = vadd.f32 %v23, %v75
  %80 = vst.msk [vmem:[#allocation2] sm:$0xff] %vm33, %v78
  %81 = vst.msk [vmem:[#allocation2 + $0x8] sm:$0xff] %vm33, %v79
  // Predicated region
  $region18: #{decoder_forward.21} parent=0 // pred_check
    %p82 = pneg %p15
  $region19: #{decoder_forward.21} parent=0 // pred_check_branch
    %84 = sbr.rel (%p82) target = $region21
  $region20: #{decoder_forward.21} parent=0 // pred_region
    %v85 = vld [vmem:[#allocation2] sm:$0xff]
    %v86 = vld [vmem:[#allocation2 + $0x8] sm:$0xff]
    %v87 = vld [vmem:[%s2] sm:$0x1]
    %v89 = vlaneseq
    %v90 = vshrl.u32 %v89, 7
    %v91 = vsub.s32 0, %v90
    %v92 = vrot.slane %v87, %v91
    %v94 = vadd.f32 %v85, %v92
    %v95 = vadd.f32 %v86, %v92
    %96 = vst.msk [vmem:[%s3] sm:$0xff] %vm33, %v94
    %97 = vst.msk [vmem:[%s3 + $0x8] sm:$0xff] %vm33, %v95
  $region21: #{decoder_forward.21} parent=0 // pred_fallthru
    _
  // Predicated region
  $region22: #{decoder_forward.21} parent=0 // pred_check
    _
  $region23: #{decoder_forward.21} parent=0 // pred_check_branch
    %99 = sbr.rel (0) target = $region25
  $region24: #{decoder_forward.21} parent=0 // pred_region
    _
  $region25: #{decoder_forward.21} parent=0 // pred_fallthru
    _
  // Predicated region
  $region26: #{decoder_forward.21} parent=0 // pred_check
    _
  $region27: #{decoder_forward.21} parent=0 // pred_check_branch
    %101 = sbr.rel (0) target = $region29
  $region28: #{decoder_forward.21} parent=0 // pred_region
    _
  $region29: #{decoder_forward.21} parent=0 // pred_fallthru
    _

// kernel: decoder_forward.20
$region0: #{decoder_forward.20}
  #allocation0 [shape = 'u32[]', space=smem, size = 0x4, offset = 0x4, fixed_abs, tag = 'smem constant byte address 0x4 - core index']
  #allocation1 [shape = 'u32[144,128]{1,0:T(1,128)}', space=vmem, size = 0x12000, scoped, tag = 'internal scratch']
  #allocation2 [shape = 'f32[16,32]{1,0:T(8,128)}', space=vmem, size = 0x2000, scoped, tag = 'scratch operand']
  %s0 = inlined_call_operand.vmem [shape: f32[16,32], index: 0, kind: input, shape index: {}]
  %s1 = inlined_call_operand.vmem [shape: f32[32,32], index: 1, kind: input, shape index: {}]
  %s2 = inlined_call_operand.vmem [shape: f32[1,32], index: 2, kind: input, shape index: {}]
  %s3 = inlined_call_operand.vmem [shape: f32[16,32], index: 3, kind: input, shape index: {}]
  %s4 = inlined_call_operand.vmem [shape: f32[1,32], index: 4, kind: input, shape index: {}]
  %s5 = inlined_call_operand.vmem [shape: f32[1,32], index: 5, kind: input, shape index: {}]
  %s6 = inlined_call_operand.vmem [shape: f32[16,32], index: 6, kind: output, shape index: {}]
  %s7 = sld [smem:[#allocation0]]
  $region42: #{decoder_forward.20} parent=0
    _
  %s9 = ssub.s32 1, %s7
  %s10 = scalar_select 0, %s9, %s7
  // Predicated region
  $region2: #{decoder_forward.20} parent=0 // pred_check
    _
  $region3: #{decoder_forward.20} parent=0 // pred_check_branch
    %12 = sbr.rel (0) target = $region5
  $region4: #{decoder_forward.20} parent=0 // pred_region
    _
  $region5: #{decoder_forward.20} parent=0 // pred_fallthru
    _
  // Predicated region
  $region6: #{decoder_forward.20} parent=0 // pred_check
    _
  $region7: #{decoder_forward.20} parent=0 // pred_check_branch
    %14 = sbr.rel (0) target = $region9
  $region8: #{decoder_forward.20} parent=0 // pred_region
    _
  $region9: #{decoder_forward.20} parent=0 // pred_fallthru
    _
  // Predicated region
  $region10: #{decoder_forward.20} parent=0 // pred_check
    _
  $region11: #{decoder_forward.20} parent=0 // pred_check_branch
    %16 = sbr.rel (0) target = $region13
  $region12: #{decoder_forward.20} parent=0 // pred_region
    _
  $region13: #{decoder_forward.20} parent=0 // pred_fallthru
    _
  // Predicated region
  $region14: #{decoder_forward.20} parent=0 // pred_check
    _
  $region15: #{decoder_forward.20} parent=0 // pred_check_branch
    %18 = sbr.rel (0) target = $region17
  $region16: #{decoder_forward.20} parent=0 // pred_region
    _
  $region17: #{decoder_forward.20} parent=0 // pred_fallthru
    _
  // Predicated region
  $region18: #{decoder_forward.20} parent=0 // pred_check
    _
  $region19: #{decoder_forward.20} parent=0 // pred_check_branch
    %20 = sbr.rel (0) target = $region21
  $region20: #{decoder_forward.20} parent=0 // pred_region
    _
  $region21: #{decoder_forward.20} parent=0 // pred_fallthru
    _
  // Predicated region
  $region22: #{decoder_forward.20} parent=0 // pred_check
    _
  $region23: #{decoder_forward.20} parent=0 // pred_check_branch
    %22 = sbr.rel (0) target = $region25
  $region24: #{decoder_forward.20} parent=0 // pred_region
    _
  $region25: #{decoder_forward.20} parent=0 // pred_fallthru
    _
  %p24 = scmp.eq.s32.totalorder 0, 0
  // Predicated region
  $region26: #{decoder_forward.20} parent=0 // pred_check
    %p25 = pneg %p24
  $region27: #{decoder_forward.20} parent=0 // pred_check_branch
    %27 = sbr.rel (%p25) target = $region29
  $region28: #{decoder_forward.20} parent=0 // pred_region
    %vm28 = vcmask 261120
    %29 = vst.msk [vmem:[#allocation2] sm:$0xff] %vm28, 0.0
    %30 = vst.msk [vmem:[#allocation2 + $0x8] sm:$0xff] %vm28, 0.0
  $region29: #{decoder_forward.20} parent=0 // pred_fallthru
    _
  %v31 = vld [vmem:[#allocation2] sm:$0xff]
  %v32 = vld [vmem:[#allocation2 + $0x8] sm:$0xff]
  %v33 = vld [vmem:[%s0] sm:$0xff]
  %v34 = vld [vmem:[%s0 + $0x8] sm:$0xff]
  %v35 = vpack.c.bf16 %v34, %v33
  %v36 = vld [vmem:[%s1] sm:$0xff]
  %v37 = vld [vmem:[%s1 + $0x8] sm:$0xff]
  %v38 = vld [vmem:[%s1 + $0x10] sm:$0xff]
  %v39 = vld [vmem:[%s1 + $0x18] sm:$0xff]
  %v40 = vpack.c.bf16 %v37, %v36
  %v41 = vpack.c.bf16 %v39, %v38
  %vm42 = vcmask 261120
  %v44 = vsel %vm42, %v35, 0
  %46 = vmatprep.subr.bf16.mxu0 0
  %47 = vmatpush1.bf16.msra.mxu0 %v40
  %48 = vmatprep.subr.bf16.mxu0 0
  %49 = vmatpush1.bf16.msra.mxu0 %v41
  %50 = vmatprep.subr.bf16.mxu0 0
  %51 = vmatpush1.bf16.msra.mxu0 0
  %52 = vmatprep.subr.bf16.mxu0 0
  %53 = vmatpush1.bf16.msra.mxu0 0
  %54 = vmatprep.subr.bf16.mxu0 0
  %55 = vmatpush1.bf16.msra.mxu0 0
  %56 = vmatprep.subr.bf16.mxu0 0
  %57 = vmatpush1.bf16.msra.mxu0 0
  %58 = vmatprep.subr.bf16.mxu0 0
  %59 = vmatpush1.bf16.msra.mxu0 0
  %60 = vmatprep.subr.bf16.mxu0 0
  %61 = vmatpush1.bf16.msra.mxu0 0
  %62 = vmatprep.subr.bf16.mxu0 0
  %63 = vmatpush1.bf16.msra.mxu0 0
  %64 = vmatprep.subr.bf16.mxu0 0
  %65 = vmatpush1.bf16.msra.mxu0 0
  %66 = vmatprep.subr.bf16.mxu0 0
  %67 = vmatpush1.bf16.msra.mxu0 0
  %68 = vmatprep.subr.bf16.mxu0 0
  %69 = vmatpush1.bf16.msra.mxu0 0
  %70 = vmatprep.subr.bf16.mxu0 0
  %71 = vmatpush1.bf16.msra.mxu0 0
  %72 = vmatprep.subr.bf16.mxu0 0
  %73 = vmatpush1.bf16.msra.mxu0 0
  %74 = vmatprep.subr.bf16.mxu0 0
  %75 = vmatpush1.bf16.msra.mxu0 0
  %76 = vmatprep.subr.bf16.mxu0 0
  %77 = vmatpush1.bf16.msra.mxu0 0
  %78 = vmatprep.mubr.bf16.mxu0 0
  %79 = vmatmul.mubr.bf16.gmra.mrb[0].mxu0 %v44
  %v80 = vpop.f32.mrb[0].mxu0
  %v81 = vadd.f32 0.0, %v80
  %v82 = vpop.f32.mrb[0].mxu0
  %v83 = vpop.f32.mrb[0].mxu0
  %v84 = vadd.f32 0.0, %v83
  %v85 = vpop.f32.mrb[0].mxu0
  %86 = vdwg.mxu0
  %v87 = vadd.f32 %v31, %v81
  %v88 = vadd.f32 %v32, %v84
  %89 = vst.msk [vmem:[#allocation2] sm:$0xff] %vm42, %v87
  %90 = vst.msk [vmem:[#allocation2 + $0x8] sm:$0xff] %vm42, %v88
  // Predicated region
  $region30: #{decoder_forward.20} parent=0 // pred_check
    %p91 = pneg %p24
  $region31: #{decoder_forward.20} parent=0 // pred_check_branch
    %93 = sbr.rel (%p91) target = $region33
  $region32: #{decoder_forward.20} parent=0 // pred_region
    %v94 = vld [vmem:[#allocation2] sm:$0xff]
    %v95 = vld [vmem:[#allocation2 + $0x8] sm:$0xff]
    %v96 = vld [vmem:[%s2] sm:$0x1]
    %v98 = vlaneseq
    %v99 = vshrl.u32 %v98, 7
    %v100 = vsub.s32 0, %v99
    %v101 = vrot.slane %v96, %v100
    %v103 = vadd.f32 %v94, %v101
    %v104 = vadd.f32 %v95, %v101
    %v105 = vld [vmem:[%s3] sm:$0xff]
    %v106 = vld [vmem:[%s3 + $0x8] sm:$0xff]
    %v107 = vadd.f32 %v103, %v105
    %v108 = vadd.f32 %v104, %v106
    %v109 = vsel %vm42, %v107, 0.0
    %110 = vadd.xlane.f32.xlu0 %v109
    %v111 = vpop.xlane.xlu0 %110
    %v112 = vsel %vm42, %v108, 0.0
    %113 = vadd.xlane.f32.xlu0 %v112
    %v114 = vpop.xlane.xlu0 %113
    %v115 = vrcp.pop 32.0
    %v116 = vmul.f32 %v111, %v115
    %v117 = vmul.f32 %v114, %v115
    %v118 = vsub.f32 %v107, %v116
    %v119 = vsub.f32 %v108, %v117
    %v120 = vmul.f32 %v118, %v118
    %v121 = vmul.f32 %v119, %v119
    %v122 = vsel %vm42, %v120, 0.0
    %123 = vadd.xlane.f32.xlu0 %v122
    %v124 = vpop.xlane.xlu0 %123
    %v125 = vsel %vm42, %v121, 0.0
    %126 = vadd.xlane.f32.xlu0 %v125
    %v127 = vpop.xlane.xlu0 %126
    %v128 = vmul.f32 %v124, %v115
    %v129 = vmul.f32 %v127, %v115
    %v130 = vadd.f32 %v128, 1e-05
    %v131 = vadd.f32 %v129, 1e-05
    %v132 = vrsqrt.pop %v130
    %v133 = vrsqrt.pop %v131
    %v134 = vmul.f32 %v118, %v132
    %v135 = vmul.f32 %v119, %v133
    %v136 = vld [vmem:[%s4] sm:$0x1]
    %v138 = vlaneseq
    %v139 = vshrl.u32 %v138, 7
    %v140 = vsub.s32 0, %v139
    %v141 = vrot.slane %v136, %v140
    %v143 = vmul.f32 %v134, %v141
    %v144 = vmul.f32 %v135, %v141
    %v145 = vld [vmem:[%s5] sm:$0x1]
    %v147 = vlaneseq
    %v148 = vshrl.u32 %v147, 7
    %v149 = vsub.s32 0, %v148
    %v150 = vrot.slane %v145, %v149
    %v152 = vadd.f32 %v143, %v150
    %v153 = vadd.f32 %v144, %v150
    %154 = vst.msk [vmem:[%s6] sm:$0xff] %vm42, %v152
    %155 = vst.msk [vmem:[%s6 + $0x8] sm:$0xff] %vm42, %v153
  $region33: #{decoder_forward.20} parent=0 // pred_fallthru
    _
  // Predicated region
  $region34: #{decoder_forward.20} parent=0 // pred_check
    _
  $region35: #{decoder_forward.20} parent=0 // pred_check_branch
    %157 = sbr.rel (0) target = $region37
  $region36: #{decoder_forward.20} parent=0 // pred_region
    _
  $region37: #{decoder_forward.20} parent=0 // pred_fallthru
    _
  // Predicated region
  $region38: #{decoder_forward.20} parent=0 // pred_check
    _
  $region39: #{decoder_forward.20} parent=0 // pred_check_branch
    %159 = sbr.rel (0) target = $region41
  $region40: #{decoder_forward.20} parent=0 // pred_region
    _
  $region41: #{decoder_forward.20} parent=0 // pred_fallthru
    _

// kernel: decoder_forward.19
$region0: #{decoder_forward.19}
  #allocation0 [shape = 'u32[]', space=smem, size = 0x4, offset = 0x4, fixed_abs, tag = 'smem constant byte address 0x4 - core index']
  #allocation1 [shape = 'u32[144,128]{1,0:T(1,128)}', space=vmem, size = 0x12000, scoped, tag = 'internal scratch']
  %s0 = inlined_call_operand.vmem [shape: f32[2,4,8,8], index: 0, kind: input, shape index: {}]
  %s1 = inlined_call_operand.vmem [shape: f32[2,4,8,8], index: 1, kind: input, shape index: {}]
  %s2 = inlined_call_operand.vmem [shape: f32[2,4,8,8], index: 2, kind: input, shape index: {}]
  %s3 = inlined_call_operand.vmem [shape: f32[2,4,8,8], index: 3, kind: output, shape index: {}]
  %s4 = sld [smem:[#allocation0]]
  $region45: #{decoder_forward.19} parent=0
    _
  %s6 = ssub.s32 1, %s4
  %s7 = scalar_select 0, %s6, %s4
  loop: start=0, step=1, limit=4
  $region2: #{decoder_forward.19} parent=0 // loop_pre_header
    _
  $region3: #{decoder_forward.19} parent=0 // loop_header
    %s9 = sphi 0, %s13
    %p10 = scmp.ge.s32.totalorder %s9, 4
    %s16 = sphi 0, %s28
    %s17 = sphi 0, %s24
    %s18 = sphi 0, %s16
    %s19 = sphi 0, %s17
    %s20 = sphi 0, %s18
    %s21 = sphi 0, %s19
    %s33 = sphi 0, %s35
    %s36 = sphi 0, %s33
    %s37 = sphi 0, %s36
    %s53 = sphi 0, %s37
    %s59 = sphi 0, %s61
    %s62 = sphi 0, %s59
    %s63 = sphi 0, %s62
    %s79 = sphi 0, %s63
    %s85 = sphi 0, %s87
    %s88 = sphi 0, %s85
    %s89 = sphi 0, %s88
    %s105 = sphi 0, %s89
    %s113 = sphi 0, %s115
    %s116 = sphi 0, %s113
    %s117 = sphi 0, %s116
    %s133 = sphi 0, %s117
  $region4: #{decoder_forward.19} parent=0 // loop_header_branch
    %12 = sbr.rel (%p10) target = $region8
  $region5: #{decoder_forward.19} parent=0 // loop_body
    %s14 = ssub.s32 %s9, 1
    %s15 = ssub.s32 %s9, 2
    %s22 = sadd.s32 1, %s17
    %p23 = scmp.ge.s32.totalorder %s22, 1
    %s24 = scalar_select %p23, 0, %s22
    %s25 = sadd.s32 1, %s16
    %s26 = scalar_select %p23, %s25, %s16
    %p27 = scmp.ge.s32.totalorder %s26, 2
    %s28 = scalar_select %p27, 0, %s26
    %s29 = ssub.s32 %s16, %s28
    %s30 = ssub.s32 %s17, %s24
    %s31 = sor.u32 %s29, %s30
    %p32 = scmp.eq.s32.totalorder %s31, 0
    %s34 = sadd.s32 %s33, 1
    %s35 = scalar_select %p32, %s33, %s34
    %p38 = pneg %p32
    %p39 = scmp.eq.s32.totalorder %s9, 1
    %p40 = por %p38, %p39
    %p41 = scmp.ne.s32.totalorder %s33, %s36
    %p42 = scmp.eq.s32.totalorder %s9, 0
    %p43 = por %p41, %p42
    %p44 = scmp.ne.s32.totalorder %s33, %s36
    %p45 = scmp.eq.s32.totalorder %s14, 1
    %p46 = por %p44, %p45
    %p47 = scmp.ne.s32.totalorder %s36, %s37
    %p48 = scmp.eq.s32.totalorder %s14, 0
    %p49 = por %p47, %p48
    %p50 = scmp.ne.s32.totalorder %s36, %s37
    %p51 = scmp.eq.s32.totalorder %s15, 1
    %p52 = por %p50, %p51
    %p54 = scmp.ne.s32.totalorder %s37, %s53
    %p55 = scmp.eq.s32.totalorder %s15, 0
    %p56 = por %p54, %p55
    %s57 = ssub.s32 %s16, %s28
    %p58 = scmp.eq.s32.totalorder %s57, 0
    %s60 = sadd.s32 %s59, 1
    %s61 = scalar_select %p58, %s59, %s60
    %p64 = pneg %p58
    %p65 = scmp.eq.s32.totalorder %s9, 1
    %p66 = por %p64, %p65
    %p67 = scmp.ne.s32.totalorder %s59, %s62
    %p68 = scmp.eq.s32.totalorder %s9, 0
    %p69 = por %p67, %p68
    %p70 = scmp.ne.s32.totalorder %s59, %s62
    %p71 = scmp.eq.s32.totalorder %s14, 1
    %p72 = por %p70, %p71
    %p73 = scmp.ne.s32.totalorder %s62, %s63
    %p74 = scmp.eq.s32.totalorder %s14, 0
    %p75 = por %p73, %p74
    %p76 = scmp.ne.s32.totalorder %s62, %s63
    %p77 = scmp.eq.s32.totalorder %s15, 1
    %p78 = por %p76, %p77
    %p80 = scmp.ne.s32.totalorder %s63, %s79
    %p81 = scmp.eq.s32.totalorder %s15, 0
    %p82 = por %p80, %p81
    %s83 = ssub.s32 %s16, %s28
    %p84 = scmp.eq.s32.totalorder %s83, 0
    %s86 = sadd.s32 %s85, 1
    %s87 = scalar_select %p84, %s85, %s86
    %p90 = pneg %p84
    %p91 = scmp.eq.s32.totalorder %s9, 1
    %p92 = por %p90, %p91
    %p93 = scmp.ne.s32.totalorder %s85, %s88
    %p94 = scmp.eq.s32.totalorder %s9, 0
    %p95 = por %p93, %p94
    %p96 = scmp.ne.s32.totalorder %s85, %s88
    %p97 = scmp.eq.s32.totalorder %s14, 1
    %p98 = por %p96, %p97
    %p99 = scmp.ne.s32.totalorder %s88, %s89
    %p100 = scmp.eq.s32.totalorder %s14, 0
    %p101 = por %p99, %p100
    %p102 = scmp.ne.s32.totalorder %s88, %s89
    %p103 = scmp.eq.s32.totalorder %s15, 1
    %p104 = por %p102, %p103
    %p106 = scmp.ne.s32.totalorder %s89, %s105
    %p107 = scmp.eq.s32.totalorder %s15, 0
    %p108 = por %p106, %p107
    %s109 = ssub.s32 %s16, %s28
    %s110 = ssub.s32 %s17, %s24
    %s111 = sor.u32 %s109, %s110
    %p112 = scmp.eq.s32.totalorder %s111, 0
    %s114 = sadd.s32 %s113, 1
    %s115 = scalar_select %p112, %s113, %s114
    %p118 = pneg %p112
    %p119 = scmp.eq.s32.totalorder %s9, 1
    %p120 = por %p118, %p119
    %p121 = scmp.ne.s32.totalorder %s113, %s116
    %p122 = scmp.eq.s32.totalorder %s9, 0
    %p123 = por %p121, %p122
    %p124 = scmp.ne.s32.totalorder %s113, %s116
    %p125 = scmp.eq.s32.totalorder %s14, 1
    %p126 = por %p124, %p125
    %p127 = scmp.ne.s32.totalorder %s116, %s117
    %p128 = scmp.eq.s32.totalorder %s14, 0
    %p129 = por %p127, %p128
    %p130 = scmp.ne.s32.totalorder %s116, %s117
    %p131 = scmp.eq.s32.totalorder %s15, 1
    %p132 = por %p130, %p131
    %p134 = scmp.ne.s32.totalorder %s117, %s133
    %p135 = scmp.eq.s32.totalorder %s15, 0
    %p136 = por %p134, %p135
    %p137 = scmp.le.s32.totalorder 1, %s9
    %p138 = scmp.lt.s32.totalorder %s9, 3
    %p139 = pnand %p137, %p138
    %p140 = pneg %p139
    // Predicated region
    $region9: #{decoder_forward.19} parent=5 // pred_check
      _
    $region10: #{decoder_forward.19} parent=5 // pred_check_branch
      %142 = sbr.rel (%p139) target = $region12
    $region11: #{decoder_forward.19} parent=5 // pred_region
      %s143 = ssub.s32 %s9, 1
    $region12: #{decoder_forward.19} parent=5 // pred_fallthru
      _
    %p144 = scmp.lt.s32.totalorder %s9, 2
    // Predicated region
    $region13: #{decoder_forward.19} parent=5 // pred_check
      %p145 = pneg %p144
    $region14: #{decoder_forward.19} parent=5 // pred_check_branch
      %147 = sbr.rel (%p145) target = $region16
    $region15: #{decoder_forward.19} parent=5 // pred_region
      // Predicated region
      $region17: #{decoder_forward.19} parent=15 // pred_check
        %p148 = pneg %p43
      $region18: #{decoder_forward.19} parent=15 // pred_check_branch
        %150 = sbr.rel (%p148) target = $region20
      $region19: #{decoder_forward.19} parent=15 // pred_region
        %p151 = scmp.lt.s32.totalorder %s16, 1
        %s152 = scalar_select %p151, %s16, 1
        %p153 = scmp.lt.s32.totalorder %s17, 0
        %s154 = scalar_select %p153, %s17, 0
        %s155 = smul.addr %s152, 4
        %s156 = sadd.s32 %s154, %s155
        %s157 = smul.addr %s156, 8
        %s158 = scalar_lea.vmem %s0, %s157
      $region20: #{decoder_forward.19} parent=15 // pred_fallthru
        _
      // Predicated region
      $region21: #{decoder_forward.19} parent=15 // pred_check
        %p159 = pneg %p69
      $region22: #{decoder_forward.19} parent=15 // pred_check_branch
        %161 = sbr.rel (%p159) target = $region24
      $region23: #{decoder_forward.19} parent=15 // pred_region
        %p162 = scmp.lt.s32.totalorder %s16, 1
        %s163 = scalar_select %p162, %s16, 1
        %s164 = smul.addr %s163, 4
        %s165 = smul.addr %s164, 8
        %s166 = scalar_lea.vmem %s1, %s165
      $region24: #{decoder_forward.19} parent=15 // pred_fallthru
        _
      // Predicated region
      $region25: #{decoder_forward.19} parent=15 // pred_check
        %p167 = pneg %p95
      $region26: #{decoder_forward.19} parent=15 // pred_check_branch
        %169 = sbr.rel (%p167) target = $region28
      $region27: #{decoder_forward.19} parent=15 // pred_region
        %p170 = scmp.lt.s32.totalorder %s16, 1
        %s171 = scalar_select %p170, %s16, 1
        %s172 = smul.addr %s171, 4
        %s173 = smul.addr %s172, 8
        %s174 = scalar_lea.vmem %s2, %s173
      $region28: #{decoder_forward.19} parent=15 // pred_fallthru
        _
    $region16: #{decoder_forward.19} parent=5 // pred_fallthru
      _
    %p175 = scmp.le.s32.totalorder 1, %s9
    %p176 = scmp.lt.s32.totalorder %s9, 3
    %p177 = pnand %p175, %p176
    %p178 = pneg %p177
    // Predicated region
    $region29: #{decoder_forward.19} parent=5 // pred_check
      _
    $region30: #{decoder_forward.19} parent=5 // pred_check_branch
      %180 = sbr.rel (%p177) target = $region32
    $region31: #{decoder_forward.19} parent=5 // pred_region
      %s181 = ssub.s32 %s9, 1
      %p182 = scmp.lt.s32.totalorder %s18, 1
      %s183 = scalar_select %p182, %s18, 1
      %p184 = scmp.lt.s32.totalorder %s19, 0
      %s185 = scalar_select %p184, %s19, 0
      %s186 = smul.addr %s183, 4
      %s187 = sadd.s32 %s185, %s186
      %s188 = smul.addr %s187, 8
      %s189 = scalar_lea.vmem %s0, %s188
      %p190 = pneg %p49
      %p191 = pneg %p46
      %p192 = scmp.lt.s32.totalorder %s18, 1
      %s193 = scalar_select %p192, %s18, 1
      %s194 = smul.addr %s193, 4
      %s195 = smul.addr %s194, 8
      %s196 = scalar_lea.vmem %s1, %s195
      %p197 = pneg %p75
      %p198 = pneg %p72
      %p199 = scmp.lt.s32.totalorder %s18, 1
      %s200 = scalar_select %p199, %s18, 1
      %s201 = smul.addr %s200, 4
      %s202 = smul.addr %s201, 8
      %s203 = scalar_lea.vmem %s2, %s202
      %p204 = pneg %p101
      %p205 = pneg %p98
      %p206 = pneg %p129
      %p207 = pneg %p126
      %p208 = scmp.lt.s32.totalorder %s18, 1
      %s209 = scalar_select %p208, %s18, 1
      %p210 = scmp.lt.s32.totalorder %s19, 0
      %s211 = scalar_select %p210, %s19, 0
      %s212 = smul.addr %s209, 4
      %s213 = sadd.s32 %s211, %s212
      %s214 = smul.addr %s213, 8
      %s215 = scalar_lea.vmem %s3, %s214
      %p216 = scmp.lt.s32.totalorder %s18, 1
      %s217 = scalar_select %p216, %s18, 1
      %p218 = scmp.lt.s32.totalorder %s19, 0
      %s219 = scalar_select %p218, %s19, 0
      %s220 = smul.addr %s217, 4
      %s221 = sadd.s32 %s219, %s220
      %s222 = smul.addr %s221, 8
      %s223 = scalar_lea.vmem %s0, %s222
      %p224 = scmp.lt.s32.totalorder %s18, 1
      %s225 = scalar_select %p224, %s18, 1
      %s226 = smul.addr %s225, 4
      %s227 = smul.addr %s226, 8
      %s228 = scalar_lea.vmem %s1, %s227
      %p229 = scmp.lt.s32.totalorder %s18, 1
      %s230 = scalar_select %p229, %s18, 1
      %s231 = smul.addr %s230, 4
      %s232 = smul.addr %s231, 8
      %s233 = scalar_lea.vmem %s2, %s232
      %p234 = scmp.lt.s32.totalorder %s18, 1
      %s235 = scalar_select %p234, %s18, 1
      %p236 = scmp.lt.s32.totalorder %s19, 0
      %s237 = scalar_select %p236, %s19, 0
      %s238 = smul.addr %s235, 4
      %s239 = sadd.s32 %s237, %s238
      %s240 = smul.addr %s239, 8
      %s241 = scalar_lea.vmem %s3, %s240
      %v243 = vld [vmem:[%s223] sm:$0xff]
      %v244 = vld [vmem:[%s223 + $0x8] sm:$0xff]
      %v245 = vld [vmem:[%s223 + $0x10] sm:$0xff]
      %v246 = vld [vmem:[%s223 + $0x18] sm:$0xff]
      %v247 = vmul.f32 %v243, 0.35355338
      %v248 = vmul.f32 %v244, 0.35355338
      %v249 = vmul.f32 %v245, 0.35355338
      %v250 = vmul.f32 %v246, 0.35355338
      %v251 = vpack.c.bf16 %v247, %v247
      %v252 = vpack.c.bf16 %v248, %v248
      %v253 = vpack.c.bf16 %v249, %v249
      %v254 = vpack.c.bf16 %v250, %v250
      %v255 = vld [vmem:[%s228] sm:$0xff]
      %v256 = vld [vmem:[%s228 + $0x8] sm:$0xff]
      %v257 = vld [vmem:[%s228 + $0x10] sm:$0xff]
      %v258 = vld [vmem:[%s228 + $0x18] sm:$0xff]
      %v259 = vpack.c.bf16 %v255, %v255
      %v260 = vpack.c.bf16 %v256, %v256
      %v261 = vpack.c.bf16 %v257, %v257
      %v262 = vpack.c.bf16 %v258, %v258
      %v263 = vld [vmem:[%s233] sm:$0xff]
      %v264 = vld [vmem:[%s233 + $0x8] sm:$0xff]
      %v265 = vld [vmem:[%s233 + $0x10] sm:$0xff]
      %v266 = vld [vmem:[%s233 + $0x18] sm:$0xff]
      %v267 = vpack.c.bf16 %v263, %v263
      %v268 = vpack.c.bf16 %v264, %v264
      %v269 = vpack.c.bf16 %v265, %v265
      %v270 = vpack.c.bf16 %v266, %v266
      %vm271 = vcmask 64512
      %v273 = vsel %vm271, %v251, 0
      %v276 = vsel %vm271, %v259, 0
      %278 = vmatprep.subr.bf16.mxu0 0
      %279 = vmatpush1.bf16.xpose.msra.mxu0 %v276
      %280 = vmatprep.subr.bf16.mxu0 0
      %281 = vmatpush1.bf16.xpose.msra.mxu0 0
      %282 = vmatprep.subr.bf16.mxu0 0
      %283 = vmatpush1.bf16.xpose.msra.mxu0 0
      %284 = vmatprep.subr.bf16.mxu0 0
      %285 = vmatpush1.bf16.xpose.msra.mxu0 0
      %286 = vmatprep.subr.bf16.mxu0 0
      %287 = vmatpush1.bf16.xpose.msra.mxu0 0
      %288 = vmatprep.subr.bf16.mxu0 0
      %289 = vmatpush1.bf16.xpose.msra.mxu0 0
      %290 = vmatprep.subr.bf16.mxu0 0
      %291 = vmatpush1.bf16.xpose.msra.mxu0 0
      %292 = vmatprep.subr.bf16.mxu0 0
      %293 = vmatpush1.bf16.xpose.msra.mxu0 0
      %294 = vmatprep.subr.bf16.mxu0 0
      %295 = vmatpush1.bf16.xpose.msra.mxu0 0
      %296 = vmatprep.subr.bf16.mxu0 0
      %297 = vmatpush1.bf16.xpose.msra.mxu0 0
      %298 = vmatprep.subr.bf16.mxu0 0
      %299 = vmatpush1.bf16.xpose.msra.mxu0 0
      %300 = vmatprep.subr.bf16.mxu0 0
      %301 = vmatpush1.bf16.xpose.msra.mxu0 0
      %302 = vmatprep.subr.bf16.mxu0 0
      %303 = vmatpush1.bf16.xpose.msra.mxu0 0
      %304 = vmatprep.subr.bf16.mxu0 0
      %305 = vmatpush1.bf16.xpose.msra.mxu0 0
      %306 = vmatprep.subr.bf16.mxu0 0
      %307 = vmatpush1.bf16.xpose.msra.mxu0 0
      %308 = vmatprep.subr.bf16.mxu0 0
      %309 = vmatpush1.bf16.xpose.msra.mxu0 0
      %310 = vmatprep.mubr.bf16.mxu0 0
      %311 = vmatmul.mubr.bf16.gmra.mrb[0].mxu0 %v273
      %v312 = vpop.f32.mrb[0].mxu0
      %v313 = vadd.f32 0.0, %v312
      %v314 = vpop.f32.mrb[0].mxu0
      %v315 = vpop.f32.mrb[0].mxu0
      %v316 = vpop.f32.mrb[0].mxu0
      %317 = vdwg.mxu0
      %v319 = vsel %vm271, %v252, 0
      %v322 = vsel %vm271, %v260, 0
      %324 = vmatprep.subr.bf16.mxu0 0
      %325 = vmatpush1.bf16.xpose.msra.mxu0 %v322
      %326 = vmatprep.subr.bf16.mxu0 0
      %327 = vmatpush1.bf16.xpose.msra.mxu0 0
      %328 = vmatprep.subr.bf16.mxu0 0
      %329 = vmatpush1.bf16.xpose.msra.mxu0 0
      %330 = vmatprep.subr.bf16.mxu0 0
      %331 = vmatpush1.bf16.xpose.msra.mxu0 0
      %332 = vmatprep.subr.bf16.mxu0 0
      %333 = vmatpush1.bf16.xpose.msra.mxu0 0
      %334 = vmatprep.subr.bf16.mxu0 0
      %335 = vmatpush1.bf16.xpose.msra.mxu0 0
      %336 = vmatprep.subr.bf16.mxu0 0
      %337 = vmatpush1.bf16.xpose.msra.mxu0 0
      %338 = vmatprep.subr.bf16.mxu0 0
      %339 = vmatpush1.bf16.xpose.msra.mxu0 0
      %340 = vmatprep.subr.bf16.mxu0 0
      %341 = vmatpush1.bf16.xpose.msra.mxu0 0
      %342 = vmatprep.subr.bf16.mxu0 0
      %343 = vmatpush1.bf16.xpose.msra.mxu0 0
      %344 = vmatprep.subr.bf16.mxu0 0
      %345 = vmatpush1.bf16.xpose.msra.mxu0 0
      %346 = vmatprep.subr.bf16.mxu0 0
      %347 = vmatpush1.bf16.xpose.msra.mxu0 0
      %348 = vmatprep.subr.bf16.mxu0 0
      %349 = vmatpush1.bf16.xpose.msra.mxu0 0
      %350 = vmatprep.subr.bf16.mxu0 0
      %351 = vmatpush1.bf16.xpose.msra.mxu0 0
      %352 = vmatprep.subr.bf16.mxu0 0
      %353 = vmatpush1.bf16.xpose.msra.mxu0 0
      %354 = vmatprep.subr.bf16.mxu0 0
      %355 = vmatpush1.bf16.xpose.msra.mxu0 0
      %356 = vmatprep.mubr.bf16.mxu0 0
      %357 = vmatmul.mubr.bf16.gmra.mrb[0].mxu0 %v319
      %v358 = vpop.f32.mrb[0].mxu0
      %v359 = vadd.f32 0.0, %v358
      %v360 = vpop.f32.mrb[0].mxu0
      %v361 = vpop.f32.mrb[0].mxu0
      %v362 = vpop.f32.mrb[0].mxu0
      %363 = vdwg.mxu0
      %v365 = vsel %vm271, %v253, 0
      %v368 = vsel %vm271, %v261, 0
      %370 = vmatprep.subr.bf16.mxu0 0
      %371 = vmatpush1.bf16.xpose.msra.mxu0 %v368
      %372 = vmatprep.subr.bf16.mxu0 0
      %373 = vmatpush1.bf16.xpose.msra.mxu0 0
      %374 = vmatprep.subr.bf16.mxu0 0
      %375 = vmatpush1.bf16.xpose.msra.mxu0 0
      %376 = vmatprep.subr.bf16.mxu0 0
      %377 = vmatpush1.bf16.xpose.msra.mxu0 0
      %378 = vmatprep.subr.bf16.mxu0 0
      %379 = vmatpush1.bf16.xpose.msra.mxu0 0
      %380 = vmatprep.subr.bf16.mxu0 0
      %381 = vmatpush1.bf16.xpose.msra.mxu0 0
      %382 = vmatprep.subr.bf16.mxu0 0
      %383 = vmatpush1.bf16.xpose.msra.mxu0 0
      %384 = vmatprep.subr.bf16.mxu0 0
      %385 = vmatpush1.bf16.xpose.msra.mxu0 0
      %386 = vmatprep.subr.bf16.mxu0 0
      %387 = vmatpush1.bf16.xpose.msra.mxu0 0
      %388 = vmatprep.subr.bf16.mxu0 0
      %389 = vmatpush1.bf16.xpose.msra.mxu0 0
      %390 = vmatprep.subr.bf16.mxu0 0
      %391 = vmatpush1.bf16.xpose.msra.mxu0 0
      %392 = vmatprep.subr.bf16.mxu0 0
      %393 = vmatpush1.bf16.xpose.msra.mxu0 0
      %394 = vmatprep.subr.bf16.mxu0 0
      %395 = vmatpush1.bf16.xpose.msra.mxu0 0
      %396 = vmatprep.subr.bf16.mxu0 0
      %397 = vmatpush1.bf16.xpose.msra.mxu0 0
      %398 = vmatprep.subr.bf16.mxu0 0
      %399 = vmatpush1.bf16.xpose.msra.mxu0 0
      %400 = vmatprep.subr.bf16.mxu0 0
      %401 = vmatpush1.bf16.xpose.msra.mxu0 0
      %402 = vmatprep.mubr.bf16.mxu0 0
      %403 = vmatmul.mubr.bf16.gmra.mrb[0].mxu0 %v365
      %v404 = vpop.f32.mrb[0].mxu0
      %v405 = vadd.f32 0.0, %v404
      %v406 = vpop.f32.mrb[0].mxu0
      %v407 = vpop.f32.mrb[0].mxu0
      %v408 = vpop.f32.mrb[0].mxu0
      %409 = vdwg.mxu0
      %v411 = vsel %vm271, %v254, 0
      %v414 = vsel %vm271, %v262, 0
      %416 = vmatprep.subr.bf16.mxu0 0
      %417 = vmatpush1.bf16.xpose.msra.mxu0 %v414
      %418 = vmatprep.subr.bf16.mxu0 0
      %419 = vmatpush1.bf16.xpose.msra.mxu0 0
      %420 = vmatprep.subr.bf16.mxu0 0
      %421 = vmatpush1.bf16.xpose.msra.mxu0 0
      %422 = vmatprep.subr.bf16.mxu0 0
      %423 = vmatpush1.bf16.xpose.msra.mxu0 0
      %424 = vmatprep.subr.bf16.mxu0 0
      %425 = vmatpush1.bf16.xpose.msra.mxu0 0
      %426 = vmatprep.subr.bf16.mxu0 0
      %427 = vmatpush1.bf16.xpose.msra.mxu0 0
      %428 = vmatprep.subr.bf16.mxu0 0
      %429 = vmatpush1.bf16.xpose.msra.mxu0 0
      %430 = vmatprep.subr.bf16.mxu0 0
      %431 = vmatpush1.bf16.xpose.msra.mxu0 0
      %432 = vmatprep.subr.bf16.mxu0 0
      %433 = vmatpush1.bf16.xpose.msra.mxu0 0
      %434 = vmatprep.subr.bf16.mxu0 0
      %435 = vmatpush1.bf16.xpose.msra.mxu0 0
      %436 = vmatprep.subr.bf16.mxu0 0
      %437 = vmatpush1.bf16.xpose.msra.mxu0 0
      %438 = vmatprep.subr.bf16.mxu0 0
      %439 = vmatpush1.bf16.xpose.msra.mxu0 0
      %440 = vmatprep.subr.bf16.mxu0 0
      %441 = vmatpush1.bf16.xpose.msra.mxu0 0
      %442 = vmatprep.subr.bf16.mxu0 0
      %443 = vmatpush1.bf16.xpose.msra.mxu0 0
      %444 = vmatprep.subr.bf16.mxu0 0
      %445 = vmatpush1.bf16.xpose.msra.mxu0 0
      %446 = vmatprep.subr.bf16.mxu0 0
      %447 = vmatpush1.bf16.xpose.msra.mxu0 0
      %448 = vmatprep.mubr.bf16.mxu0 0
      %449 = vmatmul.mubr.bf16.gmra.mrb[0].mxu0 %v411
      %v450 = vpop.f32.mrb[0].mxu0
      %v451 = vadd.f32 0.0, %v450
      %v452 = vpop.f32.mrb[0].mxu0
      %v453 = vpop.f32.mrb[0].mxu0
      %v454 = vpop.f32.mrb[0].mxu0
      %455 = vdwg.mxu0
      %v456 = vlaneseq
      %v457 = vshrl.u32 %v456, 7
      %s458 = smul.u32 %s19, 8
      %v459 = vstv %s458
      %v460 = vadd.s32 %v457, %v459
      %v461 = vlaneseq
      %v462 = vand.u32 %v461, 127
      %vm463 = vcmp.ge.s32.totalorder %v460, %v462
      %v464 = vsel %vm463, 1, 0
      %vm465 = vcmp.eq.s32.totalorder %v464, 1
      %v466 = vsel %vm465, %v313, -1e+30
      %v467 = vsel %vm465, %v359, -1e+30
      %v468 = vsel %vm465, %v405, -1e+30
      %v469 = vsel %vm465, %v451, -1e+30
      %v470 = vsel %vm271, %v466, -inf
      %471 = vmax.xlane.f32.xlu0 %v470
      %v472 = vpop.xlane.xlu0 %471
      %v473 = vsel %vm271, %v467, -inf
      %474 = vmax.xlane.f32.xlu0 %v473
      %v475 = vpop.xlane.xlu0 %474
      %v476 = vsel %vm271, %v468, -inf
      %477 = vmax.xlane.f32.xlu0 %v476
      %v478 = vpop.xlane.xlu0 %477
      %v479 = vsel %vm271, %v469, -inf
      %480 = vmax.xlane.f32.xlu0 %v479
      %v481 = vpop.xlane.xlu0 %480
      %v482 = vsub.f32 %v466, %v472
      %v483 = vsub.f32 %v467, %v475
      %v484 = vsub.f32 %v468, %v478
      %v485 = vsub.f32 %v469, %v481
      %v486 = vmul.f32 %v482, 1.442695
      %v487 = vpow.pop %v486
      %v488 = vmul.f32 %v483, 1.442695
      %v489 = vpow.pop %v488
      %v490 = vmul.f32 %v484, 1.442695
      %v491 = vpow.pop %v490
      %v492 = vmul.f32 %v485, 1.442695
      %v493 = vpow.pop %v492
      %v494 = vsel %vm271, %v487, 0.0
      %495 = vadd.xlane.f32.xlu0 %v494
      %v496 = vpop.xlane.xlu0 %495
      %v497 = vsel %vm271, %v489, 0.0
      %498 = vadd.xlane.f32.xlu0 %v497
      %v499 = vpop.xlane.xlu0 %498
      %v500 = vsel %vm271, %v491, 0.0
      %501 = vadd.xlane.f32.xlu0 %v500
      %v502 = vpop.xlane.xlu0 %501
      %v503 = vsel %vm271, %v493, 0.0
      %504 = vadd.xlane.f32.xlu0 %v503
      %v505 = vpop.xlane.xlu0 %504
      %v506 = vrcp.pop %v496
      %v507 = vrcp.pop %v499
      %v508 = vrcp.pop %v502
      %v509 = vrcp.pop %v505
      %v510 = vmul.f32 %v487, %v506
      %v511 = vmul.f32 %v489, %v507
      %v512 = vmul.f32 %v491, %v508
      %v513 = vmul.f32 %v493, %v509
      %v514 = vpack.c.bf16 %v510, %v510
      %v515 = vpack.c.bf16 %v511, %v511
      %v516 = vpack.c.bf16 %v512, %v512
      %v517 = vpack.c.bf16 %v513, %v513
      %v519 = vsel %vm271, %v514, 0
      %vm521 = vcmask 1043456
      %v523 = vsel %vm521, %v267, 0
      %525 = vmatprep.subr.bf16.mxu0 0
      %526 = vmatpush1.bf16.msra.mxu0 %v523
      %527 = vmatprep.subr.bf16.mxu0 0
      %528 = vmatpush1.bf16.msra.mxu0 0
      %529 = vmatprep.subr.bf16.mxu0 0
      %530 = vmatpush1.bf16.msra.mxu0 0
      %531 = vmatprep.subr.bf16.mxu0 0
      %532 = vmatpush1.bf16.msra.mxu0 0
      %533 = vmatprep.subr.bf16.mxu0 0
      %534 = vmatpush1.bf16.msra.mxu0 0
      %535 = vmatprep.subr.bf16.mxu0 0
      %536 = vmatpush1.bf16.msra.mxu0 0
      %537 = vmatprep.subr.bf16.mxu0 0
      %538 = vmatpush1.bf16.msra.mxu0 0
      %539 = vmatprep.subr.bf16.mxu0 0
      %540 = vmatpush1.bf16.msra.mxu0 0
      %541 = vmatprep.subr.bf16.mxu0 0
      %542 = vmatpush1.bf16.msra.mxu0 0
      %543 = vmatprep.subr.bf16.mxu0 0
      %544 = vmatpush1.bf16.msra.mxu0 0
      %545 = vmatprep.subr.bf16.mxu0 0
      %546 = vmatpush1.bf16.msra.mxu0 0
      %547 = vmatprep.subr.bf16.mxu0 0
      %548 = vmatpush1.bf16.msra.mxu0 0
      %549 = vmatprep.subr.bf16.mxu0 0
      %550 = vmatpush1.bf16.msra.mxu0 0
      %551 = vmatprep.subr.bf16.mxu0 0
      %552 = vmatpush1.bf16.msra.mxu0 0
      %553 = vmatprep.subr.bf16.mxu0 0
      %554 = vmatpush1.bf16.msra.mxu0 0
      %555 = vmatprep.subr.bf16.mxu0 0
      %556 = vmatpush1.bf16.msra.mxu0 0
      %557 = vmatprep.mubr.bf16.mxu0 0
      %558 = vmatmul.mubr.bf16.gmra.mrb[0].mxu0 %v519
      %v559 = vpop.f32.mrb[0].mxu0
      %v560 = vadd.f32 0.0, %v559
      %v561 = vpop.f32.mrb[0].mxu0
      %v562 = vpop.f32.mrb[0].mxu0
      %v563 = vpop.f32.mrb[0].mxu0
      %564 = vdwg.mxu0
      %v566 = vsel %vm271, %v515, 0
      %v569 = vsel %vm521, %v268, 0
      %571 = vmatprep.subr.bf16.mxu0 0
      %572 = vmatpush1.bf16.msra.mxu0 %v569
      %573 = vmatprep.subr.bf16.mxu0 0
      %574 = vmatpush1.bf16.msra.mxu0 0
      %575 = vmatprep.subr.bf16.mxu0 0
      %576 = vmatpush1.bf16.msra.mxu0 0
      %577 = vmatprep.subr.bf16.mxu0 0
      %578 = vmatpush1.bf16.msra.mxu0 0
      %579 = vmatprep.subr.bf16.mxu0 0
      %580 = vmatpush1.bf16.msra.mxu0 0
      %581 = vmatprep.subr.bf16.mxu0 0
      %582 = vmatpush1.bf16.msra.mxu0 0
      %583 = vmatprep.subr.bf16.mxu0 0
      %584 = vmatpush1.bf16.msra.mxu0 0
      %585 = vmatprep.subr.bf16.mxu0 0
      %586 = vmatpush1.bf16.msra.mxu0 0
      %587 = vmatprep.subr.bf16.mxu0 0
      %588 = vmatpush1.bf16.msra.mxu0 0
      %589 = vmatprep.subr.bf16.mxu0 0
      %590 = vmatpush1.bf16.msra.mxu0 0
      %591 = vmatprep.subr.bf16.mxu0 0
      %592 = vmatpush1.bf16.msra.mxu0 0
      %593 = vmatprep.subr.bf16.mxu0 0
      %594 = vmatpush1.bf16.msra.mxu0 0
      %595 = vmatprep.subr.bf16.mxu0 0
      %596 = vmatpush1.bf16.msra.mxu0 0
      %597 = vmatprep.subr.bf16.mxu0 0
      %598 = vmatpush1.bf16.msra.mxu0 0
      %599 = vmatprep.subr.bf16.mxu0 0
      %600 = vmatpush1.bf16.msra.mxu0 0
      %601 = vmatprep.subr.bf16.mxu0 0
      %602 = vmatpush1.bf16.msra.mxu0 0
      %603 = vmatprep.mubr.bf16.mxu0 0
      %604 = vmatmul.mubr.bf16.gmra.mrb[0].mxu0 %v566
      %v605 = vpop.f32.mrb[0].mxu0
      %v606 = vadd.f32 0.0, %v605
      %v607 = vpop.f32.mrb[0].mxu0
      %v608 = vpop.f32.mrb[0].mxu0
      %v609 = vpop.f32.mrb[0].mxu0
      %610 = vdwg.mxu0
      %v612 = vsel %vm271, %v516, 0
      %v615 = vsel %vm521, %v269, 0
      %617 = vmatprep.subr.bf16.mxu0 0
      %618 = vmatpush1.bf16.msra.mxu0 %v615
      %619 = vmatprep.subr.bf16.mxu0 0
      %620 = vmatpush1.bf16.msra.mxu0 0
      %621 = vmatprep.subr.bf16.mxu0 0
      %622 = vmatpush1.bf16.msra.mxu0 0
      %623 = vmatprep.subr.bf16.mxu0 0
      %624 = vmatpush1.bf16.msra.mxu0 0
      %625 = vmatprep.subr.bf16.mxu0 0
      %626 = vmatpush1.bf16.msra.mxu0 0
      %627 = vmatprep.subr.bf16.mxu0 0
      %628 = vmatpush1.bf16.msra.mxu0 0
      %629 = vmatprep.subr.bf16.mxu0 0
      %630 = vmatpush1.bf16.msra.mxu0 0
      %631 = vmatprep.subr.bf16.mxu0 0
      %632 = vmatpush1.bf16.msra.mxu0 0
      %633 = vmatprep.subr.bf16.mxu0 0
      %634 = vmatpush1.bf16.msra.mxu0 0
      %635 = vmatprep.subr.bf16.mxu0 0
      %636 = vmatpush1.bf16.msra.mxu0 0
      %637 = vmatprep.subr.bf16.mxu0 0
      %638 = vmatpush1.bf16.msra.mxu0 0
      %639 = vmatprep.subr.bf16.mxu0 0
      %640 = vmatpush1.bf16.msra.mxu0 0
      %641 = vmatprep.subr.bf16.mxu0 0
      %642 = vmatpush1.bf16.msra.mxu0 0
      %643 = vmatprep.subr.bf16.mxu0 0
      %644 = vmatpush1.bf16.msra.mxu0 0
      %645 = vmatprep.subr.bf16.mxu0 0
      %646 = vmatpush1.bf16.msra.mxu0 0
      %647 = vmatprep.subr.bf16.mxu0 0
      %648 = vmatpush1.bf16.msra.mxu0 0
      %649 = vmatprep.mubr.bf16.mxu0 0
      %650 = vmatmul.mubr.bf16.gmra.mrb[0].mxu0 %v612
      %v651 = vpop.f32.mrb[0].mxu0
      %v652 = vadd.f32 0.0, %v651
      %v653 = vpop.f32.mrb[0].mxu0
      %v654 = vpop.f32.mrb[0].mxu0
      %v655 = vpop.f32.mrb[0].mxu0
      %656 = vdwg.mxu0
      %v658 = vsel %vm271, %v517, 0
      %v661 = vsel %vm521, %v270, 0
      %663 = vmatprep.subr.bf16.mxu0 0
      %664 = vmatpush1.bf16.msra.mxu0 %v661
      %665 = vmatprep.subr.bf16.mxu0 0
      %666 = vmatpush1.bf16.msra.mxu0 0
      %667 = vmatprep.subr.bf16.mxu0 0
      %668 = vmatpush1.bf16.msra.mxu0 0
      %669 = vmatprep.subr.bf16.mxu0 0
      %670 = vmatpush1.bf16.msra.mxu0 0
      %671 = vmatprep.subr.bf16.mxu0 0
      %672 = vmatpush1.bf16.msra.mxu0 0
      %673 = vmatprep.subr.bf16.mxu0 0
      %674 = vmatpush1.bf16.msra.mxu0 0
      %675 = vmatprep.subr.bf16.mxu0 0
      %676 = vmatpush1.bf16.msra.mxu0 0
      %677 = vmatprep.subr.bf16.mxu0 0
      %678 = vmatpush1.bf16.msra.mxu0 0
      %679 = vmatprep.subr.bf16.mxu0 0
      %680 = vmatpush1.bf16.msra.mxu0 0
      %681 = vmatprep.subr.bf16.mxu0 0
      %682 = vmatpush1.bf16.msra.mxu0 0
      %683 = vmatprep.subr.bf16.mxu0 0
      %684 = vmatpush1.bf16.msra.mxu0 0
      %685 = vmatprep.subr.bf16.mxu0 0
      %686 = vmatpush1.bf16.msra.mxu0 0
      %687 = vmatprep.subr.bf16.mxu0 0
      %688 = vmatpush1.bf16.msra.mxu0 0
      %689 = vmatprep.subr.bf16.mxu0 0
      %690 = vmatpush1.bf16.msra.mxu0 0
      %691 = vmatprep.subr.bf16.mxu0 0
      %692 = vmatpush1.bf16.msra.mxu0 0
      %693 = vmatprep.subr.bf16.mxu0 0
      %694 = vmatpush1.bf16.msra.mxu0 0
      %695 = vmatprep.mubr.bf16.mxu0 0
      %696 = vmatmul.mubr.bf16.gmra.mrb[0].mxu0 %v658
      %v697 = vpop.f32.mrb[0].mxu0
      %v698 = vadd.f32 0.0, %v697
      %v699 = vpop.f32.mrb[0].mxu0
      %v700 = vpop.f32.mrb[0].mxu0
      %v701 = vpop.f32.mrb[0].mxu0
      %702 = vdwg.mxu0
      %703 = vst.msk [vmem:[%s241] sm:$0xff] %vm271, %v560
      %704 = vst.msk [vmem:[%s241 + $0x8] sm:$0xff] %vm271, %v606
      %705 = vst.msk [vmem:[%s241 + $0x10] sm:$0xff] %vm271, %v652
      %706 = vst.msk [vmem:[%s241 + $0x18] sm:$0xff] %vm271, %v698
      %p707 = scmp.lt.s32.totalorder %s18, 1
      %s708 = scalar_select %p707, %s18, 1
      %p709 = scmp.lt.s32.totalorder %s19, 0
      %s710 = scalar_select %p709, %s19, 0
      %s711 = smul.addr %s708, 4
      %s712 = sadd.s32 %s710, %s711
      %s713 = smul.addr %s712, 8
      %s714 = scalar_lea.vmem %s3, %s713
      // Predicated region
      $region33: #{decoder_forward.19} parent=31 // pred_check
        %p715 = pneg %p126
      $region34: #{decoder_forward.19} parent=31 // pred_check_branch
        %717 = sbr.rel (%p715) target = $region36
      $region35: #{decoder_forward.19} parent=31 // pred_region
        _
      $region36: #{decoder_forward.19} parent=31 // pred_fallthru
        _
    $region32: #{decoder_forward.19} parent=5 // pred_fallthru
      _
    %p718 = scmp.le.s32.totalorder 2, %s9
    // Predicated region
    $region37: #{decoder_forward.19} parent=5 // pred_check
      %p719 = pneg %p718
    $region38: #{decoder_forward.19} parent=5 // pred_check_branch
      %721 = sbr.rel (%p719) target = $region40
    $region39: #{decoder_forward.19} parent=5 // pred_region
      %s722 = ssub.s32 %s9, 2
      // Predicated region
      $region41: #{decoder_forward.19} parent=39 // pred_check
        %p723 = pneg %p132
      $region42: #{decoder_forward.19} parent=39 // pred_check_branch
        %725 = sbr.rel (%p723) target = $region44
      $region43: #{decoder_forward.19} parent=39 // pred_region
        %p726 = scmp.lt.s32.totalorder %s20, 1
        %s727 = scalar_select %p726, %s20, 1
        %p728 = scmp.lt.s32.totalorder %s21, 0
        %s729 = scalar_select %p728, %s21, 0
        %s730 = smul.addr %s727, 4
        %s731 = sadd.s32 %s729, %s730
        %s732 = smul.addr %s731, 8
        %s733 = scalar_lea.vmem %s3, %s732
      $region44: #{decoder_forward.19} parent=39 // pred_fallthru
        _
    $region40: #{decoder_forward.19} parent=5 // pred_fallthru
      _
  $region6: #{decoder_forward.19} parent=0 // loop_footer
    %s13 = sadd.s32 1, %s9
  $region7: #{decoder_forward.19} parent=0 // loop_footer_branch
    %8 = sbr.rel target = $region3
  $region8: #{decoder_forward.19} parent=0 // loop_exit
    _

// kernel: decoder_forward.25
$region0: #{decoder_forward.25}
  #allocation0 [shape = 'u32[]', space=smem, size = 0x4, offset = 0x4, fixed_abs, tag = 'smem constant byte address 0x4 - core index']
  #allocation1 [shape = 'u32[144,128]{1,0:T(1,128)}', space=vmem, size = 0x12000, scoped, tag = 'internal scratch']
  #allocation2 [shape = 'f32[16,64]{1,0:T(8,128)}', space=vmem, size = 0x2000, scoped, tag = 'scratch operand']
  %s0 = inlined_call_operand.vmem [shape: f32[16,32], index: 0, kind: input, shape index: {}]
  %s1 = inlined_call_operand.vmem [shape: f32[32,64], index: 1, kind: input, shape index: {}]
  %s2 = inlined_call_operand.vmem [shape: f32[1,64], index: 2, kind: input, shape index: {}]
  %s3 = inlined_call_operand.vmem [shape: f32[16,64], index: 3, kind: output, shape index: {}]
  %s4 = sld [smem:[#allocation0]]
  $region30: #{decoder_forward.25} parent=0
    _
  %s6 = ssub.s32 1, %s4
  %s7 = scalar_select 0, %s6, %s4
  // Predicated region
  $region2: #{decoder_forward.25} parent=0 // pred_check
    _
  $region3: #{decoder_forward.25} parent=0 // pred_check_branch
    %9 = sbr.rel (0) target = $region5
  $region4: #{decoder_forward.25} parent=0 // pred_region
    _
  $region5: #{decoder_forward.25} parent=0 // pred_fallthru
    _
  // Predicated region
  $region6: #{decoder_forward.25} parent=0 // pred_check
    _
  $region7: #{decoder_forward.25} parent=0 // pred_check_branch
    %11 = sbr.rel (0) target = $region9
  $region8: #{decoder_forward.25} parent=0 // pred_region
    _
  $region9: #{decoder_forward.25} parent=0 // pred_fallthru
    _
  // Predicated region
  $region10: #{decoder_forward.25} parent=0 // pred_check
    _
  $region11: #{decoder_forward.25} parent=0 // pred_check_branch
    %13 = sbr.rel (0) target = $region13
  $region12: #{decoder_forward.25} parent=0 // pred_region
    _
  $region13: #{decoder_forward.25} parent=0 // pred_fallthru
    _
  %p15 = scmp.eq.s32.totalorder 0, 0
  // Predicated region
  $region14: #{decoder_forward.25} parent=0 // pred_check
    %p16 = pneg %p15
  $region15: #{decoder_forward.25} parent=0 // pred_check_branch
    %18 = sbr.rel (%p16) target = $region17
  $region16: #{decoder_forward.25} parent=0 // pred_region
    %vm19 = vcmask 523264
    %20 = vst.msk [vmem:[#allocation2] sm:$0xff] %vm19, 0.0
    %21 = vst.msk [vmem:[#allocation2 + $0x8] sm:$0xff] %vm19, 0.0
  $region17: #{decoder_forward.25} parent=0 // pred_fallthru
    _
  %v22 = vld [vmem:[#allocation2] sm:$0xff]
  %v23 = vld [vmem:[#allocation2 + $0x8] sm:$0xff]
  %v24 = vld [vmem:[%s0] sm:$0xff]
  %v25 = vld [vmem:[%s0 + $0x8] sm:$0xff]
  %v26 = vpack.c.bf16 %v25, %v24
  %v27 = vld [vmem:[%s1] sm:$0xff]
  %v28 = vld [vmem:[%s1 + $0x8] sm:$0xff]
  %v29 = vld [vmem:[%s1 + $0x10] sm:$0xff]
  %v30 = vld [vmem:[%s1 + $0x18] sm:$0xff]
  %v31 = vpack.c.bf16 %v28, %v27
  %v32 = vpack.c.bf16 %v30, %v29
  %vm33 = vcmask 261120
  %v35 = vsel %vm33, %v26, 0
  %37 = vmatprep.subr.bf16.mxu0 0
  %38 = vmatpush1.bf16.msra.mxu0 %v31
  %39 = vmatprep.subr.bf16.mxu0 0
  %40 = vmatpush1.bf16.msra.mxu0 %v32
  %41 = vmatprep.subr.bf16.mxu0 0
  %42 = vmatpush1.bf16.msra.mxu0 0
  %43 = vmatprep.subr.bf16.mxu0 0
  %44 = vmatpush1.bf16.msra.mxu0 0
  %45 = vmatprep.subr.bf16.mxu0 0
  %46 = vmatpush1.bf16.msra.mxu0 0
  %47 = vmatprep.subr.bf16.mxu0 0
  %48 = vmatpush1.bf16.msra.mxu0 0
  %49 = vmatprep.subr.bf16.mxu0 0
  %50 = vmatpush1.bf16.msra.mxu0 0
  %51 = vmatprep.subr.bf16.mxu0 0
  %52 = vmatpush1.bf16.msra.mxu0 0
  %53 = vmatprep.subr.bf16.mxu0 0
  %54 = vmatpush1.bf16.msra.mxu0 0
  %55 = vmatprep.subr.bf16.mxu0 0
  %56 = vmatpush1.bf16.msra.mxu0 0
  %57 = vmatprep.subr.bf16.mxu0 0
  %58 = vmatpush1.bf16.msra.mxu0 0
  %59 = vmatprep.subr.bf16.mxu0 0
  %60 = vmatpush1.bf16.msra.mxu0 0
  %61 = vmatprep.subr.bf16.mxu0 0
  %62 = vmatpush1.bf16.msra.mxu0 0
  %63 = vmatprep.subr.bf16.mxu0 0
  %64 = vmatpush1.bf16.msra.mxu0 0
  %65 = vmatprep.subr.bf16.mxu0 0
  %66 = vmatpush1.bf16.msra.mxu0 0
  %67 = vmatprep.subr.bf16.mxu0 0
  %68 = vmatpush1.bf16.msra.mxu0 0
  %69 = vmatprep.mubr.bf16.mxu0 0
  %70 = vmatmul.mubr.bf16.gmra.mrb[0].mxu0 %v35
  %v71 = vpop.f32.mrb[0].mxu0
  %v72 = vadd.f32 0.0, %v71
  %v73 = vpop.f32.mrb[0].mxu0
  %v74 = vpop.f32.mrb[0].mxu0
  %v75 = vadd.f32 0.0, %v74
  %v76 = vpop.f32.mrb[0].mxu0
  %77 = vdwg.mxu0
  %v78 = vadd.f32 %v22, %v72
  %v79 = vadd.f32 %v23, %v75
  %vm80 = vcmask 523264
  %81 = vst.msk [vmem:[#allocation2] sm:$0xff] %vm80, %v78
  %82 = vst.msk [vmem:[#allocation2 + $0x8] sm:$0xff] %vm80, %v79
  // Predicated region
  $region18: #{decoder_forward.25} parent=0 // pred_check
    %p83 = pneg %p15
  $region19: #{decoder_forward.25} parent=0 // pred_check_branch
    %85 = sbr.rel (%p83) target = $region21
  $region20: #{decoder_forward.25} parent=0 // pred_region
    %v86 = vld [vmem:[#allocation2] sm:$0xff]
    %v87 = vld [vmem:[#allocation2 + $0x8] sm:$0xff]
    %v88 = vld [vmem:[%s2] sm:$0x1]
    %v90 = vlaneseq
    %v91 = vshrl.u32 %v90, 7
    %v92 = vsub.s32 0, %v91
    %v93 = vrot.slane %v88, %v92
    %v95 = vadd.f32 %v86, %v93
    %v96 = vadd.f32 %v87, %v93
    %v97 = vmax.f32 %v95, 0.0
    %v98 = vmax.f32 %v96, 0.0
    %99 = vst.msk [vmem:[%s3] sm:$0xff] %vm80, %v97
    %100 = vst.msk [vmem:[%s3 + $0x8] sm:$0xff] %vm80, %v98
  $region21: #{decoder_forward.25} parent=0 // pred_fallthru
    _
  // Predicated region
  $region22: #{decoder_forward.25} parent=0 // pred_check
    _
  $region23: #{decoder_forward.25} parent=0 // pred_check_branch
    %102 = sbr.rel (0) target = $region25
  $region24: #{decoder_forward.25} parent=0 // pred_region
    _
  $region25: #{decoder_forward.25} parent=0 // pred_fallthru
    _
  // Predicated region
  $region26: #{decoder_forward.25} parent=0 // pred_check
    _
  $region27: #{decoder_forward.25} parent=0 // pred_check_branch
    %104 = sbr.rel (0) target = $region29
  $region28: #{decoder_forward.25} parent=0 // pred_region
    _
  $region29: #{decoder_forward.25} parent=0 // pred_fallthru
    _

// kernel: decoder_forward.26
$region0: #{decoder_forward.26}
  #allocation0 [shape = 'u32[]', space=smem, size = 0x4, offset = 0x4, fixed_abs, tag = 'smem constant byte address 0x4 - core index']
  #allocation1 [shape = 'u32[144,128]{1,0:T(1,128)}', space=vmem, size = 0x12000, scoped, tag = 'internal scratch']
  #allocation2 [shape = 'f32[16,32]{1,0:T(8,128)}', space=vmem, size = 0x2000, scoped, tag = 'scratch operand']
  %s0 = inlined_call_operand.vmem [shape: f32[16,64], index: 0, kind: input, shape index: {}]
  %s1 = inlined_call_operand.vmem [shape: f32[64,32], index: 1, kind: input, shape index: {}]
  %s2 = inlined_call_operand.vmem [shape: f32[1,32], index: 2, kind: input, shape index: {}]
  %s3 = inlined_call_operand.vmem [shape: f32[16,32], index: 3, kind: input, shape index: {}]
  %s4 = inlined_call_operand.vmem [shape: f32[1,32], index: 4, kind: input, shape index: {}]
  %s5 = inlined_call_operand.vmem [shape: f32[1,32], index: 5, kind: input, shape index: {}]
  %s6 = inlined_call_operand.vmem [shape: f32[16,32], index: 6, kind: output, shape index: {}]
  %s7 = sld [smem:[#allocation0]]
  $region42: #{decoder_forward.26} parent=0
    _
  %s9 = ssub.s32 1, %s7
  %s10 = scalar_select 0, %s9, %s7
  // Predicated region
  $region2: #{decoder_forward.26} parent=0 // pred_check
    _
  $region3: #{decoder_forward.26} parent=0 // pred_check_branch
    %12 = sbr.rel (0) target = $region5
  $region4: #{decoder_forward.26} parent=0 // pred_region
    _
  $region5: #{decoder_forward.26} parent=0 // pred_fallthru
    _
  // Predicated region
  $region6: #{decoder_forward.26} parent=0 // pred_check
    _
  $region7: #{decoder_forward.26} parent=0 // pred_check_branch
    %14 = sbr.rel (0) target = $region9
  $region8: #{decoder_forward.26} parent=0 // pred_region
    _
  $region9: #{decoder_forward.26} parent=0 // pred_fallthru
    _
  // Predicated region
  $region10: #{decoder_forward.26} parent=0 // pred_check
    _
  $region11: #{decoder_forward.26} parent=0 // pred_check_branch
    %16 = sbr.rel (0) target = $region13
  $region12: #{decoder_forward.26} parent=0 // pred_region
    _
  $region13: #{decoder_forward.26} parent=0 // pred_fallthru
    _
  // Predicated region
  $region14: #{decoder_forward.26} parent=0 // pred_check
    _
  $region15: #{decoder_forward.26} parent=0 // pred_check_branch
    %18 = sbr.rel (0) target = $region17
  $region16: #{decoder_forward.26} parent=0 // pred_region
    _
  $region17: #{decoder_forward.26} parent=0 // pred_fallthru
    _
  // Predicated region
  $region18: #{decoder_forward.26} parent=0 // pred_check
    _
  $region19: #{decoder_forward.26} parent=0 // pred_check_branch
    %20 = sbr.rel (0) target = $region21
  $region20: #{decoder_forward.26} parent=0 // pred_region
    _
  $region21: #{decoder_forward.26} parent=0 // pred_fallthru
    _
  // Predicated region
  $region22: #{decoder_forward.26} parent=0 // pred_check
    _
  $region23: #{decoder_forward.26} parent=0 // pred_check_branch
    %22 = sbr.rel (0) target = $region25
  $region24: #{decoder_forward.26} parent=0 // pred_region
    _
  $region25: #{decoder_forward.26} parent=0 // pred_fallthru
    _
  %p24 = scmp.eq.s32.totalorder 0, 0
  // Predicated region
  $region26: #{decoder_forward.26} parent=0 // pred_check
    %p25 = pneg %p24
  $region27: #{decoder_forward.26} parent=0 // pred_check_branch
    %27 = sbr.rel (%p25) target = $region29
  $region28: #{decoder_forward.26} parent=0 // pred_region
    %vm28 = vcmask 261120
    %29 = vst.msk [vmem:[#allocation2] sm:$0xff] %vm28, 0.0
    %30 = vst.msk [vmem:[#allocation2 + $0x8] sm:$0xff] %vm28, 0.0
  $region29: #{decoder_forward.26} parent=0 // pred_fallthru
    _
  %v31 = vld [vmem:[#allocation2] sm:$0xff]
  %v32 = vld [vmem:[#allocation2 + $0x8] sm:$0xff]
  %v33 = vld [vmem:[%s0] sm:$0xff]
  %v34 = vld [vmem:[%s0 + $0x8] sm:$0xff]
  %v35 = vpack.c.bf16 %v34, %v33
  %v36 = vld [vmem:[%s1] sm:$0xff]
  %v37 = vld [vmem:[%s1 + $0x8] sm:$0xff]
  %v38 = vld [vmem:[%s1 + $0x10] sm:$0xff]
  %v39 = vld [vmem:[%s1 + $0x18] sm:$0xff]
  %v40 = vld [vmem:[%s1 + $0x20] sm:$0xff]
  %v41 = vld [vmem:[%s1 + $0x28] sm:$0xff]
  %v42 = vld [vmem:[%s1 + $0x30] sm:$0xff]
  %v43 = vld [vmem:[%s1 + $0x38] sm:$0xff]
  %v44 = vpack.c.bf16 %v37, %v36
  %v45 = vpack.c.bf16 %v39, %v38
  %v46 = vpack.c.bf16 %v41, %v40
  %v47 = vpack.c.bf16 %v43, %v42
  %vm48 = vcmask 523264
  %v50 = vsel %vm48, %v35, 0
  %52 = vmatprep.subr.bf16.mxu0 0
  %53 = vmatpush1.bf16.msra.mxu0 %v44
  %54 = vmatprep.subr.bf16.mxu0 0
  %55 = vmatpush1.bf16.msra.mxu0 %v45
  %56 = vmatprep.subr.bf16.mxu0 0
  %57 = vmatpush1.bf16.msra.mxu0 %v46
  %58 = vmatprep.subr.bf16.mxu0 0
  %59 = vmatpush1.bf16.msra.mxu0 %v47
  %60 = vmatprep.subr.bf16.mxu0 0
  %61 = vmatpush1.bf16.msra.mxu0 0
  %62 = vmatprep.subr.bf16.mxu0 0
  %63 = vmatpush1.bf16.msra.mxu0 0
  %64 = vmatprep.subr.bf16.mxu0 0
  %65 = vmatpush1.bf16.msra.mxu0 0
  %66 = vmatprep.subr.bf16.mxu0 0
  %67 = vmatpush1.bf16.msra.mxu0 0
  %68 = vmatprep.subr.bf16.mxu0 0
  %69 = vmatpush1.bf16.msra.mxu0 0
  %70 = vmatprep.subr.bf16.mxu0 0
  %71 = vmatpush1.bf16.msra.mxu0 0
  %72 = vmatprep.subr.bf16.mxu0 0
  %73 = vmatpush1.bf16.msra.mxu0 0
  %74 = vmatprep.subr.bf16.mxu0 0
  %75 = vmatpush1.bf16.msra.mxu0 0
  %76 = vmatprep.subr.bf16.mxu0 0
  %77 = vmatpush1.bf16.msra.mxu0 0
  %78 = vmatprep.subr.bf16.mxu0 0
  %79 = vmatpush1.bf16.msra.mxu0 0
  %80 = vmatprep.subr.bf16.mxu0 0
  %81 = vmatpush1.bf16.msra.mxu0 0
  %82 = vmatprep.subr.bf16.mxu0 0
  %83 = vmatpush1.bf16.msra.mxu0 0
  %84 = vmatprep.mubr.bf16.mxu0 0
  %85 = vmatmul.mubr.bf16.gmra.mrb[0].mxu0 %v50
  %v86 = vpop.f32.mrb[0].mxu0
  %v87 = vadd.f32 0.0, %v86
  %v88 = vpop.f32.mrb[0].mxu0
  %v89 = vpop.f32.mrb[0].mxu0
  %v90 = vadd.f32 0.0, %v89
  %v91 = vpop.f32.mrb[0].mxu0
  %92 = vdwg.mxu0
  %v93 = vadd.f32 %v31, %v87
  %v94 = vadd.f32 %v32, %v90
  %vm95 = vcmask 261120
  %96 = vst.msk [vmem:[#allocation2] sm:$0xff] %vm95, %v93
  %97 = vst.msk [vmem:[#allocation2 + $0x8] sm:$0xff] %vm95, %v94
  // Predicated region
  $region30: #{decoder_forward.26} parent=0 // pred_check
    %p98 = pneg %p24
  $region31: #{decoder_forward.26} parent=0 // pred_check_branch
    %100 = sbr.rel (%p98) target = $region33
  $region32: #{decoder_forward.26} parent=0 // pred_region
    %v101 = vld [vmem:[#allocation2] sm:$0xff]
    %v102 = vld [vmem:[#allocation2 + $0x8] sm:$0xff]
    %v103 = vld [vmem:[%s2] sm:$0x1]
    %v105 = vlaneseq
    %v106 = vshrl.u32 %v105, 7
    %v107 = vsub.s32 0, %v106
    %v108 = vrot.slane %v103, %v107
    %v110 = vadd.f32 %v101, %v108
    %v111 = vadd.f32 %v102, %v108
    %v112 = vld [vmem:[%s3] sm:$0xff]
    %v113 = vld [vmem:[%s3 + $0x8] sm:$0xff]
    %v114 = vadd.f32 %v110, %v112
    %v115 = vadd.f32 %v111, %v113
    %v116 = vsel %vm95, %v114, 0.0
    %117 = vadd.xlane.f32.xlu0 %v116
    %v118 = vpop.xlane.xlu0 %117
    %v119 = vsel %vm95, %v115, 0.0
    %120 = vadd.xlane.f32.xlu0 %v119
    %v121 = vpop.xlane.xlu0 %120
    %v122 = vrcp.pop 32.0
    %v123 = vmul.f32 %v118, %v122
    %v124 = vmul.f32 %v121, %v122
    %v125 = vsub.f32 %v114, %v123
    %v126 = vsub.f32 %v115, %v124
    %v127 = vmul.f32 %v125, %v125
    %v128 = vmul.f32 %v126, %v126
    %v129 = vsel %vm95, %v127, 0.0
    %130 = vadd.xlane.f32.xlu0 %v129
    %v131 = vpop.xlane.xlu0 %130
    %v132 = vsel %vm95, %v128, 0.0
    %133 = vadd.xlane.f32.xlu0 %v132
    %v134 = vpop.xlane.xlu0 %133
    %v135 = vmul.f32 %v131, %v122
    %v136 = vmul.f32 %v134, %v122
    %v137 = vadd.f32 %v135, 1e-05
    %v138 = vadd.f32 %v136, 1e-05
    %v139 = vrsqrt.pop %v137
    %v140 = vrsqrt.pop %v138
    %v141 = vmul.f32 %v125, %v139
    %v142 = vmul.f32 %v126, %v140
    %v143 = vld [vmem:[%s4] sm:$0x1]
    %v145 = vlaneseq
    %v146 = vshrl.u32 %v145, 7
    %v147 = vsub.s32 0, %v146
    %v148 = vrot.slane %v143, %v147
    %v150 = vmul.f32 %v141, %v148
    %v151 = vmul.f32 %v142, %v148
    %v152 = vld [vmem:[%s5] sm:$0x1]
    %v154 = vlaneseq
    %v155 = vshrl.u32 %v154, 7
    %v156 = vsub.s32 0, %v155
    %v157 = vrot.slane %v152, %v156
    %v159 = vadd.f32 %v150, %v157
    %v160 = vadd.f32 %v151, %v157
    %161 = vst.msk [vmem:[%s6] sm:$0xff] %vm95, %v159
    %162 = vst.msk [vmem:[%s6 + $0x8] sm:$0xff] %vm95, %v160
  $region33: #{decoder_forward.26} parent=0 // pred_fallthru
    _
  // Predicated region
  $region34: #{decoder_forward.26} parent=0 // pred_check
    _
  $region35: #{decoder_forward.26} parent=0 // pred_check_branch
    %164 = sbr.rel (0) target = $region37
  $region36: #{decoder_forward.26} parent=0 // pred_region
    _
  $region37: #{decoder_forward.26} parent=0 // pred_fallthru
    _
  // Predicated region
  $region38: #{decoder_forward.26} parent=0 // pred_check
    _
  $region39: #{decoder_forward.26} parent=0 // pred_check_branch
    %166 = sbr.rel (0) target = $region41
  $region40: #{decoder_forward.26} parent=0 // pred_region
    _
  $region41: #{decoder_forward.26} parent=0 // pred_fallthru
    _

// kernel: decoder_forward.23
$region0: #{decoder_forward.23}
  #allocation0 [shape = 'u32[]', space=smem, size = 0x4, offset = 0x4, fixed_abs, tag = 'smem constant byte address 0x4 - core index']
  #allocation1 [shape = 'u32[144,128]{1,0:T(1,128)}', space=vmem, size = 0x12000, scoped, tag = 'internal scratch']
  %s0 = inlined_call_operand.vmem [shape: f32[2,4,8,8], index: 0, kind: input, shape index: {}]
  %s1 = inlined_call_operand.vmem [shape: f32[2,4,8,8], index: 1, kind: input, shape index: {}]
  %s2 = inlined_call_operand.vmem [shape: f32[2,4,8,8], index: 2, kind: input, shape index: {}]
  %s3 = inlined_call_operand.vmem [shape: f32[2,4,8,8], index: 3, kind: output, shape index: {}]
  %s4 = sld [smem:[#allocation0]]
  $region45: #{decoder_forward.23} parent=0
    _
  %s6 = ssub.s32 1, %s4
  %s7 = scalar_select 0, %s6, %s4
  loop: start=0, step=1, limit=4
  $region2: #{decoder_forward.23} parent=0 // loop_pre_header
    _
  $region3: #{decoder_forward.23} parent=0 // loop_header
    %s9 = sphi 0, %s13
    %p10 = scmp.ge.s32.totalorder %s9, 4
    %s16 = sphi 0, %s28
    %s17 = sphi 0, %s24
    %s18 = sphi 0, %s16
    %s19 = sphi 0, %s17
    %s20 = sphi 0, %s18
    %s21 = sphi 0, %s19
    %s33 = sphi 0, %s35
    %s36 = sphi 0, %s33
    %s37 = sphi 0, %s36
    %s53 = sphi 0, %s37
    %s59 = sphi 0, %s61
    %s62 = sphi 0, %s59
    %s63 = sphi 0, %s62
    %s79 = sphi 0, %s63
    %s85 = sphi 0, %s87
    %s88 = sphi 0, %s85
    %s89 = sphi 0, %s88
    %s105 = sphi 0, %s89
    %s113 = sphi 0, %s115
    %s116 = sphi 0, %s113
    %s117 = sphi 0, %s116
    %s133 = sphi 0, %s117
  $region4: #{decoder_forward.23} parent=0 // loop_header_branch
    %12 = sbr.rel (%p10) target = $region8
  $region5: #{decoder_forward.23} parent=0 // loop_body
    %s14 = ssub.s32 %s9, 1
    %s15 = ssub.s32 %s9, 2
    %s22 = sadd.s32 1, %s17
    %p23 = scmp.ge.s32.totalorder %s22, 1
    %s24 = scalar_select %p23, 0, %s22
    %s25 = sadd.s32 1, %s16
    %s26 = scalar_select %p23, %s25, %s16
    %p27 = scmp.ge.s32.totalorder %s26, 2
    %s28 = scalar_select %p27, 0, %s26
    %s29 = ssub.s32 %s16, %s28
    %s30 = ssub.s32 %s17, %s24
    %s31 = sor.u32 %s29, %s30
    %p32 = scmp.eq.s32.totalorder %s31, 0
    %s34 = sadd.s32 %s33, 1
    %s35 = scalar_select %p32, %s33, %s34
    %p38 = pneg %p32
    %p39 = scmp.eq.s32.totalorder %s9, 1
    %p40 = por %p38, %p39
    %p41 = scmp.ne.s32.totalorder %s33, %s36
    %p42 = scmp.eq.s32.totalorder %s9, 0
    %p43 = por %p41, %p42
    %p44 = scmp.ne.s32.totalorder %s33, %s36
    %p45 = scmp.eq.s32.totalorder %s14, 1
    %p46 = por %p44, %p45
    %p47 = scmp.ne.s32.totalorder %s36, %s37
    %p48 = scmp.eq.s32.totalorder %s14, 0
    %p49 = por %p47, %p48
    %p50 = scmp.ne.s32.totalorder %s36, %s37
    %p51 = scmp.eq.s32.totalorder %s15, 1
    %p52 = por %p50, %p51
    %p54 = scmp.ne.s32.totalorder %s37, %s53
    %p55 = scmp.eq.s32.totalorder %s15, 0
    %p56 = por %p54, %p55
    %s57 = ssub.s32 %s16, %s28
    %p58 = scmp.eq.s32.totalorder %s57, 0
    %s60 = sadd.s32 %s59, 1
    %s61 = scalar_select %p58, %s59, %s60
    %p64 = pneg %p58
    %p65 = scmp.eq.s32.totalorder %s9, 1
    %p66 = por %p64, %p65
    %p67 = scmp.ne.s32.totalorder %s59, %s62
    %p68 = scmp.eq.s32.totalorder %s9, 0
    %p69 = por %p67, %p68
    %p70 = scmp.ne.s32.totalorder %s59, %s62
    %p71 = scmp.eq.s32.totalorder %s14, 1
    %p72 = por %p70, %p71
    %p73 = scmp.ne.s32.totalorder %s62, %s63
    %p74 = scmp.eq.s32.totalorder %s14, 0
    %p75 = por %p73, %p74
    %p76 = scmp.ne.s32.totalorder %s62, %s63
    %p77 = scmp.eq.s32.totalorder %s15, 1
    %p78 = por %p76, %p77
    %p80 = scmp.ne.s32.totalorder %s63, %s79
    %p81 = scmp.eq.s32.totalorder %s15, 0
    %p82 = por %p80, %p81
    %s83 = ssub.s32 %s16, %s28
    %p84 = scmp.eq.s32.totalorder %s83, 0
    %s86 = sadd.s32 %s85, 1
    %s87 = scalar_select %p84, %s85, %s86
    %p90 = pneg %p84
    %p91 = scmp.eq.s32.totalorder %s9, 1
    %p92 = por %p90, %p91
    %p93 = scmp.ne.s32.totalorder %s85, %s88
    %p94 = scmp.eq.s32.totalorder %s9, 0
    %p95 = por %p93, %p94
    %p96 = scmp.ne.s32.totalorder %s85, %s88
    %p97 = scmp.eq.s32.totalorder %s14, 1
    %p98 = por %p96, %p97
    %p99 = scmp.ne.s32.totalorder %s88, %s89
    %p100 = scmp.eq.s32.totalorder %s14, 0
    %p101 = por %p99, %p100
    %p102 = scmp.ne.s32.totalorder %s88, %s89
    %p103 = scmp.eq.s32.totalorder %s15, 1
    %p104 = por %p102, %p103
    %p106 = scmp.ne.s32.totalorder %s89, %s105
    %p107 = scmp.eq.s32.totalorder %s15, 0
    %p108 = por %p106, %p107
    %s109 = ssub.s32 %s16, %s28
    %s110 = ssub.s32 %s17, %s24
    %s111 = sor.u32 %s109, %s110
    %p112 = scmp.eq.s32.totalorder %s111, 0
    %s114 = sadd.s32 %s113, 1
    %s115 = scalar_select %p112, %s113, %s114
    %p118 = pneg %p112
    %p119 = scmp.eq.s32.totalorder %s9, 1
    %p120 = por %p118, %p119
    %p121 = scmp.ne.s32.totalorder %s113, %s116
    %p122 = scmp.eq.s32.totalorder %s9, 0
    %p123 = por %p121, %p122
    %p124 = scmp.ne.s32.totalorder %s113, %s116
    %p125 = scmp.eq.s32.totalorder %s14, 1
    %p126 = por %p124, %p125
    %p127 = scmp.ne.s32.totalorder %s116, %s117
    %p128 = scmp.eq.s32.totalorder %s14, 0
    %p129 = por %p127, %p128
    %p130 = scmp.ne.s32.totalorder %s116, %s117
    %p131 = scmp.eq.s32.totalorder %s15, 1
    %p132 = por %p130, %p131
    %p134 = scmp.ne.s32.totalorder %s117, %s133
    %p135 = scmp.eq.s32.totalorder %s15, 0
    %p136 = por %p134, %p135
    %p137 = scmp.le.s32.totalorder 1, %s9
    %p138 = scmp.lt.s32.totalorder %s9, 3
    %p139 = pnand %p137, %p138
    %p140 = pneg %p139
    // Predicated region
    $region9: #{decoder_forward.23} parent=5 // pred_check
      _
    $region10: #{decoder_forward.23} parent=5 // pred_check_branch
      %142 = sbr.rel (%p139) target = $region12
    $region11: #{decoder_forward.23} parent=5 // pred_region
      %s143 = ssub.s32 %s9, 1
    $region12: #{decoder_forward.23} parent=5 // pred_fallthru
      _
    %p144 = scmp.lt.s32.totalorder %s9, 2
    // Predicated region
    $region13: #{decoder_forward.23} parent=5 // pred_check
      %p145 = pneg %p144
    $region14: #{decoder_forward.23} parent=5 // pred_check_branch
      %147 = sbr.rel (%p145) target = $region16
    $region15: #{decoder_forward.23} parent=5 // pred_region
      // Predicated region
      $region17: #{decoder_forward.23} parent=15 // pred_check
        %p148 = pneg %p43
      $region18: #{decoder_forward.23} parent=15 // pred_check_branch
        %150 = sbr.rel (%p148) target = $region20
      $region19: #{decoder_forward.23} parent=15 // pred_region
        %p151 = scmp.lt.s32.totalorder %s16, 1
        %s152 = scalar_select %p151, %s16, 1
        %p153 = scmp.lt.s32.totalorder %s17, 0
        %s154 = scalar_select %p153, %s17, 0
        %s155 = smul.addr %s152, 4
        %s156 = sadd.s32 %s154, %s155
        %s157 = smul.addr %s156, 8
        %s158 = scalar_lea.vmem %s0, %s157
      $region20: #{decoder_forward.23} parent=15 // pred_fallthru
        _
      // Predicated region
      $region21: #{decoder_forward.23} parent=15 // pred_check
        %p159 = pneg %p69
      $region22: #{decoder_forward.23} parent=15 // pred_check_branch
        %161 = sbr.rel (%p159) target = $region24
      $region23: #{decoder_forward.23} parent=15 // pred_region
        %p162 = scmp.lt.s32.totalorder %s16, 1
        %s163 = scalar_select %p162, %s16, 1
        %s164 = smul.addr %s163, 4
        %s165 = smul.addr %s164, 8
        %s166 = scalar_lea.vmem %s1, %s165
      $region24: #{decoder_forward.23} parent=15 // pred_fallthru
        _
      // Predicated region
      $region25: #{decoder_forward.23} parent=15 // pred_check
        %p167 = pneg %p95
      $region26: #{decoder_forward.23} parent=15 // pred_check_branch
        %169 = sbr.rel (%p167) target = $region28
      $region27: #{decoder_forward.23} parent=15 // pred_region
        %p170 = scmp.lt.s32.totalorder %s16, 1
        %s171 = scalar_select %p170, %s16, 1
        %s172 = smul.addr %s171, 4
        %s173 = smul.addr %s172, 8
        %s174 = scalar_lea.vmem %s2, %s173
      $region28: #{decoder_forward.23} parent=15 // pred_fallthru
        _
    $region16: #{decoder_forward.23} parent=5 // pred_fallthru
      _
    %p175 = scmp.le.s32.totalorder 1, %s9
    %p176 = scmp.lt.s32.totalorder %s9, 3
    %p177 = pnand %p175, %p176
    %p178 = pneg %p177
    // Predicated region
    $region29: #{decoder_forward.23} parent=5 // pred_check
      _
    $region30: #{decoder_forward.23} parent=5 // pred_check_branch
      %180 = sbr.rel (%p177) target = $region32
    $region31: #{decoder_forward.23} parent=5 // pred_region
      %s181 = ssub.s32 %s9, 1
      %p182 = scmp.lt.s32.totalorder %s18, 1
      %s183 = scalar_select %p182, %s18, 1
      %p184 = scmp.lt.s32.totalorder %s19, 0
      %s185 = scalar_select %p184, %s19, 0
      %s186 = smul.addr %s183, 4
      %s187 = sadd.s32 %s185, %s186
      %s188 = smul.addr %s187, 8
      %s189 = scalar_lea.vmem %s0, %s188
      %p190 = pneg %p49
      %p191 = pneg %p46
      %p192 = scmp.lt.s32.totalorder %s18, 1
      %s193 = scalar_select %p192, %s18, 1
      %s194 = smul.addr %s193, 4
      %s195 = smul.addr %s194, 8
      %s196 = scalar_lea.vmem %s1, %s195
      %p197 = pneg %p75
      %p198 = pneg %p72
      %p199 = scmp.lt.s32.totalorder %s18, 1
      %s200 = scalar_select %p199, %s18, 1
      %s201 = smul.addr %s200, 4
      %s202 = smul.addr %s201, 8
      %s203 = scalar_lea.vmem %s2, %s202
      %p204 = pneg %p101
      %p205 = pneg %p98
      %p206 = pneg %p129
      %p207 = pneg %p126
      %p208 = scmp.lt.s32.totalorder %s18, 1
      %s209 = scalar_select %p208, %s18, 1
      %p210 = scmp.lt.s32.totalorder %s19, 0
      %s211 = scalar_select %p210, %s19, 0
      %s212 = smul.addr %s209, 4
      %s213 = sadd.s32 %s211, %s212
      %s214 = smul.addr %s213, 8
      %s215 = scalar_lea.vmem %s3, %s214
      %p216 = scmp.lt.s32.totalorder %s18, 1
      %s217 = scalar_select %p216, %s18, 1
      %p218 = scmp.lt.s32.totalorder %s19, 0
      %s219 = scalar_select %p218, %s19, 0
      %s220 = smul.addr %s217, 4
      %s221 = sadd.s32 %s219, %s220
      %s222 = smul.addr %s221, 8
      %s223 = scalar_lea.vmem %s0, %s222
      %p224 = scmp.lt.s32.totalorder %s18, 1
      %s225 = scalar_select %p224, %s18, 1
      %s226 = smul.addr %s225, 4
      %s227 = smul.addr %s226, 8
      %s228 = scalar_lea.vmem %s1, %s227
      %p229 = scmp.lt.s32.totalorder %s18, 1
      %s230 = scalar_select %p229, %s18, 1
      %s231 = smul.addr %s230, 4
      %s232 = smul.addr %s231, 8
      %s233 = scalar_lea.vmem %s2, %s232
      %p234 = scmp.lt.s32.totalorder %s18, 1
      %s235 = scalar_select %p234, %s18, 1
      %p236 = scmp.lt.s32.totalorder %s19, 0
      %s237 = scalar_select %p236, %s19, 0
      %s238 = smul.addr %s235, 4
      %s239 = sadd.s32 %s237, %s238
      %s240 = smul.addr %s239, 8
      %s241 = scalar_lea.vmem %s3, %s240
      %v243 = vld [vmem:[%s223] sm:$0xff]
      %v244 = vld [vmem:[%s223 + $0x8] sm:$0xff]
      %v245 = vld [vmem:[%s223 + $0x10] sm:$0xff]
      %v246 = vld [vmem:[%s223 + $0x18] sm:$0xff]
      %v247 = vmul.f32 %v243, 0.35355338
      %v248 = vmul.f32 %v244, 0.35355338
      %v249 = vmul.f32 %v245, 0.35355338
      %v250 = vmul.f32 %v246, 0.35355338
      %v251 = vpack.c.bf16 %v247, %v247
      %v252 = vpack.c.bf16 %v248, %v248
      %v253 = vpack.c.bf16 %v249, %v249
      %v254 = vpack.c.bf16 %v250, %v250
      %v255 = vld [vmem:[%s228] sm:$0xff]
      %v256 = vld [vmem:[%s228 + $0x8] sm:$0xff]
      %v257 = vld [vmem:[%s228 + $0x10] sm:$0xff]
      %v258 = vld [vmem:[%s228 + $0x18] sm:$0xff]
      %v259 = vpack.c.bf16 %v255, %v255
      %v260 = vpack.c.bf16 %v256, %v256
      %v261 = vpack.c.bf16 %v257, %v257
      %v262 = vpack.c.bf16 %v258, %v258
      %v263 = vld [vmem:[%s233] sm:$0xff]
      %v264 = vld [vmem:[%s233 + $0x8] sm:$0xff]
      %v265 = vld [vmem:[%s233 + $0x10] sm:$0xff]
      %v266 = vld [vmem:[%s233 + $0x18] sm:$0xff]
      %v267 = vpack.c.bf16 %v263, %v263
      %v268 = vpack.c.bf16 %v264, %v264
      %v269 = vpack.c.bf16 %v265, %v265
      %v270 = vpack.c.bf16 %v266, %v266
      %vm271 = vcmask 64512
      %v273 = vsel %vm271, %v251, 0
      %v276 = vsel %vm271, %v259, 0
      %278 = vmatprep.subr.bf16.mxu0 0
      %279 = vmatpush1.bf16.xpose.msra.mxu0 %v276
      %280 = vmatprep.subr.bf16.mxu0 0
      %281 = vmatpush1.bf16.xpose.msra.mxu0 0
      %282 = vmatprep.subr.bf16.mxu0 0
      %283 = vmatpush1.bf16.xpose.msra.mxu0 0
      %284 = vmatprep.subr.bf16.mxu0 0
      %285 = vmatpush1.bf16.xpose.msra.mxu0 0
      %286 = vmatprep.subr.bf16.mxu0 0
      %287 = vmatpush1.bf16.xpose.msra.mxu0 0
      %288 = vmatprep.subr.bf16.mxu0 0
      %289 = vmatpush1.bf16.xpose.msra.mxu0 0
      %290 = vmatprep.subr.bf16.mxu0 0
      %291 = vmatpush1.bf16.xpose.msra.mxu0 0
      %292 = vmatprep.subr.bf16.mxu0 0
      %293 = vmatpush1.bf16.xpose.msra.mxu0 0
      %294 = vmatprep.subr.bf16.mxu0 0
      %295 = vmatpush1.bf16.xpose.msra.mxu0 0
      %296 = vmatprep.subr.bf16.mxu0 0
      %297 = vmatpush1.bf16.xpose.msra.mxu0 0
      %298 = vmatprep.subr.bf16.mxu0 0
      %299 = vmatpush1.bf16.xpose.msra.mxu0 0
      %300 = vmatprep.subr.bf16.mxu0 0
      %301 = vmatpush1.bf16.xpose.msra.mxu0 0
      %302 = vmatprep.subr.bf16.mxu0 0
      %303 = vmatpush1.bf16.xpose.msra.mxu0 0
      %304 = vmatprep.subr.bf16.mxu0 0
      %305 = vmatpush1.bf16.xpose.msra.mxu0 0
      %306 = vmatprep.subr.bf16.mxu0 0
      %307 = vmatpush1.bf16.xpose.msra.mxu0 0
      %308 = vmatprep.subr.bf16.mxu0 0
      %309 = vmatpush1.bf16.xpose.msra.mxu0 0
      %310 = vmatprep.mubr.bf16.mxu0 0
      %311 = vmatmul.mubr.bf16.gmra.mrb[0].mxu0 %v273
      %v312 = vpop.f32.mrb[0].mxu0
      %v313 = vadd.f32 0.0, %v312
      %v314 = vpop.f32.mrb[0].mxu0
      %v315 = vpop.f32.mrb[0].mxu0
      %v316 = vpop.f32.mrb[0].mxu0
      %317 = vdwg.mxu0
      %v319 = vsel %vm271, %v252, 0
      %v322 = vsel %vm271, %v260, 0
      %324 = vmatprep.subr.bf16.mxu0 0
      %325 = vmatpush1.bf16.xpose.msra.mxu0 %v322
      %326 = vmatprep.subr.bf16.mxu0 0
      %327 = vmatpush1.bf16.xpose.msra.mxu0 0
      %328 = vmatprep.subr.bf16.mxu0 0
      %329 = vmatpush1.bf16.xpose.msra.mxu0 0
      %330 = vmatprep.subr.bf16.mxu0 0
      %331 = vmatpush1.bf16.xpose.msra.mxu0 0
      %332 = vmatprep.subr.bf16.mxu0 0
      %333 = vmatpush1.bf16.xpose.msra.mxu0 0
      %334 = vmatprep.subr.bf16.mxu0 0
      %335 = vmatpush1.bf16.xpose.msra.mxu0 0
      %336 = vmatprep.subr.bf16.mxu0 0
      %337 = vmatpush1.bf16.xpose.msra.mxu0 0
      %338 = vmatprep.subr.bf16.mxu0 0
      %339 = vmatpush1.bf16.xpose.msra.mxu0 0
      %340 = vmatprep.subr.bf16.mxu0 0
      %341 = vmatpush1.bf16.xpose.msra.mxu0 0
      %342 = vmatprep.subr.bf16.mxu0 0
      %343 = vmatpush1.bf16.xpose.msra.mxu0 0
      %344 = vmatprep.subr.bf16.mxu0 0
      %345 = vmatpush1.bf16.xpose.msra.mxu0 0
      %346 = vmatprep.subr.bf16.mxu0 0
      %347 = vmatpush1.bf16.xpose.msra.mxu0 0
      %348 = vmatprep.subr.bf16.mxu0 0
      %349 = vmatpush1.bf16.xpose.msra.mxu0 0
      %350 = vmatprep.subr.bf16.mxu0 0
      %351 = vmatpush1.bf16.xpose.msra.mxu0 0
      %352 = vmatprep.subr.bf16.mxu0 0
      %353 = vmatpush1.bf16.xpose.msra.mxu0 0
      %354 = vmatprep.subr.bf16.mxu0 0
      %355 = vmatpush1.bf16.xpose.msra.mxu0 0
      %356 = vmatprep.mubr.bf16.mxu0 0
      %357 = vmatmul.mubr.bf16.gmra.mrb[0].mxu0 %v319
      %v358 = vpop.f32.mrb[0].mxu0
      %v359 = vadd.f32 0.0, %v358
      %v360 = vpop.f32.mrb[0].mxu0
      %v361 = vpop.f32.mrb[0].mxu0
      %v362 = vpop.f32.mrb[0].mxu0
      %363 = vdwg.mxu0
      %v365 = vsel %vm271, %v253, 0
      %v368 = vsel %vm271, %v261, 0
      %370 = vmatprep.subr.bf16.mxu0 0
      %371 = vmatpush1.bf16.xpose.msra.mxu0 %v368
      %372 = vmatprep.subr.bf16.mxu0 0
      %373 = vmatpush1.bf16.xpose.msra.mxu0 0
      %374 = vmatprep.subr.bf16.mxu0 0
      %375 = vmatpush1.bf16.xpose.msra.mxu0 0
      %376 = vmatprep.subr.bf16.mxu0 0
      %377 = vmatpush1.bf16.xpose.msra.mxu0 0
      %378 = vmatprep.subr.bf16.mxu0 0
      %379 = vmatpush1.bf16.xpose.msra.mxu0 0
      %380 = vmatprep.subr.bf16.mxu0 0
      %381 = vmatpush1.bf16.xpose.msra.mxu0 0
      %382 = vmatprep.subr.bf16.mxu0 0
      %383 = vmatpush1.bf16.xpose.msra.mxu0 0
      %384 = vmatprep.subr.bf16.mxu0 0
      %385 = vmatpush1.bf16.xpose.msra.mxu0 0
      %386 = vmatprep.subr.bf16.mxu0 0
      %387 = vmatpush1.bf16.xpose.msra.mxu0 0
      %388 = vmatprep.subr.bf16.mxu0 0
      %389 = vmatpush1.bf16.xpose.msra.mxu0 0
      %390 = vmatprep.subr.bf16.mxu0 0
      %391 = vmatpush1.bf16.xpose.msra.mxu0 0
      %392 = vmatprep.subr.bf16.mxu0 0
      %393 = vmatpush1.bf16.xpose.msra.mxu0 0
      %394 = vmatprep.subr.bf16.mxu0 0
      %395 = vmatpush1.bf16.xpose.msra.mxu0 0
      %396 = vmatprep.subr.bf16.mxu0 0
      %397 = vmatpush1.bf16.xpose.msra.mxu0 0
      %398 = vmatprep.subr.bf16.mxu0 0
      %399 = vmatpush1.bf16.xpose.msra.mxu0 0
      %400 = vmatprep.subr.bf16.mxu0 0
      %401 = vmatpush1.bf16.xpose.msra.mxu0 0
      %402 = vmatprep.mubr.bf16.mxu0 0
      %403 = vmatmul.mubr.bf16.gmra.mrb[0].mxu0 %v365
      %v404 = vpop.f32.mrb[0].mxu0
      %v405 = vadd.f32 0.0, %v404
      %v406 = vpop.f32.mrb[0].mxu0
      %v407 = vpop.f32.mrb[0].mxu0
      %v408 = vpop.f32.mrb[0].mxu0
      %409 = vdwg.mxu0
      %v411 = vsel %vm271, %v254, 0
      %v414 = vsel %vm271, %v262, 0
      %416 = vmatprep.subr.bf16.mxu0 0
      %417 = vmatpush1.bf16.xpose.msra.mxu0 %v414
      %418 = vmatprep.subr.bf16.mxu0 0
      %419 = vmatpush1.bf16.xpose.msra.mxu0 0
      %420 = vmatprep.subr.bf16.mxu0 0
      %421 = vmatpush1.bf16.xpose.msra.mxu0 0
      %422 = vmatprep.subr.bf16.mxu0 0
      %423 = vmatpush1.bf16.xpose.msra.mxu0 0
      %424 = vmatprep.subr.bf16.mxu0 0
      %425 = vmatpush1.bf16.xpose.msra.mxu0 0
      %426 = vmatprep.subr.bf16.mxu0 0
      %427 = vmatpush1.bf16.xpose.msra.mxu0 0
      %428 = vmatprep.subr.bf16.mxu0 0
      %429 = vmatpush1.bf16.xpose.msra.mxu0 0
      %430 = vmatprep.subr.bf16.mxu0 0
      %431 = vmatpush1.bf16.xpose.msra.mxu0 0
      %432 = vmatprep.subr.bf16.mxu0 0
      %433 = vmatpush1.bf16.xpose.msra.mxu0 0
      %434 = vmatprep.subr.bf16.mxu0 0
      %435 = vmatpush1.bf16.xpose.msra.mxu0 0
      %436 = vmatprep.subr.bf16.mxu0 0
      %437 = vmatpush1.bf16.xpose.msra.mxu0 0
      %438 = vmatprep.subr.bf16.mxu0 0
      %439 = vmatpush1.bf16.xpose.msra.mxu0 0
      %440 = vmatprep.subr.bf16.mxu0 0
      %441 = vmatpush1.bf16.xpose.msra.mxu0 0
      %442 = vmatprep.subr.bf16.mxu0 0
      %443 = vmatpush1.bf16.xpose.msra.mxu0 0
      %444 = vmatprep.subr.bf16.mxu0 0
      %445 = vmatpush1.bf16.xpose.msra.mxu0 0
      %446 = vmatprep.subr.bf16.mxu0 0
      %447 = vmatpush1.bf16.xpose.msra.mxu0 0
      %448 = vmatprep.mubr.bf16.mxu0 0
      %449 = vmatmul.mubr.bf16.gmra.mrb[0].mxu0 %v411
      %v450 = vpop.f32.mrb[0].mxu0
      %v451 = vadd.f32 0.0, %v450
      %v452 = vpop.f32.mrb[0].mxu0
      %v453 = vpop.f32.mrb[0].mxu0
      %v454 = vpop.f32.mrb[0].mxu0
      %455 = vdwg.mxu0
      %v456 = vsel %vm271, %v313, -inf
      %457 = vmax.xlane.f32.xlu0 %v456
      %v458 = vpop.xlane.xlu0 %457
      %v459 = vsel %vm271, %v359, -inf
      %460 = vmax.xlane.f32.xlu0 %v459
      %v461 = vpop.xlane.xlu0 %460
      %v462 = vsel %vm271, %v405, -inf
      %463 = vmax.xlane.f32.xlu0 %v462
      %v464 = vpop.xlane.xlu0 %463
      %v465 = vsel %vm271, %v451, -inf
      %466 = vmax.xlane.f32.xlu0 %v465
      %v467 = vpop.xlane.xlu0 %466
      %v468 = vsub.f32 %v313, %v458
      %v469 = vsub.f32 %v359, %v461
      %v470 = vsub.f32 %v405, %v464
      %v471 = vsub.f32 %v451, %v467
      %v472 = vmul.f32 %v468, 1.442695
      %v473 = vpow.pop %v472
      %v474 = vmul.f32 %v469, 1.442695
      %v475 = vpow.pop %v474
      %v476 = vmul.f32 %v470, 1.442695
      %v477 = vpow.pop %v476
      %v478 = vmul.f32 %v471, 1.442695
      %v479 = vpow.pop %v478
      %v480 = vsel %vm271, %v473, 0.0
      %481 = vadd.xlane.f32.xlu0 %v480
      %v482 = vpop.xlane.xlu0 %481
      %v483 = vsel %vm271, %v475, 0.0
      %484 = vadd.xlane.f32.xlu0 %v483
      %v485 = vpop.xlane.xlu0 %484
      %v486 = vsel %vm271, %v477, 0.0
      %487 = vadd.xlane.f32.xlu0 %v486
      %v488 = vpop.xlane.xlu0 %487
      %v489 = vsel %vm271, %v479, 0.0
      %490 = vadd.xlane.f32.xlu0 %v489
      %v491 = vpop.xlane.xlu0 %490
      %v492 = vrcp.pop %v482
      %v493 = vrcp.pop %v485
      %v494 = vrcp.pop %v488
      %v495 = vrcp.pop %v491
      %v496 = vmul.f32 %v473, %v492
      %v497 = vmul.f32 %v475, %v493
      %v498 = vmul.f32 %v477, %v494
      %v499 = vmul.f32 %v479, %v495
      %v500 = vpack.c.bf16 %v496, %v496
      %v501 = vpack.c.bf16 %v497, %v497
      %v502 = vpack.c.bf16 %v498, %v498
      %v503 = vpack.c.bf16 %v499, %v499
      %v505 = vsel %vm271, %v500, 0
      %vm507 = vcmask 1043456
      %v509 = vsel %vm507, %v267, 0
      %511 = vmatprep.subr.bf16.mxu0 0
      %512 = vmatpush1.bf16.msra.mxu0 %v509
      %513 = vmatprep.subr.bf16.mxu0 0
      %514 = vmatpush1.bf16.msra.mxu0 0
      %515 = vmatprep.subr.bf16.mxu0 0
      %516 = vmatpush1.bf16.msra.mxu0 0
      %517 = vmatprep.subr.bf16.mxu0 0
      %518 = vmatpush1.bf16.msra.mxu0 0
      %519 = vmatprep.subr.bf16.mxu0 0
      %520 = vmatpush1.bf16.msra.mxu0 0
      %521 = vmatprep.subr.bf16.mxu0 0
      %522 = vmatpush1.bf16.msra.mxu0 0
      %523 = vmatprep.subr.bf16.mxu0 0
      %524 = vmatpush1.bf16.msra.mxu0 0
      %525 = vmatprep.subr.bf16.mxu0 0
      %526 = vmatpush1.bf16.msra.mxu0 0
      %527 = vmatprep.subr.bf16.mxu0 0
      %528 = vmatpush1.bf16.msra.mxu0 0
      %529 = vmatprep.subr.bf16.mxu0 0
      %530 = vmatpush1.bf16.msra.mxu0 0
      %531 = vmatprep.subr.bf16.mxu0 0
      %532 = vmatpush1.bf16.msra.mxu0 0
      %533 = vmatprep.subr.bf16.mxu0 0
      %534 = vmatpush1.bf16.msra.mxu0 0
      %535 = vmatprep.subr.bf16.mxu0 0
      %536 = vmatpush1.bf16.msra.mxu0 0
      %537 = vmatprep.subr.bf16.mxu0 0
      %538 = vmatpush1.bf16.msra.mxu0 0
      %539 = vmatprep.subr.bf16.mxu0 0
      %540 = vmatpush1.bf16.msra.mxu0 0
      %541 = vmatprep.subr.bf16.mxu0 0
      %542 = vmatpush1.bf16.msra.mxu0 0
      %543 = vmatprep.mubr.bf16.mxu0 0
      %544 = vmatmul.mubr.bf16.gmra.mrb[0].mxu0 %v505
      %v545 = vpop.f32.mrb[0].mxu0
      %v546 = vadd.f32 0.0, %v545
      %v547 = vpop.f32.mrb[0].mxu0
      %v548 = vpop.f32.mrb[0].mxu0
      %v549 = vpop.f32.mrb[0].mxu0
      %550 = vdwg.mxu0
      %v552 = vsel %vm271, %v501, 0
      %v555 = vsel %vm507, %v268, 0
      %557 = vmatprep.subr.bf16.mxu0 0
      %558 = vmatpush1.bf16.msra.mxu0 %v555
      %559 = vmatprep.subr.bf16.mxu0 0
      %560 = vmatpush1.bf16.msra.mxu0 0
      %561 = vmatprep.subr.bf16.mxu0 0
      %562 = vmatpush1.bf16.msra.mxu0 0
      %563 = vmatprep.subr.bf16.mxu0 0
      %564 = vmatpush1.bf16.msra.mxu0 0
      %565 = vmatprep.subr.bf16.mxu0 0
      %566 = vmatpush1.bf16.msra.mxu0 0
      %567 = vmatprep.subr.bf16.mxu0 0
      %568 = vmatpush1.bf16.msra.mxu0 0
      %569 = vmatprep.subr.bf16.mxu0 0
      %570 = vmatpush1.bf16.msra.mxu0 0
      %571 = vmatprep.subr.bf16.mxu0 0
      %572 = vmatpush1.bf16.msra.mxu0 0
      %573 = vmatprep.subr.bf16.mxu0 0
      %574 = vmatpush1.bf16.msra.mxu0 0
      %575 = vmatprep.subr.bf16.mxu0 0
      %576 = vmatpush1.bf16.msra.mxu0 0
      %577 = vmatprep.subr.bf16.mxu0 0
      %578 = vmatpush1.bf16.msra.mxu0 0
      %579 = vmatprep.subr.bf16.mxu0 0
      %580 = vmatpush1.bf16.msra.mxu0 0
      %581 = vmatprep.subr.bf16.mxu0 0
      %582 = vmatpush1.bf16.msra.mxu0 0
      %583 = vmatprep.subr.bf16.mxu0 0
      %584 = vmatpush1.bf16.msra.mxu0 0
      %585 = vmatprep.subr.bf16.mxu0 0
      %586 = vmatpush1.bf16.msra.mxu0 0
      %587 = vmatprep.subr.bf16.mxu0 0
      %588 = vmatpush1.bf16.msra.mxu0 0
      %589 = vmatprep.mubr.bf16.mxu0 0
      %590 = vmatmul.mubr.bf16.gmra.mrb[0].mxu0 %v552
      %v591 = vpop.f32.mrb[0].mxu0
      %v592 = vadd.f32 0.0, %v591
      %v593 = vpop.f32.mrb[0].mxu0
      %v594 = vpop.f32.mrb[0].mxu0
      %v595 = vpop.f32.mrb[0].mxu0
      %596 = vdwg.mxu0
      %v598 = vsel %vm271, %v502, 0
      %v601 = vsel %vm507, %v269, 0
      %603 = vmatprep.subr.bf16.mxu0 0
      %604 = vmatpush1.bf16.msra.mxu0 %v601
      %605 = vmatprep.subr.bf16.mxu0 0
      %606 = vmatpush1.bf16.msra.mxu0 0
      %607 = vmatprep.subr.bf16.mxu0 0
      %608 = vmatpush1.bf16.msra.mxu0 0
      %609 = vmatprep.subr.bf16.mxu0 0
      %610 = vmatpush1.bf16.msra.mxu0 0
      %611 = vmatprep.subr.bf16.mxu0 0
      %612 = vmatpush1.bf16.msra.mxu0 0
      %613 = vmatprep.subr.bf16.mxu0 0
      %614 = vmatpush1.bf16.msra.mxu0 0
      %615 = vmatprep.subr.bf16.mxu0 0
      %616 = vmatpush1.bf16.msra.mxu0 0
      %617 = vmatprep.subr.bf16.mxu0 0
      %618 = vmatpush1.bf16.msra.mxu0 0
      %619 = vmatprep.subr.bf16.mxu0 0
      %620 = vmatpush1.bf16.msra.mxu0 0
      %621 = vmatprep.subr.bf16.mxu0 0
      %622 = vmatpush1.bf16.msra.mxu0 0
      %623 = vmatprep.subr.bf16.mxu0 0
      %624 = vmatpush1.bf16.msra.mxu0 0
      %625 = vmatprep.subr.bf16.mxu0 0
      %626 = vmatpush1.bf16.msra.mxu0 0
      %627 = vmatprep.subr.bf16.mxu0 0
      %628 = vmatpush1.bf16.msra.mxu0 0
      %629 = vmatprep.subr.bf16.mxu0 0
      %630 = vmatpush1.bf16.msra.mxu0 0
      %631 = vmatprep.subr.bf16.mxu0 0
      %632 = vmatpush1.bf16.msra.mxu0 0
      %633 = vmatprep.subr.bf16.mxu0 0
      %634 = vmatpush1.bf16.msra.mxu0 0
      %635 = vmatprep.mubr.bf16.mxu0 0
      %636 = vmatmul.mubr.bf16.gmra.mrb[0].mxu0 %v598
      %v637 = vpop.f32.mrb[0].mxu0
      %v638 = vadd.f32 0.0, %v637
      %v639 = vpop.f32.mrb[0].mxu0
      %v640 = vpop.f32.mrb[0].mxu0
      %v641 = vpop.f32.mrb[0].mxu0
      %642 = vdwg.mxu0
      %v644 = vsel %vm271, %v503, 0
      %v647 = vsel %vm507, %v270, 0
      %649 = vmatprep.subr.bf16.mxu0 0
      %650 = vmatpush1.bf16.msra.mxu0 %v647
      %651 = vmatprep.subr.bf16.mxu0 0
      %652 = vmatpush1.bf16.msra.mxu0 0
      %653 = vmatprep.subr.bf16.mxu0 0
      %654 = vmatpush1.bf16.msra.mxu0 0
      %655 = vmatprep.subr.bf16.mxu0 0
      %656 = vmatpush1.bf16.msra.mxu0 0
      %657 = vmatprep.subr.bf16.mxu0 0
      %658 = vmatpush1.bf16.msra.mxu0 0
      %659 = vmatprep.subr.bf16.mxu0 0
      %660 = vmatpush1.bf16.msra.mxu0 0
      %661 = vmatprep.subr.bf16.mxu0 0
      %662 = vmatpush1.bf16.msra.mxu0 0
      %663 = vmatprep.subr.bf16.mxu0 0
      %664 = vmatpush1.bf16.msra.mxu0 0
      %665 = vmatprep.subr.bf16.mxu0 0
      %666 = vmatpush1.bf16.msra.mxu0 0
      %667 = vmatprep.subr.bf16.mxu0 0
      %668 = vmatpush1.bf16.msra.mxu0 0
      %669 = vmatprep.subr.bf16.mxu0 0
      %670 = vmatpush1.bf16.msra.mxu0 0
      %671 = vmatprep.subr.bf16.mxu0 0
      %672 = vmatpush1.bf16.msra.mxu0 0
      %673 = vmatprep.subr.bf16.mxu0 0
      %674 = vmatpush1.bf16.msra.mxu0 0
      %675 = vmatprep.subr.bf16.mxu0 0
      %676 = vmatpush1.bf16.msra.mxu0 0
      %677 = vmatprep.subr.bf16.mxu0 0
      %678 = vmatpush1.bf16.msra.mxu0 0
      %679 = vmatprep.subr.bf16.mxu0 0
      %680 = vmatpush1.bf16.msra.mxu0 0
      %681 = vmatprep.mubr.bf16.mxu0 0
      %682 = vmatmul.mubr.bf16.gmra.mrb[0].mxu0 %v644
      %v683 = vpop.f32.mrb[0].mxu0
      %v684 = vadd.f32 0.0, %v683
      %v685 = vpop.f32.mrb[0].mxu0
      %v686 = vpop.f32.mrb[0].mxu0
      %v687 = vpop.f32.mrb[0].mxu0
      %688 = vdwg.mxu0
      %689 = vst.msk [vmem:[%s241] sm:$0xff] %vm271, %v546
      %690 = vst.msk [vmem:[%s241 + $0x8] sm:$0xff] %vm271, %v592
      %691 = vst.msk [vmem:[%s241 + $0x10] sm:$0xff] %vm271, %v638
      %692 = vst.msk [vmem:[%s241 + $0x18] sm:$0xff] %vm271, %v684
      %p693 = scmp.lt.s32.totalorder %s18, 1
      %s694 = scalar_select %p693, %s18, 1
      %p695 = scmp.lt.s32.totalorder %s19, 0
      %s696 = scalar_select %p695, %s19, 0
      %s697 = smul.addr %s694, 4
      %s698 = sadd.s32 %s696, %s697
      %s699 = smul.addr %s698, 8
      %s700 = scalar_lea.vmem %s3, %s699
      // Predicated region
      $region33: #{decoder_forward.23} parent=31 // pred_check
        %p701 = pneg %p126
      $region34: #{decoder_forward.23} parent=31 // pred_check_branch
        %703 = sbr.rel (%p701) target = $region36
      $region35: #{decoder_forward.23} parent=31 // pred_region
        _
      $region36: #{decoder_forward.23} parent=31 // pred_fallthru
        _
    $region32: #{decoder_forward.23} parent=5 // pred_fallthru
      _
    %p704 = scmp.le.s32.totalorder 2, %s9
    // Predicated region
    $region37: #{decoder_forward.23} parent=5 // pred_check
      %p705 = pneg %p704
    $region38: #{decoder_forward.23} parent=5 // pred_check_branch
      %707 = sbr.rel (%p705) target = $region40
    $region39: #{decoder_forward.23} parent=5 // pred_region
      %s708 = ssub.s32 %s9, 2
      // Predicated region
      $region41: #{decoder_forward.23} parent=39 // pred_check
        %p709 = pneg %p132
      $region42: #{decoder_forward.23} parent=39 // pred_check_branch
        %711 = sbr.rel (%p709) target = $region44
      $region43: #{decoder_forward.23} parent=39 // pred_region
        %p712 = scmp.lt.s32.totalorder %s20, 1
        %s713 = scalar_select %p712, %s20, 1
        %p714 = scmp.lt.s32.totalorder %s21, 0
        %s715 = scalar_select %p714, %s21, 0
        %s716 = smul.addr %s713, 4
        %s717 = sadd.s32 %s715, %s716
        %s718 = smul.addr %s717, 8
        %s719 = scalar_lea.vmem %s3, %s718
      $region44: #{decoder_forward.23} parent=39 // pred_fallthru
        _
    $region40: #{decoder_forward.23} parent=5 // pred_fallthru
      _
  $region6: #{decoder_forward.23} parent=0 // loop_footer
    %s13 = sadd.s32 1, %s9
  $region7: #{decoder_forward.23} parent=0 // loop_footer_branch
    %8 = sbr.rel target = $region3
  $region8: #{decoder_forward.23} parent=0 // loop_exit
    _

// kernel: decoder_forward.22
$region0: #{decoder_forward.22}
  #allocation0 [shape = 'u32[]', space=smem, size = 0x4, offset = 0x4, fixed_abs, tag = 'smem constant byte address 0x4 - core index']
  #allocation1 [shape = 'u32[144,128]{1,0:T(1,128)}', space=vmem, size = 0x12000, scoped, tag = 'internal scratch']
  #allocation2 [shape = 'f32[16,64]{1,0:T(8,128)}', space=vmem, size = 0x2000, scoped, tag = 'scratch operand']
  %s0 = inlined_call_operand.vmem [shape: f32[16,32], index: 0, kind: input, shape index: {}]
  %s1 = inlined_call_operand.vmem [shape: f32[32,64], index: 1, kind: input, shape index: {}]
  %s2 = inlined_call_operand.vmem [shape: f32[1,64], index: 2, kind: input, shape index: {}]
  %s3 = inlined_call_operand.vmem [shape: f32[16,64], index: 3, kind: output, shape index: {}]
  %s4 = sld [smem:[#allocation0]]
  $region30: #{decoder_forward.22} parent=0
    _
  %s6 = ssub.s32 1, %s4
  %s7 = scalar_select 0, %s6, %s4
  // Predicated region
  $region2: #{decoder_forward.22} parent=0 // pred_check
    _
  $region3: #{decoder_forward.22} parent=0 // pred_check_branch
    %9 = sbr.rel (0) target = $region5
  $region4: #{decoder_forward.22} parent=0 // pred_region
    _
  $region5: #{decoder_forward.22} parent=0 // pred_fallthru
    _
  // Predicated region
  $region6: #{decoder_forward.22} parent=0 // pred_check
    _
  $region7: #{decoder_forward.22} parent=0 // pred_check_branch
    %11 = sbr.rel (0) target = $region9
  $region8: #{decoder_forward.22} parent=0 // pred_region
    _
  $region9: #{decoder_forward.22} parent=0 // pred_fallthru
    _
  // Predicated region
  $region10: #{decoder_forward.22} parent=0 // pred_check
    _
  $region11: #{decoder_forward.22} parent=0 // pred_check_branch
    %13 = sbr.rel (0) target = $region13
  $region12: #{decoder_forward.22} parent=0 // pred_region
    _
  $region13: #{decoder_forward.22} parent=0 // pred_fallthru
    _
  %p15 = scmp.eq.s32.totalorder 0, 0
  // Predicated region
  $region14: #{decoder_forward.22} parent=0 // pred_check
    %p16 = pneg %p15
  $region15: #{decoder_forward.22} parent=0 // pred_check_branch
    %18 = sbr.rel (%p16) target = $region17
  $region16: #{decoder_forward.22} parent=0 // pred_region
    %vm19 = vcmask 523264
    %20 = vst.msk [vmem:[#allocation2] sm:$0xff] %vm19, 0.0
    %21 = vst.msk [vmem:[#allocation2 + $0x8] sm:$0xff] %vm19, 0.0
  $region17: #{decoder_forward.22} parent=0 // pred_fallthru
    _
  %v22 = vld [vmem:[#allocation2] sm:$0xff]
  %v23 = vld [vmem:[#allocation2 + $0x8] sm:$0xff]
  %v24 = vld [vmem:[%s0] sm:$0xff]
  %v25 = vld [vmem:[%s0 + $0x8] sm:$0xff]
  %v26 = vpack.c.bf16 %v25, %v24
  %v27 = vld [vmem:[%s1] sm:$0xff]
  %v28 = vld [vmem:[%s1 + $0x8] sm:$0xff]
  %v29 = vld [vmem:[%s1 + $0x10] sm:$0xff]
  %v30 = vld [vmem:[%s1 + $0x18] sm:$0xff]
  %v31 = vpack.c.bf16 %v28, %v27
  %v32 = vpack.c.bf16 %v30, %v29
  %vm33 = vcmask 261120
  %v35 = vsel %vm33, %v26, 0
  %37 = vmatprep.subr.bf16.mxu0 0
  %38 = vmatpush1.bf16.msra.mxu0 %v31
  %39 = vmatprep.subr.bf16.mxu0 0
  %40 = vmatpush1.bf16.msra.mxu0 %v32
  %41 = vmatprep.subr.bf16.mxu0 0
  %42 = vmatpush1.bf16.msra.mxu0 0
  %43 = vmatprep.subr.bf16.mxu0 0
  %44 = vmatpush1.bf16.msra.mxu0 0
  %45 = vmatprep.subr.bf16.mxu0 0
  %46 = vmatpush1.bf16.msra.mxu0 0
  %47 = vmatprep.subr.bf16.mxu0 0
  %48 = vmatpush1.bf16.msra.mxu0 0
  %49 = vmatprep.subr.bf16.mxu0 0
  %50 = vmatpush1.bf16.msra.mxu0 0
  %51 = vmatprep.subr.bf16.mxu0 0
  %52 = vmatpush1.bf16.msra.mxu0 0
  %53 = vmatprep.subr.bf16.mxu0 0
  %54 = vmatpush1.bf16.msra.mxu0 0
  %55 = vmatprep.subr.bf16.mxu0 0
  %56 = vmatpush1.bf16.msra.mxu0 0
  %57 = vmatprep.subr.bf16.mxu0 0
  %58 = vmatpush1.bf16.msra.mxu0 0
  %59 = vmatprep.subr.bf16.mxu0 0
  %60 = vmatpush1.bf16.msra.mxu0 0
  %61 = vmatprep.subr.bf16.mxu0 0
  %62 = vmatpush1.bf16.msra.mxu0 0
  %63 = vmatprep.subr.bf16.mxu0 0
  %64 = vmatpush1.bf16.msra.mxu0 0
  %65 = vmatprep.subr.bf16.mxu0 0
  %66 = vmatpush1.bf16.msra.mxu0 0
  %67 = vmatprep.subr.bf16.mxu0 0
  %68 = vmatpush1.bf16.msra.mxu0 0
  %69 = vmatprep.mubr.bf16.mxu0 0
  %70 = vmatmul.mubr.bf16.gmra.mrb[0].mxu0 %v35
  %v71 = vpop.f32.mrb[0].mxu0
  %v72 = vadd.f32 0.0, %v71
  %v73 = vpop.f32.mrb[0].mxu0
  %v74 = vpop.f32.mrb[0].mxu0
  %v75 = vadd.f32 0.0, %v74
  %v76 = vpop.f32.mrb[0].mxu0
  %77 = vdwg.mxu0
  %v78 = vadd.f32 %v22, %v72
  %v79 = vadd.f32 %v23, %v75
  %vm80 = vcmask 523264
  %81 = vst.msk [vmem:[#allocation2] sm:$0xff] %vm80, %v78
  %82 = vst.msk [vmem:[#allocation2 + $0x8] sm:$0xff] %vm80, %v79
  // Predicated region
  $region18: #{decoder_forward.22} parent=0 // pred_check
    %p83 = pneg %p15
  $region19: #{decoder_forward.22} parent=0 // pred_check_branch
    %85 = sbr.rel (%p83) target = $region21
  $region20: #{decoder_forward.22} parent=0 // pred_region
    %v86 = vld [vmem:[#allocation2] sm:$0xff]
    %v87 = vld [vmem:[#allocation2 + $0x8] sm:$0xff]
    %v88 = vld [vmem:[%s2] sm:$0x1]
    %v90 = vlaneseq
    %v91 = vshrl.u32 %v90, 7
    %v92 = vsub.s32 0, %v91
    %v93 = vrot.slane %v88, %v92
    %v95 = vadd.f32 %v86, %v93
    %v96 = vadd.f32 %v87, %v93
    %97 = vst.msk [vmem:[%s3] sm:$0xff] %vm80, %v95
    %98 = vst.msk [vmem:[%s3 + $0x8] sm:$0xff] %vm80, %v96
  $region21: #{decoder_forward.22} parent=0 // pred_fallthru
    _
  // Predicated region
  $region22: #{decoder_forward.22} parent=0 // pred_check
    _
  $region23: #{decoder_forward.22} parent=0 // pred_check_branch
    %100 = sbr.rel (0) target = $region25
  $region24: #{decoder_forward.22} parent=0 // pred_region
    _
  $region25: #{decoder_forward.22} parent=0 // pred_fallthru
    _
  // Predicated region
  $region26: #{decoder_forward.22} parent=0 // pred_check
    _
  $region27: #{decoder_forward.22} parent=0 // pred_check_branch
    %102 = sbr.rel (0) target = $region29
  $region28: #{decoder_forward.22} parent=0 // pred_region
    _
  $region29: #{decoder_forward.22} parent=0 // pred_fallthru
    _

// kernel: decoder_forward.35
$region0: #{decoder_forward.35}
  #allocation0 [shape = 'u32[]', space=smem, size = 0x4, offset = 0x4, fixed_abs, tag = 'smem constant byte address 0x4 - core index']
  #allocation1 [shape = 'u32[144,128]{1,0:T(1,128)}', space=vmem, size = 0x12000, scoped, tag = 'internal scratch']
  #allocation2 [shape = 'f32[16,32]{1,0:T(8,128)}', space=vmem, size = 0x2000, scoped, tag = 'scratch operand']
  %s0 = inlined_call_operand.vmem [shape: f32[16,64], index: 0, kind: input, shape index: {}]
  %s1 = inlined_call_operand.vmem [shape: f32[64,32], index: 1, kind: input, shape index: {}]
  %s2 = inlined_call_operand.vmem [shape: f32[1,32], index: 2, kind: input, shape index: {}]
  %s3 = inlined_call_operand.vmem [shape: f32[16,32], index: 3, kind: input, shape index: {}]
  %s4 = inlined_call_operand.vmem [shape: f32[1,32], index: 4, kind: input, shape index: {}]
  %s5 = inlined_call_operand.vmem [shape: f32[1,32], index: 5, kind: input, shape index: {}]
  %s6 = inlined_call_operand.hbm [shape: f32[16,32], index: 6, kind: output, shape index: {}]
  %s7 = sld [smem:[#allocation0]]
  $region42: #{decoder_forward.35} parent=0
    _
  %s9 = ssub.s32 1, %s7
  %s10 = scalar_select 0, %s9, %s7
  $region1: #{decoder_forward.35} parent=0
    #allocation3 [shape = 'u8[8192]{0}', space=vmem, size = 0x2000, scoped, tag = 'output window, operand 0, single buffered']
    #allocation4 [shape = 's32[1]{0}', space=sflag, size = 0x4, scoped, tag = 'scoped memory for decoder_forward.35']
    %11 = vsyncpa [#allocation4], 0
    // Predicated region
    $region2: #{decoder_forward.35} parent=1 // pred_check
      _
    $region3: #{decoder_forward.35} parent=1 // pred_check_branch
      %13 = sbr.rel (0) target = $region5
    $region4: #{decoder_forward.35} parent=1 // pred_region
      _
    $region5: #{decoder_forward.35} parent=1 // pred_fallthru
      _
    // Predicated region
    $region6: #{decoder_forward.35} parent=1 // pred_check
      _
    $region7: #{decoder_forward.35} parent=1 // pred_check_branch
      %15 = sbr.rel (0) target = $region9
    $region8: #{decoder_forward.35} parent=1 // pred_region
      _
    $region9: #{decoder_forward.35} parent=1 // pred_fallthru
      _
    // Predicated region
    $region10: #{decoder_forward.35} parent=1 // pred_check
      _
    $region11: #{decoder_forward.35} parent=1 // pred_check_branch
      %17 = sbr.rel (0) target = $region13
    $region12: #{decoder_forward.35} parent=1 // pred_region
      _
    $region13: #{decoder_forward.35} parent=1 // pred_fallthru
      _
    // Predicated region
    $region14: #{decoder_forward.35} parent=1 // pred_check
      _
    $region15: #{decoder_forward.35} parent=1 // pred_check_branch
      %19 = sbr.rel (0) target = $region17
    $region16: #{decoder_forward.35} parent=1 // pred_region
      _
    $region17: #{decoder_forward.35} parent=1 // pred_fallthru
      _
    // Predicated region
    $region18: #{decoder_forward.35} parent=1 // pred_check
      _
    $region19: #{decoder_forward.35} parent=1 // pred_check_branch
      %21 = sbr.rel (0) target = $region21
    $region20: #{decoder_forward.35} parent=1 // pred_region
      _
    $region21: #{decoder_forward.35} parent=1 // pred_fallthru
      _
    // Predicated region
    $region22: #{decoder_forward.35} parent=1 // pred_check
      _
    $region23: #{decoder_forward.35} parent=1 // pred_check_branch
      %23 = sbr.rel (0) target = $region25
    $region24: #{decoder_forward.35} parent=1 // pred_region
      _
    $region25: #{decoder_forward.35} parent=1 // pred_fallthru
      _
    %p25 = scmp.eq.s32.totalorder 0, 0
    // Predicated region
    $region26: #{decoder_forward.35} parent=1 // pred_check
      %p26 = pneg %p25
    $region27: #{decoder_forward.35} parent=1 // pred_check_branch
      %28 = sbr.rel (%p26) target = $region29
    $region28: #{decoder_forward.35} parent=1 // pred_region
      %vm29 = vcmask 261120
      %30 = vst.msk [vmem:[#allocation2] sm:$0xff] %vm29, 0.0
      %31 = vst.msk [vmem:[#allocation2 + $0x8] sm:$0xff] %vm29, 0.0
    $region29: #{decoder_forward.35} parent=1 // pred_fallthru
      _
    %v32 = vld [vmem:[#allocation2] sm:$0xff]
    %v33 = vld [vmem:[#allocation2 + $0x8] sm:$0xff]
    %v34 = vld [vmem:[%s0] sm:$0xff]
    %v35 = vld [vmem:[%s0 + $0x8] sm:$0xff]
    %v36 = vpack.c.bf16 %v35, %v34
    %v37 = vld [vmem:[%s1] sm:$0xff]
    %v38 = vld [vmem:[%s1 + $0x8] sm:$0xff]
    %v39 = vld [vmem:[%s1 + $0x10] sm:$0xff]
    %v40 = vld [vmem:[%s1 + $0x18] sm:$0xff]
    %v41 = vld [vmem:[%s1 + $0x20] sm:$0xff]
    %v42 = vld [vmem:[%s1 + $0x28] sm:$0xff]
    %v43 = vld [vmem:[%s1 + $0x30] sm:$0xff]
    %v44 = vld [vmem:[%s1 + $0x38] sm:$0xff]
    %v45 = vpack.c.bf16 %v38, %v37
    %v46 = vpack.c.bf16 %v40, %v39
    %v47 = vpack.c.bf16 %v42, %v41
    %v48 = vpack.c.bf16 %v44, %v43
    %vm49 = vcmask 523264
    %v51 = vsel %vm49, %v36, 0
    %53 = vmatprep.subr.bf16.mxu0 0
    %54 = vmatpush1.bf16.msra.mxu0 %v45
    %55 = vmatprep.subr.bf16.mxu0 0
    %56 = vmatpush1.bf16.msra.mxu0 %v46
    %57 = vmatprep.subr.bf16.mxu0 0
    %58 = vmatpush1.bf16.msra.mxu0 %v47
    %59 = vmatprep.subr.bf16.mxu0 0
    %60 = vmatpush1.bf16.msra.mxu0 %v48
    %61 = vmatprep.subr.bf16.mxu0 0
    %62 = vmatpush1.bf16.msra.mxu0 0
    %63 = vmatprep.subr.bf16.mxu0 0
    %64 = vmatpush1.bf16.msra.mxu0 0
    %65 = vmatprep.subr.bf16.mxu0 0
    %66 = vmatpush1.bf16.msra.mxu0 0
    %67 = vmatprep.subr.bf16.mxu0 0
    %68 = vmatpush1.bf16.msra.mxu0 0
    %69 = vmatprep.subr.bf16.mxu0 0
    %70 = vmatpush1.bf16.msra.mxu0 0
    %71 = vmatprep.subr.bf16.mxu0 0
    %72 = vmatpush1.bf16.msra.mxu0 0
    %73 = vmatprep.subr.bf16.mxu0 0
    %74 = vmatpush1.bf16.msra.mxu0 0
    %75 = vmatprep.subr.bf16.mxu0 0
    %76 = vmatpush1.bf16.msra.mxu0 0
    %77 = vmatprep.subr.bf16.mxu0 0
    %78 = vmatpush1.bf16.msra.mxu0 0
    %79 = vmatprep.subr.bf16.mxu0 0
    %80 = vmatpush1.bf16.msra.mxu0 0
    %81 = vmatprep.subr.bf16.mxu0 0
    %82 = vmatpush1.bf16.msra.mxu0 0
    %83 = vmatprep.subr.bf16.mxu0 0
    %84 = vmatpush1.bf16.msra.mxu0 0
    %85 = vmatprep.mubr.bf16.mxu0 0
    %86 = vmatmul.mubr.bf16.gmra.mrb[0].mxu0 %v51
    %v87 = vpop.f32.mrb[0].mxu0
    %v88 = vadd.f32 0.0, %v87
    %v89 = vpop.f32.mrb[0].mxu0
    %v90 = vpop.f32.mrb[0].mxu0
    %v91 = vadd.f32 0.0, %v90
    %v92 = vpop.f32.mrb[0].mxu0
    %93 = vdwg.mxu0
    %v94 = vadd.f32 %v32, %v88
    %v95 = vadd.f32 %v33, %v91
    %vm96 = vcmask 261120
    %97 = vst.msk [vmem:[#allocation2] sm:$0xff] %vm96, %v94
    %98 = vst.msk [vmem:[#allocation2 + $0x8] sm:$0xff] %vm96, %v95
    // Predicated region
    $region30: #{decoder_forward.35} parent=1 // pred_check
      %p99 = pneg %p25
    $region31: #{decoder_forward.35} parent=1 // pred_check_branch
      %101 = sbr.rel (%p99) target = $region33
    $region32: #{decoder_forward.35} parent=1 // pred_region
      %v102 = vld [vmem:[#allocation2] sm:$0xff]
      %v103 = vld [vmem:[#allocation2 + $0x8] sm:$0xff]
      %v104 = vld [vmem:[%s2] sm:$0x1]
      %v106 = vlaneseq
      %v107 = vshrl.u32 %v106, 7
      %v108 = vsub.s32 0, %v107
      %v109 = vrot.slane %v104, %v108
      %v111 = vadd.f32 %v102, %v109
      %v112 = vadd.f32 %v103, %v109
      %v113 = vld [vmem:[%s3] sm:$0xff]
      %v114 = vld [vmem:[%s3 + $0x8] sm:$0xff]
      %v115 = vadd.f32 %v111, %v113
      %v116 = vadd.f32 %v112, %v114
      %v117 = vsel %vm96, %v115, 0.0
      %118 = vadd.xlane.f32.xlu0 %v117
      %v119 = vpop.xlane.xlu0 %118
      %v120 = vsel %vm96, %v116, 0.0
      %121 = vadd.xlane.f32.xlu0 %v120
      %v122 = vpop.xlane.xlu0 %121
      %v123 = vrcp.pop 32.0
      %v124 = vmul.f32 %v119, %v123
      %v125 = vmul.f32 %v122, %v123
      %v126 = vsub.f32 %v115, %v124
      %v127 = vsub.f32 %v116, %v125
      %v128 = vmul.f32 %v126, %v126
      %v129 = vmul.f32 %v127, %v127
      %v130 = vsel %vm96, %v128, 0.0
      %131 = vadd.xlane.f32.xlu0 %v130
      %v132 = vpop.xlane.xlu0 %131
      %v133 = vsel %vm96, %v129, 0.0
      %134 = vadd.xlane.f32.xlu0 %v133
      %v135 = vpop.xlane.xlu0 %134
      %v136 = vmul.f32 %v132, %v123
      %v137 = vmul.f32 %v135, %v123
      %v138 = vadd.f32 %v136, 1e-05
      %v139 = vadd.f32 %v137, 1e-05
      %v140 = vrsqrt.pop %v138
      %v141 = vrsqrt.pop %v139
      %v142 = vmul.f32 %v126, %v140
      %v143 = vmul.f32 %v127, %v141
      %v144 = vld [vmem:[%s4] sm:$0x1]
      %v146 = vlaneseq
      %v147 = vshrl.u32 %v146, 7
      %v148 = vsub.s32 0, %v147
      %v149 = vrot.slane %v144, %v148
      %v151 = vmul.f32 %v142, %v149
      %v152 = vmul.f32 %v143, %v149
      %v153 = vld [vmem:[%s5] sm:$0x1]
      %v155 = vlaneseq
      %v156 = vshrl.u32 %v155, 7
      %v157 = vsub.s32 0, %v156
      %v158 = vrot.slane %v153, %v157
      %v160 = vadd.f32 %v151, %v158
      %v161 = vadd.f32 %v152, %v158
      %162 = vst.msk [vmem:[#allocation3] sm:$0xff] %vm96, %v160
      %163 = vst.msk [vmem:[#allocation3 + $0x8] sm:$0xff] %vm96, %v161
    $region33: #{decoder_forward.35} parent=1 // pred_fallthru
      _
    // Predicated region
    $region34: #{decoder_forward.35} parent=1 // pred_check
      _
    $region35: #{decoder_forward.35} parent=1 // pred_check_branch
      %165 = sbr.rel (0) target = $region37
    $region36: #{decoder_forward.35} parent=1 // pred_region
      %s167 = ssub.s32 256, 256
      %168 = vsyncadd [#allocation4], %s167
      %s169 = sshll.u32 [#allocation3], 4
      %s170 = int_to_ptr.vmem [resolvable:$true] %s169
      %175 = dma.vmem_to_hbm [thread:$0]  %s170, 256, %s6, [#allocation4], 128, 128, 8
    $region37: #{decoder_forward.35} parent=1 // pred_fallthru
      _
    // Predicated region
    $region38: #{decoder_forward.35} parent=1 // pred_check
      _
    $region39: #{decoder_forward.35} parent=1 // pred_check_branch
      %177 = sbr.rel (0) target = $region41
    $region40: #{decoder_forward.35} parent=1 // pred_region
      %178 = dma.done [#allocation4], 256
    $region41: #{decoder_forward.35} parent=1 // pred_fallthru
      _
    %179 = vsyncpa [#allocation4], 1

</llo_original>
